<compile_context>
chip_gen: v5e
topology: v5e:2x2
jax: 0.10.0
libtpu: 0.0.40
codegen_flags: <defaults>
</compile_context>

<pallas_src>
import jax
import jax.numpy as jnp
from jax.experimental import pallas as pl
from jax.experimental.pallas import tpu as pltpu


def _cdiv(a, b):
    return -(-a // b)


def _round_up(x, m):
    return ((x + m - 1) // m) * m


def _sublane(dtype):
    # Rows per sublane group: f32 -> 8, bf16 -> 16, int8/fp8 -> 32.
    return {4: 8, 2: 16, 1: 32}.get(jnp.dtype(dtype).itemsize, 8)


def _vmem_capacity_bytes():
    try:
        return int(pltpu.get_tpu_info().vmem_capacity_bytes)
    except Exception:
        return 64 * 1024 * 1024  # conservative: v7x per-TensorCore VMEM


def _simsiam_kernel(x_ref,
                    w1_ref, b1_ref, w2_ref, b2_ref,   # projector
                    w3_ref, b3_ref, w4_ref, b4_ref,   # predictor
                    z_ref, p_ref):
    f32 = jnp.float32

    # projector: Linear -> ReLU -> Linear  (f32 accumulation on the MXU)
    h = jnp.dot(x_ref[...].astype(w1_ref.dtype), w1_ref[...],
                preferred_element_type=f32)
    h = jnp.maximum(h + b1_ref[...].astype(f32), 0.0)
    z = jnp.dot(h.astype(w2_ref.dtype), w2_ref[...], preferred_element_type=f32)
    z = z + b2_ref[...].astype(f32)

    # Store z in I/O dtype and feed *that same value* to the predictor so the returned z
    # and the z consumed downstream are identical (PyTorch single-dtype semantics).
    z_io = z.astype(z_ref.dtype)
    z_ref[...] = z_io

    # predictor: Linear -> ReLU -> Linear
    h2 = jnp.dot(z_io.astype(w3_ref.dtype), w3_ref[...], preferred_element_type=f32)
    h2 = jnp.maximum(h2 + b3_ref[...].astype(f32), 0.0)
    p = jnp.dot(h2.astype(w4_ref.dtype), w4_ref[...], preferred_element_type=f32)
    p_ref[...] = (p + b4_ref[...].astype(f32)).astype(p_ref.dtype)


def _simsiam_fused(x_views, params, *, single_buffer_weights=True, block_rows=None):
    """Projector+predictor for both views in ONE pallas_call.

    x_views: (2, B, D_in) -- the two augmented views stacked on a leading axis.
    Returns (z, p), each (2, B, D_proj).
    """
    V, N, D_in = x_views.shape
    vmem_cap = _vmem_capacity_bytes()
    itemsize = jnp.dtype(x_views.dtype).itemsize

    # v7x (64 MiB VMEM) fallback: if resident f32 weights would eat most of VMEM, keep a
    # bf16 resident copy instead (MXU accumulation stays f32).
    wgt_bytes = sum(int(a.size) * jnp.dtype(a.dtype).itemsize for a in params)
    if wgt_bytes > 0.45 * vmem_cap and jnp.dtype(params[0].dtype).itemsize == 4:
        params = tuple(a.astype(jnp.bfloat16) for a in params)
        wgt_bytes = sum(int(a.size) * jnp.dtype(a.dtype).itemsize for a in params)
    # TODO(synk): if even bf16 weights exceed VMEM (very large heads), add K/N tiling with an
    #             extra 'arbitrary' grid axis + f32 accumulator scratch instead of residency.
    w1, b1, w2, b2, w3, b3, w4, b4 = params
    H = w1.shape[1]
    D_proj = w2.shape[1]

    # Row tiling: balanced tiles (avoid a mostly-padded last tile), rounded up to the
    # dtype's sublane granularity.  Larger default tiles on the 128-MiB VMEM parts.
    sub = _sublane(x_views.dtype)
    if block_rows is None:
        block_rows = 512 if vmem_cap >= 96 * 1024 * 1024 else 256
    n_tiles = max(1, _cdiv(N, block_rows))
    tm = _round_up(_cdiv(N, n_tiles), sub)
    n_tiles = _cdiv(N, tm)
    n_pad = n_tiles * tm
    if n_pad != N:
        x_views = jnp.pad(x_views, ((0, 0), (0, n_pad - N), (0, 0)))

    grid = (V, n_tiles)  # view axis + row-tile axis, both 'parallel' (megacore / dual-TC)

    def act_spec(d):
        # Leading view dim squeezed out of the kernel ref; feature dim full and lane-dense.
        return pl.BlockSpec((None, tm, d), lambda v, i: (v, i, 0))

    def const_spec(shape):
        # Grid-invariant block: weights/biases stay resident in VMEM across all grid steps.
        # Single-buffered: re-DMA never happens, so 2-deep buffering only doubles footprint.
        if single_buffer_weights:
            return pl.BlockSpec(shape, lambda v, i: (0, 0),
                                pipeline_mode=pl.Buffered(1))
        return pl.BlockSpec(shape, lambda v, i: (0, 0))

    # VMEM budget: double-buffered activation tiles + resident weights + f32 intermediates,
    # ~30% headroom, clamped to ~85% of this generation's physical VMEM.
    act_bytes = 2 * tm * D_in * itemsize                      # x tile (2-deep)
    out_bytes = 2 * 2 * tm * D_proj * itemsize                # z & p tiles (2-deep)
    res_wgt_bytes = (1 if single_buffer_weights else 2) * wgt_bytes
    tmp_bytes = 2 * tm * (H + D_proj) * 4                     # f32 intermediates
    est = int(1.3 * (act_bytes + out_bytes + res_wgt_bytes + tmp_bytes))
    vmem_limit = max(32 * 1024 * 1024, min(est, int(0.85 * vmem_cap)))

    # Advisory cost so XLA can overlap this call with surrounding ops.
    flops = 2 * V * n_pad * (D_in * H + H * D_proj + D_proj * H + H * D_proj)
    bytes_accessed = (V * n_pad * D_in * itemsize + wgt_bytes
                      + 2 * V * n_pad * D_proj * itemsize)
    cost = pl.CostEstimate(flops=flops, transcendentals=0,
                           bytes_accessed=bytes_accessed)

    z, p = pl.pallas_call(
        _simsiam_kernel,
        out_shape=(
            jax.ShapeDtypeStruct((V, n_pad, D_proj), x_views.dtype),
            jax.ShapeDtypeStruct((V, n_pad, D_proj), x_views.dtype),
        ),
        grid=grid,
        in_specs=[
            act_spec(D_in),
            const_spec(w1.shape), const_spec(b1.shape),
            const_spec(w2.shape), const_spec(b2.shape),
            const_spec(w3.shape), const_spec(b3.shape),
            const_spec(w4.shape), const_spec(b4.shape),
        ],
        out_specs=(act_spec(D_proj), act_spec(D_proj)),
        compiler_params=pltpu.CompilerParams(
            dimension_semantics=("parallel", "parallel"),
            vmem_limit_bytes=vmem_limit,
        ),
        cost_estimate=cost,
    )(x_views, w1, b1, w2, b2, w3, b3, w4, b4)

    if n_pad != N:
        z = z[:, :N]
        p = p[:, :N]
    return z, p


def simsiam_forward(x1, x2, params, *, single_buffer_weights=True):
    """Matches SimSiam.forward: returns (p1, p2, z1.detach(), z2.detach())."""
    # One pallas_call for both views: weights DMA'd to VMEM once, and the view axis gives
    # >= 2 'parallel' grid tiles (keeps both v7x TensorCores busy even at small batch).
    # TODO(synk): ideally the upstream backbone writes both views directly into one
    #             (2, B, D) buffer so this stack is not an extra HBM round trip.
    x_views = jnp.stack([x1, x2], axis=0)
    z, p = _simsiam_fused(x_views, params,
                          single_buffer_weights=single_buffer_weights)
    p1, p2 = p[0], p[1]
    z1, z2 = z[0], z[1]
    # .detach() == stop_gradient; forward values identical.
    # TODO(synk): wrap the pallas_call in jax.custom_vjp before using inside a training
    #             step (pallas_call is not differentiable by default).
    return p1, p2, jax.lax.stop_gradient(z1), jax.lax.stop_gradient(z2)


def init_params(key, d_in, hidden, d_proj, dtype=jnp.float32):
    ks = jax.random.split(key, 8)

    def lin(kw, kb, fan_in, fan_out):
        bound = 1.0 / (fan_in ** 0.5)
        w = jax.random.uniform(kw, (fan_in, fan_out), dtype, -bound, bound)
        b = jax.random.uniform(kb, (1, fan_out), dtype, -bound, bound)  # (1, N) lane layout
        return w, b

    w1, b1 = lin(ks[0], ks[1], d_in, hidden)     # projector fc1
    w2, b2 = lin(ks[2], ks[3], hidden, d_proj)   # projector fc2
    w3, b3 = lin(ks[4], ks[5], d_proj, hidden)   # predictor fc1
    w4, b4 = lin(ks[6], ks[7], hidden, d_proj)   # predictor fc2
    return (w1, b1, w2, b2, w3, b3, w4, b4)


if __name__ == "__main__":
    key = jax.random.PRNGKey(0)
    k_x1, k_x2, k_p = jax.random.split(key, 3)

    # Feature dims are multiples of 256 so contraction/output dims fill the 256x256 MXU on
    # v6e/v7x (128-wide dims leave ~75% of that array idle; v5e's 128x128 is full either
    # way).  B=20 exercises sublane rounding + row padding.
    B, D_IN, HIDDEN, D_PROJ = 20, 256, 256, 256
    x1 = jax.random.normal(k_x1, (B, D_IN), jnp.float32)
    x2 = jax.random.normal(k_x2, (B, D_IN), jnp.float32)
    params = init_params(k_p, D_IN, HIDDEN, D_PROJ, jnp.float32)

    def _run(single_buffer, xa, xb, ps):
        fwd = jax.jit(
            lambda a, b, q: simsiam_forward(a, b, q,
                                            single_buffer_weights=single_buffer))
        out = fwd(xa, xb, ps)
        jax.block_until_ready(out)
        return out

    try:
        p1, p2, z1, z2 = _run(True, x1, x2, params)
        sbw = True
    except Exception:
        # TODO(synk): this jax build rejects pl.Buffered(1) on pipelined operands; fall
        #             back to default 2-deep buffering (extra resident weight VMEM).
        p1, p2, z1, z2 = _run(False, x1, x2, params)
        sbw = False

    # ---- correctness vs plain-JAX reference (f32) ----
    def ref_branch(x, ps):
        w1, b1, w2, b2, w3, b3, w4, b4 = [a.astype(jnp.float32) for a in ps]
        x = x.astype(jnp.float32)
        z = jnp.maximum(x @ w1 + b1, 0.0) @ w2 + b2
        p = jnp.maximum(z @ w3 + b3, 0.0) @ w4 + b4
        return z, p

    def rel_err(a, b):
        a = a.astype(jnp.float32)
        return float(jnp.linalg.norm(a - b) / (jnp.linalg.norm(b) + 1e-12))

    z1_r, p1_r = ref_branch(x1, params)
    z2_r, p2_r = ref_branch(x2, params)
    assert rel_err(p1, p1_r) < 1e-2, "p1 mismatch"
    assert rel_err(p2, p2_r) < 1e-2, "p2 mismatch"
    assert rel_err(z1, z1_r) < 1e-2, "z1 mismatch"
    assert rel_err(z2, z2_r) < 1e-2, "z2 mismatch"

    # ---- bf16 weights/activations path (native MXU, f32 accumulation) ----
    params_bf16 = jax.tree_util.tree_map(lambda a: a.astype(jnp.bfloat16), params)
    p1b, p2b, z1b, z2b = _run(sbw, x1.astype(jnp.bfloat16),
                              x2.astype(jnp.bfloat16), params_bf16)
    assert rel_err(p1b, p1_r) < 5e-2, "bf16 p1 mismatch"
    assert rel_err(z1b, z1_r) < 5e-2, "bf16 z1 mismatch"

    print("KERNEL_OK")
</pallas_src>

<mosaic_0001>
module attributes {stable_mosaic.version = 11 : i64} {
  func.func @_simsiam_kernel(%arg0: i32, %arg1: i32, %arg2: memref<1x24x256xf32, #tpu.memory_space<vmem>>, %arg3: memref<256x256xf32, #tpu.memory_space<vmem>>, %arg4: memref<1x256xf32, #tpu.memory_space<vmem>>, %arg5: memref<256x256xf32, #tpu.memory_space<vmem>>, %arg6: memref<1x256xf32, #tpu.memory_space<vmem>>, %arg7: memref<256x256xf32, #tpu.memory_space<vmem>>, %arg8: memref<1x256xf32, #tpu.memory_space<vmem>>, %arg9: memref<256x256xf32, #tpu.memory_space<vmem>>, %arg10: memref<1x256xf32, #tpu.memory_space<vmem>>, %arg11: memref<1x24x256xf32, #tpu.memory_space<vmem>>, %arg12: memref<1x24x256xf32, #tpu.memory_space<vmem>>) attributes {dimension_semantics = [#tpu.dimension_semantics<parallel>, #tpu.dimension_semantics<parallel>], iteration_bounds = array<i64: 2, 1>, scalar_prefetch = 0 : i64, scratch_operands = 0 : i64, tpu.core_type = #tpu.core_type<tc>, window_params = [{transform_indices = @transform_0, window_bounds = array<i64: 1, 24, 256>}, {pipeline_mode = #tpu.pipeline_mode<synchronous>, transform_indices = @transform_1, window_bounds = array<i64: 256, 256>}, {pipeline_mode = #tpu.pipeline_mode<synchronous>, transform_indices = @transform_2, window_bounds = array<i64: 1, 256>}, {pipeline_mode = #tpu.pipeline_mode<synchronous>, transform_indices = @transform_3, window_bounds = array<i64: 256, 256>}, {pipeline_mode = #tpu.pipeline_mode<synchronous>, transform_indices = @transform_4, window_bounds = array<i64: 1, 256>}, {pipeline_mode = #tpu.pipeline_mode<synchronous>, transform_indices = @transform_5, window_bounds = array<i64: 256, 256>}, {pipeline_mode = #tpu.pipeline_mode<synchronous>, transform_indices = @transform_6, window_bounds = array<i64: 1, 256>}, {pipeline_mode = #tpu.pipeline_mode<synchronous>, transform_indices = @transform_7, window_bounds = array<i64: 256, 256>}, {pipeline_mode = #tpu.pipeline_mode<synchronous>, transform_indices = @transform_8, window_bounds = array<i64: 1, 256>}, {transform_indices = @transform_9, window_bounds = array<i64: 1, 24, 256>}, {transform_indices = @transform_10, window_bounds = array<i64: 1, 24, 256>}]} {
    %c0 = arith.constant 0 : index
    %c0_0 = arith.constant 0 : index
    %c0_1 = arith.constant 0 : index
    %0 = vector.load %arg2[%c0, %c0_0, %c0_1] : memref<1x24x256xf32, #tpu.memory_space<vmem>>, vector<1x24x256xf32>
    %1 = vector.shape_cast %0 : vector<1x24x256xf32> to vector<24x256xf32>
    %c0_2 = arith.constant 0 : index
    %c0_3 = arith.constant 0 : index
    %2 = vector.load %arg3[%c0_2, %c0_3] : memref<256x256xf32, #tpu.memory_space<vmem>>, vector<256x256xf32>
    %cst = arith.constant dense<0.000000e+00> : vector<24x256xf32>
    %3 = tpu.matmul %1, %2, %cst {dimension_numbers = #tpu.dot_dimension_numbers<[1], [0], [0], [1], [0, 0, 1, 1], [], []>} : vector<24x256xf32>, vector<256x256xf32>, vector<24x256xf32> -> vector<24x256xf32>
    %c0_4 = arith.constant 0 : index
    %c0_5 = arith.constant 0 : index
    %4 = vector.load %arg4[%c0_4, %c0_5] : memref<1x256xf32, #tpu.memory_space<vmem>>, vector<1x256xf32>
    %5 = vector.broadcast %4 : vector<1x256xf32> to vector<24x256xf32>
    %6 = arith.addf %3, %5 : vector<24x256xf32>
    %cst_6 = arith.constant 0.000000e+00 : f32
    %7 = vector.broadcast %cst_6 : f32 to vector<24x256xf32>
    %8 = arith.maximumf %6, %7 : vector<24x256xf32>
    %c0_7 = arith.constant 0 : index
    %c0_8 = arith.constant 0 : index
    %9 = vector.load %arg5[%c0_7, %c0_8] : memref<256x256xf32, #tpu.memory_space<vmem>>, vector<256x256xf32>
    %cst_9 = arith.constant dense<0.000000e+00> : vector<24x256xf32>
    %10 = tpu.matmul %8, %9, %cst_9 {dimension_numbers = #tpu.dot_dimension_numbers<[1], [0], [0], [1], [0, 0, 1, 1], [], []>} : vector<24x256xf32>, vector<256x256xf32>, vector<24x256xf32> -> vector<24x256xf32>
    %c0_10 = arith.constant 0 : index
    %c0_11 = arith.constant 0 : index
    %11 = vector.load %arg6[%c0_10, %c0_11] : memref<1x256xf32, #tpu.memory_space<vmem>>, vector<1x256xf32>
    %12 = vector.broadcast %11 : vector<1x256xf32> to vector<24x256xf32>
    %13 = arith.addf %10, %12 : vector<24x256xf32>
    %c0_12 = arith.constant 0 : index
    %c0_13 = arith.constant 0 : index
    %c0_14 = arith.constant 0 : index
    %14 = vector.load %arg11[%c0_12, %c0_13, %c0_14] : memref<1x24x256xf32, #tpu.memory_space<vmem>>, vector<1x24x256xf32>
    %15 = vector.shape_cast %14 : vector<1x24x256xf32> to vector<24x256xf32>
    %16 = vector.shape_cast %13 : vector<24x256xf32> to vector<1x24x256xf32>
    tpu.vector_store %arg11[%c0_12, %c0_13, %c0_14], %16 {strides = array<i32>} : memref<1x24x256xf32, #tpu.memory_space<vmem>>, vector<1x24x256xf32>,
    %c0_15 = arith.constant 0 : index
    %c0_16 = arith.constant 0 : index
    %17 = vector.load %arg7[%c0_15, %c0_16] : memref<256x256xf32, #tpu.memory_space<vmem>>, vector<256x256xf32>
    %cst_17 = arith.constant dense<0.000000e+00> : vector<24x256xf32>
    %18 = tpu.matmul %13, %17, %cst_17 {dimension_numbers = #tpu.dot_dimension_numbers<[1], [0], [0], [1], [0, 0, 1, 1], [], []>} : vector<24x256xf32>, vector<256x256xf32>, vector<24x256xf32> -> vector<24x256xf32>
    %c0_18 = arith.constant 0 : index
    %c0_19 = arith.constant 0 : index
    %19 = vector.load %arg8[%c0_18, %c0_19] : memref<1x256xf32, #tpu.memory_space<vmem>>, vector<1x256xf32>
    %20 = vector.broadcast %19 : vector<1x256xf32> to vector<24x256xf32>
    %21 = arith.addf %18, %20 : vector<24x256xf32>
    %cst_20 = arith.constant 0.000000e+00 : f32
    %22 = vector.broadcast %cst_20 : f32 to vector<24x256xf32>
    %23 = arith.maximumf %21, %22 : vector<24x256xf32>
    %c0_21 = arith.constant 0 : index
    %c0_22 = arith.constant 0 : index
    %24 = vector.load %arg9[%c0_21, %c0_22] : memref<256x256xf32, #tpu.memory_space<vmem>>, vector<256x256xf32>
    %cst_23 = arith.constant dense<0.000000e+00> : vector<24x256xf32>
    %25 = tpu.matmul %23, %24, %cst_23 {dimension_numbers = #tpu.dot_dimension_numbers<[1], [0], [0], [1], [0, 0, 1, 1], [], []>} : vector<24x256xf32>, vector<256x256xf32>, vector<24x256xf32> -> vector<24x256xf32>
    %c0_24 = arith.constant 0 : index
    %c0_25 = arith.constant 0 : index
    %26 = vector.load %arg10[%c0_24, %c0_25] : memref<1x256xf32, #tpu.memory_space<vmem>>, vector<1x256xf32>
    %27 = vector.broadcast %26 : vector<1x256xf32> to vector<24x256xf32>
    %28 = arith.addf %25, %27 : vector<24x256xf32>
    %c0_26 = arith.constant 0 : index
    %c0_27 = arith.constant 0 : index
    %c0_28 = arith.constant 0 : index
    %29 = vector.load %arg12[%c0_26, %c0_27, %c0_28] : memref<1x24x256xf32, #tpu.memory_space<vmem>>, vector<1x24x256xf32>
    %30 = vector.shape_cast %29 : vector<1x24x256xf32> to vector<24x256xf32>
    %31 = vector.shape_cast %28 : vector<24x256xf32> to vector<1x24x256xf32>
    tpu.vector_store %arg12[%c0_26, %c0_27, %c0_28], %31 {strides = array<i32>} : memref<1x24x256xf32, #tpu.memory_space<vmem>>, vector<1x24x256xf32>,
    return
  }
  func.func @transform_0(%arg0: i32, %arg1: i32) -> (i32, i32, i32) {
    %c0_i32 = arith.constant 0 : i32
    %c0_i32_0 = arith.constant 0 : i32
    return %arg0, %arg1, %c0_i32 : i32, i32, i32
  }
  func.func @transform_1(%arg0: i32, %arg1: i32) -> (i32, i32) {
    %c0_i32 = arith.constant 0 : i32
    %c0_i32_0 = arith.constant 0 : i32
    %c0_i32_1 = arith.constant 0 : i32
    return %c0_i32, %c0_i32_0 : i32, i32
  }
  func.func @transform_2(%arg0: i32, %arg1: i32) -> (i32, i32) {
    %c0_i32 = arith.constant 0 : i32
    %c0_i32_0 = arith.constant 0 : i32
    %c0_i32_1 = arith.constant 0 : i32
    return %c0_i32, %c0_i32_0 : i32, i32
  }
  func.func @transform_3(%arg0: i32, %arg1: i32) -> (i32, i32) {
    %c0_i32 = arith.constant 0 : i32
    %c0_i32_0 = arith.constant 0 : i32
    %c0_i32_1 = arith.constant 0 : i32
    return %c0_i32, %c0_i32_0 : i32, i32
  }
  func.func @transform_4(%arg0: i32, %arg1: i32) -> (i32, i32) {
    %c0_i32 = arith.constant 0 : i32
    %c0_i32_0 = arith.constant 0 : i32
    %c0_i32_1 = arith.constant 0 : i32
    return %c0_i32, %c0_i32_0 : i32, i32
  }
  func.func @transform_5(%arg0: i32, %arg1: i32) -> (i32, i32) {
    %c0_i32 = arith.constant 0 : i32
    %c0_i32_0 = arith.constant 0 : i32
    %c0_i32_1 = arith.constant 0 : i32
    return %c0_i32, %c0_i32_0 : i32, i32
  }
  func.func @transform_6(%arg0: i32, %arg1: i32) -> (i32, i32) {
    %c0_i32 = arith.constant 0 : i32
    %c0_i32_0 = arith.constant 0 : i32
    %c0_i32_1 = arith.constant 0 : i32
    return %c0_i32, %c0_i32_0 : i32, i32
  }
  func.func @transform_7(%arg0: i32, %arg1: i32) -> (i32, i32) {
    %c0_i32 = arith.constant 0 : i32
    %c0_i32_0 = arith.constant 0 : i32
    %c0_i32_1 = arith.constant 0 : i32
    return %c0_i32, %c0_i32_0 : i32, i32
  }
  func.func @transform_8(%arg0: i32, %arg1: i32) -> (i32, i32) {
    %c0_i32 = arith.constant 0 : i32
    %c0_i32_0 = arith.constant 0 : i32
    %c0_i32_1 = arith.constant 0 : i32
    return %c0_i32, %c0_i32_0 : i32, i32
  }
  func.func @transform_9(%arg0: i32, %arg1: i32) -> (i32, i32, i32) {
    %c0_i32 = arith.constant 0 : i32
    %c0_i32_0 = arith.constant 0 : i32
    return %arg0, %arg1, %c0_i32 : i32, i32, i32
  }
  func.func @transform_10(%arg0: i32, %arg1: i32) -> (i32, i32, i32) {
    %c0_i32 = arith.constant 0 : i32
    %c0_i32_0 = arith.constant 0 : i32
    return %arg0, %arg1, %c0_i32 : i32, i32, i32
  }
}

module attributes {stable_mosaic.version = 11 : i64} {
  func.func @_simsiam_kernel(%arg0: i32, %arg1: i32, %arg2: memref<1x24x256xf32, #tpu.memory_space<vmem>>, %arg3: memref<256x256xf32, #tpu.memory_space<vmem>>, %arg4: memref<1x256xf32, #tpu.memory_space<vmem>>, %arg5: memref<256x256xf32, #tpu.memory_space<vmem>>, %arg6: memref<1x256xf32, #tpu.memory_space<vmem>>, %arg7: memref<256x256xf32, #tpu.memory_space<vmem>>, %arg8: memref<1x256xf32, #tpu.memory_space<vmem>>, %arg9: memref<256x256xf32, #tpu.memory_space<vmem>>, %arg10: memref<1x256xf32, #tpu.memory_space<vmem>>, %arg11: memref<1x24x256xf32, #tpu.memory_space<vmem>>, %arg12: memref<1x24x256xf32, #tpu.memory_space<vmem>>) attributes {dimension_semantics = [#tpu.dimension_semantics<parallel>, #tpu.dimension_semantics<parallel>], iteration_bounds = array<i64: 2, 1>, scalar_prefetch = 0 : i64, scratch_operands = 0 : i64, tpu.core_type = #tpu.core_type<tc>, window_params = [{transform_indices = @transform_0, window_bounds = array<i64: 1, 24, 256>}, {pipeline_mode = #tpu.pipeline_mode<synchronous>, transform_indices = @transform_1, window_bounds = array<i64: 256, 256>}, {pipeline_mode = #tpu.pipeline_mode<synchronous>, transform_indices = @transform_2, window_bounds = array<i64: 1, 256>}, {pipeline_mode = #tpu.pipeline_mode<synchronous>, transform_indices = @transform_3, window_bounds = array<i64: 256, 256>}, {pipeline_mode = #tpu.pipeline_mode<synchronous>, transform_indices = @transform_4, window_bounds = array<i64: 1, 256>}, {pipeline_mode = #tpu.pipeline_mode<synchronous>, transform_indices = @transform_5, window_bounds = array<i64: 256, 256>}, {pipeline_mode = #tpu.pipeline_mode<synchronous>, transform_indices = @transform_6, window_bounds = array<i64: 1, 256>}, {pipeline_mode = #tpu.pipeline_mode<synchronous>, transform_indices = @transform_7, window_bounds = array<i64: 256, 256>}, {pipeline_mode = #tpu.pipeline_mode<synchronous>, transform_indices = @transform_8, window_bounds = array<i64: 1, 256>}, {transform_indices = @transform_9, window_bounds = array<i64: 1, 24, 256>}, {transform_indices = @transform_10, window_bounds = array<i64: 1, 24, 256>}]} {
    %c0 = arith.constant 0 : index
    %c0_0 = arith.constant 0 : index
    %c0_1 = arith.constant 0 : index
    %0 = vector.load %arg2[%c0, %c0_0, %c0_1] : memref<1x24x256xf32, #tpu.memory_space<vmem>>, vector<1x24x256xf32>
    %1 = vector.shape_cast %0 : vector<1x24x256xf32> to vector<24x256xf32>
    %c0_2 = arith.constant 0 : index
    %c0_3 = arith.constant 0 : index
    %2 = vector.load %arg3[%c0_2, %c0_3] : memref<256x256xf32, #tpu.memory_space<vmem>>, vector<256x256xf32>
    %cst = arith.constant dense<0.000000e+00> : vector<24x256xf32>
    %3 = tpu.matmul %1, %2, %cst {dimension_numbers = #tpu.dot_dimension_numbers<[1], [0], [0], [1], [0, 0, 1, 1], [], []>} : vector<24x256xf32>, vector<256x256xf32>, vector<24x256xf32> -> vector<24x256xf32>
    %c0_4 = arith.constant 0 : index
    %c0_5 = arith.constant 0 : index
    %4 = vector.load %arg4[%c0_4, %c0_5] : memref<1x256xf32, #tpu.memory_space<vmem>>, vector<1x256xf32>
    %5 = vector.broadcast %4 : vector<1x256xf32> to vector<24x256xf32>
    %6 = arith.addf %3, %5 : vector<24x256xf32>
    %cst_6 = arith.constant 0.000000e+00 : f32
    %7 = vector.broadcast %cst_6 : f32 to vector<24x256xf32>
    %8 = arith.maximumf %6, %7 : vector<24x256xf32>
    %c0_7 = arith.constant 0 : index
    %c0_8 = arith.constant 0 : index
    %9 = vector.load %arg5[%c0_7, %c0_8] : memref<256x256xf32, #tpu.memory_space<vmem>>, vector<256x256xf32>
    %cst_9 = arith.constant dense<0.000000e+00> : vector<24x256xf32>
    %10 = tpu.matmul %8, %9, %cst_9 {dimension_numbers = #tpu.dot_dimension_numbers<[1], [0], [0], [1], [0, 0, 1, 1], [], []>} : vector<24x256xf32>, vector<256x256xf32>, vector<24x256xf32> -> vector<24x256xf32>
    %c0_10 = arith.constant 0 : index
    %c0_11 = arith.constant 0 : index
    %11 = vector.load %arg6[%c0_10, %c0_11] : memref<1x256xf32, #tpu.memory_space<vmem>>, vector<1x256xf32>
    %12 = vector.broadcast %11 : vector<1x256xf32> to vector<24x256xf32>
    %13 = arith.addf %10, %12 : vector<24x256xf32>
    %c0_12 = arith.constant 0 : index
    %c0_13 = arith.constant 0 : index
    %c0_14 = arith.constant 0 : index
    %14 = vector.load %arg11[%c0_12, %c0_13, %c0_14] : memref<1x24x256xf32, #tpu.memory_space<vmem>>, vector<1x24x256xf32>
    %15 = vector.shape_cast %14 : vector<1x24x256xf32> to vector<24x256xf32>
    %16 = vector.shape_cast %13 : vector<24x256xf32> to vector<1x24x256xf32>
    tpu.vector_store %arg11[%c0_12, %c0_13, %c0_14], %16 {strides = array<i32>} : memref<1x24x256xf32, #tpu.memory_space<vmem>>, vector<1x24x256xf32>,
    %c0_15 = arith.constant 0 : index
    %c0_16 = arith.constant 0 : index
    %17 = vector.load %arg7[%c0_15, %c0_16] : memref<256x256xf32, #tpu.memory_space<vmem>>, vector<256x256xf32>
    %cst_17 = arith.constant dense<0.000000e+00> : vector<24x256xf32>
    %18 = tpu.matmul %13, %17, %cst_17 {dimension_numbers = #tpu.dot_dimension_numbers<[1], [0], [0], [1], [0, 0, 1, 1], [], []>} : vector<24x256xf32>, vector<256x256xf32>, vector<24x256xf32> -> vector<24x256xf32>
    %c0_18 = arith.constant 0 : index
    %c0_19 = arith.constant 0 : index
    %19 = vector.load %arg8[%c0_18, %c0_19] : memref<1x256xf32, #tpu.memory_space<vmem>>, vector<1x256xf32>
    %20 = vector.broadcast %19 : vector<1x256xf32> to vector<24x256xf32>
    %21 = arith.addf %18, %20 : vector<24x256xf32>
    %cst_20 = arith.constant 0.000000e+00 : f32
    %22 = vector.broadcast %cst_20 : f32 to vector<24x256xf32>
    %23 = arith.maximumf %21, %22 : vector<24x256xf32>
    %c0_21 = arith.constant 0 : index
    %c0_22 = arith.constant 0 : index
    %24 = vector.load %arg9[%c0_21, %c0_22] : memref<256x256xf32, #tpu.memory_space<vmem>>, vector<256x256xf32>
    %cst_23 = arith.constant dense<0.000000e+00> : vector<24x256xf32>
    %25 = tpu.matmul %23, %24, %cst_23 {dimension_numbers = #tpu.dot_dimension_numbers<[1], [0], [0], [1], [0, 0, 1, 1], [], []>} : vector<24x256xf32>, vector<256x256xf32>, vector<24x256xf32> -> vector<24x256xf32>
    %c0_24 = arith.constant 0 : index
    %c0_25 = arith.constant 0 : index
    %26 = vector.load %arg10[%c0_24, %c0_25] : memref<1x256xf32, #tpu.memory_space<vmem>>, vector<1x256xf32>
    %27 = vector.broadcast %26 : vector<1x256xf32> to vector<24x256xf32>
    %28 = arith.addf %25, %27 : vector<24x256xf32>
    %c0_26 = arith.constant 0 : index
    %c0_27 = arith.constant 0 : index
    %c0_28 = arith.constant 0 : index
    %29 = vector.load %arg12[%c0_26, %c0_27, %c0_28] : memref<1x24x256xf32, #tpu.memory_space<vmem>>, vector<1x24x256xf32>
    %30 = vector.shape_cast %29 : vector<1x24x256xf32> to vector<24x256xf32>
    %31 = vector.shape_cast %28 : vector<24x256xf32> to vector<1x24x256xf32>
    tpu.vector_store %arg12[%c0_26, %c0_27, %c0_28], %31 {strides = array<i32>} : memref<1x24x256xf32, #tpu.memory_space<vmem>>, vector<1x24x256xf32>,
    return
  }
  func.func @transform_0(%arg0: i32, %arg1: i32) -> (i32, i32, i32) {
    %c0_i32 = arith.constant 0 : i32
    %c0_i32_0 = arith.constant 0 : i32
    return %arg0, %arg1, %c0_i32 : i32, i32, i32
  }
  func.func @transform_1(%arg0: i32, %arg1: i32) -> (i32, i32) {
    %c0_i32 = arith.constant 0 : i32
    %c0_i32_0 = arith.constant 0 : i32
    %c0_i32_1 = arith.constant 0 : i32
    return %c0_i32, %c0_i32_0 : i32, i32
  }
  func.func @transform_2(%arg0: i32, %arg1: i32) -> (i32, i32) {
    %c0_i32 = arith.constant 0 : i32
    %c0_i32_0 = arith.constant 0 : i32
    %c0_i32_1 = arith.constant 0 : i32
    return %c0_i32, %c0_i32_0 : i32, i32
  }
  func.func @transform_3(%arg0: i32, %arg1: i32) -> (i32, i32) {
    %c0_i32 = arith.constant 0 : i32
    %c0_i32_0 = arith.constant 0 : i32
    %c0_i32_1 = arith.constant 0 : i32
    return %c0_i32, %c0_i32_0 : i32, i32
  }
  func.func @transform_4(%arg0: i32, %arg1: i32) -> (i32, i32) {
    %c0_i32 = arith.constant 0 : i32
    %c0_i32_0 = arith.constant 0 : i32
    %c0_i32_1 = arith.constant 0 : i32
    return %c0_i32, %c0_i32_0 : i32, i32
  }
  func.func @transform_5(%arg0: i32, %arg1: i32) -> (i32, i32) {
    %c0_i32 = arith.constant 0 : i32
    %c0_i32_0 = arith.constant 0 : i32
    %c0_i32_1 = arith.constant 0 : i32
    return %c0_i32, %c0_i32_0 : i32, i32
  }
  func.func @transform_6(%arg0: i32, %arg1: i32) -> (i32, i32) {
    %c0_i32 = arith.constant 0 : i32
    %c0_i32_0 = arith.constant 0 : i32
    %c0_i32_1 = arith.constant 0 : i32
    return %c0_i32, %c0_i32_0 : i32, i32
  }
  func.func @transform_7(%arg0: i32, %arg1: i32) -> (i32, i32) {
    %c0_i32 = arith.constant 0 : i32
    %c0_i32_0 = arith.constant 0 : i32
    %c0_i32_1 = arith.constant 0 : i32
    return %c0_i32, %c0_i32_0 : i32, i32
  }
  func.func @transform_8(%arg0: i32, %arg1: i32) -> (i32, i32) {
    %c0_i32 = arith.constant 0 : i32
    %c0_i32_0 = arith.constant 0 : i32
    %c0_i32_1 = arith.constant 0 : i32
    return %c0_i32, %c0_i32_0 : i32, i32
  }
  func.func @transform_9(%arg0: i32, %arg1: i32) -> (i32, i32, i32) {
    %c0_i32 = arith.constant 0 : i32
    %c0_i32_0 = arith.constant 0 : i32
    return %arg0, %arg1, %c0_i32 : i32, i32, i32
  }
  func.func @transform_10(%arg0: i32, %arg1: i32) -> (i32, i32, i32) {
    %c0_i32 = arith.constant 0 : i32
    %c0_i32_0 = arith.constant 0 : i32
    return %arg0, %arg1, %c0_i32 : i32, i32, i32
  }
}

</mosaic_0001>

<llo_original>
// kernel: _lambda_.1
$region0: #{_lambda_.1}
  #allocation0 [shape = 'u32[]', space=smem, size = 0x4, offset = 0x4, fixed_abs, tag = 'smem constant byte address 0x4 - core index']
  #allocation1 [shape = 'u32[72,128]{1,0:T(1,128)}', space=vmem, size = 0x9000, scoped, tag = 'internal scratch']
  %s0 = inlined_call_operand.vmem [shape: f32[2,24,256], index: 0, kind: input, shape index: {}]
  %s1 = inlined_call_operand.hbm [shape: f32[256,256], index: 1, kind: input, shape index: {}]
  %s2 = inlined_call_operand.vmem [shape: f32[1,256], index: 2, kind: input, shape index: {}]
  %s3 = inlined_call_operand.hbm [shape: f32[256,256], index: 3, kind: input, shape index: {}]
  %s4 = inlined_call_operand.vmem [shape: f32[1,256], index: 4, kind: input, shape index: {}]
  %s5 = inlined_call_operand.hbm [shape: f32[256,256], index: 5, kind: input, shape index: {}]
  %s6 = inlined_call_operand.vmem [shape: f32[1,256], index: 6, kind: input, shape index: {}]
  %s7 = inlined_call_operand.hbm [shape: f32[256,256], index: 7, kind: input, shape index: {}]
  %s8 = inlined_call_operand.vmem [shape: f32[1,256], index: 8, kind: input, shape index: {}]
  %s9 = inlined_call_operand.vmem [shape: f32[2,24,256], index: 9, kind: output, shape index: {0}]
  %s10 = inlined_call_operand.vmem [shape: f32[2,24,256], index: 10, kind: output, shape index: {1}]
  %11 = xla_tuple %s9, %s10
  %s12 = sld [smem:[#allocation0]]
  $region93: #{_lambda_.1} parent=0
    _
  %s14 = ssub.s32 1, %s12
  %s15 = scalar_select 0, %s14, %s12
  $region1: #{_lambda_.1} parent=0
    #allocation2 [shape = 'u8[262144]{0}', space=vmem, size = 0x40000, scoped, tag = 'input window, operand 1, single buffered']
    #allocation3 [shape = 's32[2]{0}', space=sflag, size = 0x8, scoped, tag = 'scoped memory for _lambda_.1']
    #allocation4 [shape = 'u8[262144]{0}', space=vmem, size = 0x40000, scoped, tag = 'input window, operand 3, single buffered']
    #allocation5 [shape = 's32[1]{0}', space=sflag, size = 0x4, scoped, tag = 'scoped memory for _lambda_.1']
    #allocation6 [shape = 'u8[262144]{0}', space=vmem, size = 0x40000, scoped, tag = 'input window, operand 5, single buffered']
    #allocation7 [shape = 'u8[262144]{0}', space=vmem, size = 0x40000, scoped, tag = 'input window, operand 7, single buffered']
    #allocation8 [shape = 's32[1]{0}', space=sflag, size = 0x4, scoped, tag = 'scoped memory for _lambda_.1']
    %16 = vsyncpa [#allocation3], 0
    %17 = vsyncpa [#allocation5], 0
    %18 = vsyncpa [#allocation8], 0
    loop: start=0, step=1, limit=4
    $region2: #{_lambda_.1} parent=1 // loop_pre_header
      _
    $region3: #{_lambda_.1} parent=1 // loop_header
      %s20 = sphi 0, %s24
      %p21 = scmp.ge.s32.totalorder %s20, 4
      %s27 = sphi 0, %s39
      %s28 = sphi 0, %s35
      %s29 = sphi 0, %s27
      %s30 = sphi 0, %s28
      %s31 = sphi 0, %s29
      %s32 = sphi 0, %s30
      %s44 = sphi 0, %s46
      %s47 = sphi 0, %s44
      %s48 = sphi 0, %s47
      %s64 = sphi 0, %s48
      %s68 = sphi 0, %s68
      %s70 = sphi 0, %s68
      %s71 = sphi 0, %s70
      %s85 = sphi 0, %s71
      %s89 = sphi 0, %s89
      %s91 = sphi 0, %s89
      %s92 = sphi 0, %s91
      %s106 = sphi 0, %s92
      %s110 = sphi 0, %s110
      %s112 = sphi 0, %s110
      %s113 = sphi 0, %s112
      %s127 = sphi 0, %s113
      %s131 = sphi 0, %s131
      %s133 = sphi 0, %s131
      %s134 = sphi 0, %s133
      %s148 = sphi 0, %s134
      %s152 = sphi 0, %s152
      %s154 = sphi 0, %s152
      %s155 = sphi 0, %s154
      %s169 = sphi 0, %s155
      %s173 = sphi 0, %s173
      %s175 = sphi 0, %s173
      %s176 = sphi 0, %s175
      %s190 = sphi 0, %s176
      %s194 = sphi 0, %s194
      %s196 = sphi 0, %s194
      %s197 = sphi 0, %s196
      %s211 = sphi 0, %s197
      %s215 = sphi 0, %s215
      %s217 = sphi 0, %s215
      %s218 = sphi 0, %s217
      %s232 = sphi 0, %s218
      %s240 = sphi 0, %s242
      %s243 = sphi 0, %s240
      %s244 = sphi 0, %s243
      %s260 = sphi 0, %s244
      %s268 = sphi 0, %s270
      %s271 = sphi 0, %s268
      %s272 = sphi 0, %s271
      %s288 = sphi 0, %s272
    $region4: #{_lambda_.1} parent=1 // loop_header_branch
      %23 = sbr.rel (%p21) target = $region8
    $region5: #{_lambda_.1} parent=1 // loop_body
      %s25 = ssub.s32 %s20, 1
      %s26 = ssub.s32 %s20, 2
      %s33 = sadd.s32 1, %s28
      %p34 = scmp.ge.s32.totalorder %s33, 1
      %s35 = scalar_select %p34, 0, %s33
      %s36 = sadd.s32 1, %s27
      %s37 = scalar_select %p34, %s36, %s27
      %p38 = scmp.ge.s32.totalorder %s37, 2
      %s39 = scalar_select %p38, 0, %s37
      %s40 = ssub.s32 %s27, %s39
      %s41 = ssub.s32 %s28, %s35
      %s42 = sor.u32 %s40, %s41
      %p43 = scmp.eq.s32.totalorder %s42, 0
      %s45 = sadd.s32 %s44, 1
      %s46 = scalar_select %p43, %s44, %s45
      %p49 = pneg %p43
      %p50 = scmp.eq.s32.totalorder %s20, 1
      %p51 = por %p49, %p50
      %p52 = scmp.ne.s32.totalorder %s44, %s47
      %p53 = scmp.eq.s32.totalorder %s20, 0
      %p54 = por %p52, %p53
      %p55 = scmp.ne.s32.totalorder %s44, %s47
      %p56 = scmp.eq.s32.totalorder %s25, 1
      %p57 = por %p55, %p56
      %p58 = scmp.ne.s32.totalorder %s47, %s48
      %p59 = scmp.eq.s32.totalorder %s25, 0
      %p60 = por %p58, %p59
      %p61 = scmp.ne.s32.totalorder %s47, %s48
      %p62 = scmp.eq.s32.totalorder %s26, 1
      %p63 = por %p61, %p62
      %p65 = scmp.ne.s32.totalorder %s48, %s64
      %p66 = scmp.eq.s32.totalorder %s26, 0
      %p67 = por %p65, %p66
      %s69 = sadd.s32 %s68, 1
      %p72 = scmp.eq.s32.totalorder %s20, 1
      %p73 = scmp.ne.s32.totalorder %s68, %s70
      %p74 = scmp.eq.s32.totalorder %s20, 0
      %p75 = por %p73, %p74
      %p76 = scmp.ne.s32.totalorder %s68, %s70
      %p77 = scmp.eq.s32.totalorder %s25, 1
      %p78 = por %p76, %p77
      %p79 = scmp.ne.s32.totalorder %s70, %s71
      %p80 = scmp.eq.s32.totalorder %s25, 0
      %p81 = por %p79, %p80
      %p82 = scmp.ne.s32.totalorder %s70, %s71
      %p83 = scmp.eq.s32.totalorder %s26, 1
      %p84 = por %p82, %p83
      %p86 = scmp.ne.s32.totalorder %s71, %s85
      %p87 = scmp.eq.s32.totalorder %s26, 0
      %p88 = por %p86, %p87
      %s90 = sadd.s32 %s89, 1
      %p93 = scmp.eq.s32.totalorder %s20, 1
      %p94 = scmp.ne.s32.totalorder %s89, %s91
      %p95 = scmp.eq.s32.totalorder %s20, 0
      %p96 = por %p94, %p95
      %p97 = scmp.ne.s32.totalorder %s89, %s91
      %p98 = scmp.eq.s32.totalorder %s25, 1
      %p99 = por %p97, %p98
      %p100 = scmp.ne.s32.totalorder %s91, %s92
      %p101 = scmp.eq.s32.totalorder %s25, 0
      %p102 = por %p100, %p101
      %p103 = scmp.ne.s32.totalorder %s91, %s92
      %p104 = scmp.eq.s32.totalorder %s26, 1
      %p105 = por %p103, %p104
      %p107 = scmp.ne.s32.totalorder %s92, %s106
      %p108 = scmp.eq.s32.totalorder %s26, 0
      %p109 = por %p107, %p108
      %s111 = sadd.s32 %s110, 1
      %p114 = scmp.eq.s32.totalorder %s20, 1
      %p115 = scmp.ne.s32.totalorder %s110, %s112
      %p116 = scmp.eq.s32.totalorder %s20, 0
      %p117 = por %p115, %p116
      %p118 = scmp.ne.s32.totalorder %s110, %s112
      %p119 = scmp.eq.s32.totalorder %s25, 1
      %p120 = por %p118, %p119
      %p121 = scmp.ne.s32.totalorder %s112, %s113
      %p122 = scmp.eq.s32.totalorder %s25, 0
      %p123 = por %p121, %p122
      %p124 = scmp.ne.s32.totalorder %s112, %s113
      %p125 = scmp.eq.s32.totalorder %s26, 1
      %p126 = por %p124, %p125
      %p128 = scmp.ne.s32.totalorder %s113, %s127
      %p129 = scmp.eq.s32.totalorder %s26, 0
      %p130 = por %p128, %p129
      %s132 = sadd.s32 %s131, 1
      %p135 = scmp.eq.s32.totalorder %s20, 1
      %p136 = scmp.ne.s32.totalorder %s131, %s133
      %p137 = scmp.eq.s32.totalorder %s20, 0
      %p138 = por %p136, %p137
      %p139 = scmp.ne.s32.totalorder %s131, %s133
      %p140 = scmp.eq.s32.totalorder %s25, 1
      %p141 = por %p139, %p140
      %p142 = scmp.ne.s32.totalorder %s133, %s134
      %p143 = scmp.eq.s32.totalorder %s25, 0
      %p144 = por %p142, %p143
      %p145 = scmp.ne.s32.totalorder %s133, %s134
      %p146 = scmp.eq.s32.totalorder %s26, 1
      %p147 = por %p145, %p146
      %p149 = scmp.ne.s32.totalorder %s134, %s148
      %p150 = scmp.eq.s32.totalorder %s26, 0
      %p151 = por %p149, %p150
      %s153 = sadd.s32 %s152, 1
      %p156 = scmp.eq.s32.totalorder %s20, 1
      %p157 = scmp.ne.s32.totalorder %s152, %s154
      %p158 = scmp.eq.s32.totalorder %s20, 0
      %p159 = por %p157, %p158
      %p160 = scmp.ne.s32.totalorder %s152, %s154
      %p161 = scmp.eq.s32.totalorder %s25, 1
      %p162 = por %p160, %p161
      %p163 = scmp.ne.s32.totalorder %s154, %s155
      %p164 = scmp.eq.s32.totalorder %s25, 0
      %p165 = por %p163, %p164
      %p166 = scmp.ne.s32.totalorder %s154, %s155
      %p167 = scmp.eq.s32.totalorder %s26, 1
      %p168 = por %p166, %p167
      %p170 = scmp.ne.s32.totalorder %s155, %s169
      %p171 = scmp.eq.s32.totalorder %s26, 0
      %p172 = por %p170, %p171
      %s174 = sadd.s32 %s173, 1
      %p177 = scmp.eq.s32.totalorder %s20, 1
      %p178 = scmp.ne.s32.totalorder %s173, %s175
      %p179 = scmp.eq.s32.totalorder %s20, 0
      %p180 = por %p178, %p179
      %p181 = scmp.ne.s32.totalorder %s173, %s175
      %p182 = scmp.eq.s32.totalorder %s25, 1
      %p183 = por %p181, %p182
      %p184 = scmp.ne.s32.totalorder %s175, %s176
      %p185 = scmp.eq.s32.totalorder %s25, 0
      %p186 = por %p184, %p185
      %p187 = scmp.ne.s32.totalorder %s175, %s176
      %p188 = scmp.eq.s32.totalorder %s26, 1
      %p189 = por %p187, %p188
      %p191 = scmp.ne.s32.totalorder %s176, %s190
      %p192 = scmp.eq.s32.totalorder %s26, 0
      %p193 = por %p191, %p192
      %s195 = sadd.s32 %s194, 1
      %p198 = scmp.eq.s32.totalorder %s20, 1
      %p199 = scmp.ne.s32.totalorder %s194, %s196
      %p200 = scmp.eq.s32.totalorder %s20, 0
      %p201 = por %p199, %p200
      %p202 = scmp.ne.s32.totalorder %s194, %s196
      %p203 = scmp.eq.s32.totalorder %s25, 1
      %p204 = por %p202, %p203
      %p205 = scmp.ne.s32.totalorder %s196, %s197
      %p206 = scmp.eq.s32.totalorder %s25, 0
      %p207 = por %p205, %p206
      %p208 = scmp.ne.s32.totalorder %s196, %s197
      %p209 = scmp.eq.s32.totalorder %s26, 1
      %p210 = por %p208, %p209
      %p212 = scmp.ne.s32.totalorder %s197, %s211
      %p213 = scmp.eq.s32.totalorder %s26, 0
      %p214 = por %p212, %p213
      %s216 = sadd.s32 %s215, 1
      %p219 = scmp.eq.s32.totalorder %s20, 1
      %p220 = scmp.ne.s32.totalorder %s215, %s217
      %p221 = scmp.eq.s32.totalorder %s20, 0
      %p222 = por %p220, %p221
      %p223 = scmp.ne.s32.totalorder %s215, %s217
      %p224 = scmp.eq.s32.totalorder %s25, 1
      %p225 = por %p223, %p224
      %p226 = scmp.ne.s32.totalorder %s217, %s218
      %p227 = scmp.eq.s32.totalorder %s25, 0
      %p228 = por %p226, %p227
      %p229 = scmp.ne.s32.totalorder %s217, %s218
      %p230 = scmp.eq.s32.totalorder %s26, 1
      %p231 = por %p229, %p230
      %p233 = scmp.ne.s32.totalorder %s218, %s232
      %p234 = scmp.eq.s32.totalorder %s26, 0
      %p235 = por %p233, %p234
      %s236 = ssub.s32 %s27, %s39
      %s237 = ssub.s32 %s28, %s35
      %s238 = sor.u32 %s236, %s237
      %p239 = scmp.eq.s32.totalorder %s238, 0
      %s241 = sadd.s32 %s240, 1
      %s242 = scalar_select %p239, %s240, %s241
      %p245 = pneg %p239
      %p246 = scmp.eq.s32.totalorder %s20, 1
      %p247 = por %p245, %p246
      %p248 = scmp.ne.s32.totalorder %s240, %s243
      %p249 = scmp.eq.s32.totalorder %s20, 0
      %p250 = por %p248, %p249
      %p251 = scmp.ne.s32.totalorder %s240, %s243
      %p252 = scmp.eq.s32.totalorder %s25, 1
      %p253 = por %p251, %p252
      %p254 = scmp.ne.s32.totalorder %s243, %s244
      %p255 = scmp.eq.s32.totalorder %s25, 0
      %p256 = por %p254, %p255
      %p257 = scmp.ne.s32.totalorder %s243, %s244
      %p258 = scmp.eq.s32.totalorder %s26, 1
      %p259 = por %p257, %p258
      %p261 = scmp.ne.s32.totalorder %s244, %s260
      %p262 = scmp.eq.s32.totalorder %s26, 0
      %p263 = por %p261, %p262
      %s264 = ssub.s32 %s27, %s39
      %s265 = ssub.s32 %s28, %s35
      %s266 = sor.u32 %s264, %s265
      %p267 = scmp.eq.s32.totalorder %s266, 0
      %s269 = sadd.s32 %s268, 1
      %s270 = scalar_select %p267, %s268, %s269
      %p273 = pneg %p267
      %p274 = scmp.eq.s32.totalorder %s20, 1
      %p275 = por %p273, %p274
      %p276 = scmp.ne.s32.totalorder %s268, %s271
      %p277 = scmp.eq.s32.totalorder %s20, 0
      %p278 = por %p276, %p277
      %p279 = scmp.ne.s32.totalorder %s268, %s271
      %p280 = scmp.eq.s32.totalorder %s25, 1
      %p281 = por %p279, %p280
      %p282 = scmp.ne.s32.totalorder %s271, %s272
      %p283 = scmp.eq.s32.totalorder %s25, 0
      %p284 = por %p282, %p283
      %p285 = scmp.ne.s32.totalorder %s271, %s272
      %p286 = scmp.eq.s32.totalorder %s26, 1
      %p287 = por %p285, %p286
      %p289 = scmp.ne.s32.totalorder %s272, %s288
      %p290 = scmp.eq.s32.totalorder %s26, 0
      %p291 = por %p289, %p290
      %p292 = scmp.le.s32.totalorder 1, %s20
      %p293 = scmp.lt.s32.totalorder %s20, 3
      %p294 = pnand %p292, %p293
      %p295 = pneg %p294
      // Predicated region
      $region9: #{_lambda_.1} parent=5 // pred_check
        _
      $region10: #{_lambda_.1} parent=5 // pred_check_branch
        %297 = sbr.rel (%p294) target = $region12
      $region11: #{_lambda_.1} parent=5 // pred_region
        %s298 = ssub.s32 %s20, 1
        // Predicated region
        $region13: #{_lambda_.1} parent=11 // pred_check
          %p299 = pneg %p81
        $region14: #{_lambda_.1} parent=11 // pred_check_branch
          %301 = sbr.rel (%p299) target = $region16
        $region15: #{_lambda_.1} parent=11 // pred_region
          %303 = vsyncadd [#allocation3], 0
          %s304 = sshll.u32 %s1, 4
          %s305 = int_to_ptr.hbm [resolvable:$true] %s304
          %s306 = sshll.u32 [#allocation2], 4
          %s307 = int_to_ptr.vmem [resolvable:$true] %s306
          %312 = dma.hbm_to_vmem [thread:$0]  %s305, 8192, %s307, [#allocation3], 256, 256, 16
        $region16: #{_lambda_.1} parent=11 // pred_fallthru
          _
        // Predicated region
        $region17: #{_lambda_.1} parent=11 // pred_check
          %p313 = pneg %p102
        $region18: #{_lambda_.1} parent=11 // pred_check_branch
          %315 = sbr.rel (%p313) target = $region20
        $region19: #{_lambda_.1} parent=11 // pred_region
          _
        $region20: #{_lambda_.1} parent=11 // pred_fallthru
          _
        // Predicated region
        $region21: #{_lambda_.1} parent=11 // pred_check
          %p316 = pneg %p123
        $region22: #{_lambda_.1} parent=11 // pred_check_branch
          %318 = sbr.rel (%p316) target = $region24
        $region23: #{_lambda_.1} parent=11 // pred_region
          %320 = vsyncadd [#allocation5], 0
          %s321 = sshll.u32 %s3, 4
          %s322 = int_to_ptr.hbm [resolvable:$true] %s321
          %s323 = sshll.u32 [#allocation4], 4
          %s324 = int_to_ptr.vmem [resolvable:$true] %s323
          %329 = dma.hbm_to_vmem [thread:$0]  %s322, 8192, %s324, [#allocation5], 256, 256, 16
        $region24: #{_lambda_.1} parent=11 // pred_fallthru
          _
        // Predicated region
        $region25: #{_lambda_.1} parent=11 // pred_check
          %p330 = pneg %p144
        $region26: #{_lambda_.1} parent=11 // pred_check_branch
          %332 = sbr.rel (%p330) target = $region28
        $region27: #{_lambda_.1} parent=11 // pred_region
          _
        $region28: #{_lambda_.1} parent=11 // pred_fallthru
          _
        // Predicated region
        $region29: #{_lambda_.1} parent=11 // pred_check
          %p333 = pneg %p165
        $region30: #{_lambda_.1} parent=11 // pred_check_branch
          %335 = sbr.rel (%p333) target = $region32
        $region31: #{_lambda_.1} parent=11 // pred_region
          %337 = vsyncadd [#allocation5], 0
          %s338 = sshll.u32 %s5, 4
          %s339 = int_to_ptr.hbm [resolvable:$true] %s338
          %s340 = sshll.u32 [#allocation6], 4
          %s341 = int_to_ptr.vmem [resolvable:$true] %s340
          %346 = dma.hbm_to_vmem [thread:$0]  %s339, 8192, %s341, [#allocation5], 256, 256, 16
        $region32: #{_lambda_.1} parent=11 // pred_fallthru
          _
        // Predicated region
        $region33: #{_lambda_.1} parent=11 // pred_check
          %p347 = pneg %p186
        $region34: #{_lambda_.1} parent=11 // pred_check_branch
          %349 = sbr.rel (%p347) target = $region36
        $region35: #{_lambda_.1} parent=11 // pred_region
          _
        $region36: #{_lambda_.1} parent=11 // pred_fallthru
          _
        // Predicated region
        $region37: #{_lambda_.1} parent=11 // pred_check
          %p350 = pneg %p207
        $region38: #{_lambda_.1} parent=11 // pred_check_branch
          %352 = sbr.rel (%p350) target = $region40
        $region39: #{_lambda_.1} parent=11 // pred_region
          %354 = vsyncadd [#allocation8], 0
          %s355 = sshll.u32 %s7, 4
          %s356 = int_to_ptr.hbm [resolvable:$true] %s355
          %s357 = sshll.u32 [#allocation7], 4
          %s358 = int_to_ptr.vmem [resolvable:$true] %s357
          %363 = dma.hbm_to_vmem [thread:$0]  %s356, 8192, %s358, [#allocation8], 256, 256, 16
        $region40: #{_lambda_.1} parent=11 // pred_fallthru
          _
        // Predicated region
        $region41: #{_lambda_.1} parent=11 // pred_check
          %p364 = pneg %p228
        $region42: #{_lambda_.1} parent=11 // pred_check_branch
          %366 = sbr.rel (%p364) target = $region44
        $region43: #{_lambda_.1} parent=11 // pred_region
          _
        $region44: #{_lambda_.1} parent=11 // pred_fallthru
          _
      $region12: #{_lambda_.1} parent=5 // pred_fallthru
        _
      %p367 = scmp.lt.s32.totalorder %s20, 2
      // Predicated region
      $region45: #{_lambda_.1} parent=5 // pred_check
        %p368 = pneg %p367
      $region46: #{_lambda_.1} parent=5 // pred_check_branch
        %370 = sbr.rel (%p368) target = $region48
      $region47: #{_lambda_.1} parent=5 // pred_region
        // Predicated region
        $region49: #{_lambda_.1} parent=47 // pred_check
          %p371 = pneg %p54
        $region50: #{_lambda_.1} parent=47 // pred_check_branch
          %373 = sbr.rel (%p371) target = $region52
        $region51: #{_lambda_.1} parent=47 // pred_region
          %s374 = smul.u32 3, %s28
          %p375 = scmp.lt.s32.totalorder %s27, 1
          %s376 = scalar_select %p375, %s27, 1
          %p377 = scmp.lt.s32.totalorder %s374, 2
          %s378 = scalar_select %p377, %s374, 2
          %s379 = smul.addr %s378, 2
          %s380 = smul.addr %s376, 6
          %s381 = sadd.s32 %s379, %s380
          %s382 = smul.addr %s381, 8
          %s383 = scalar_lea.vmem %s0, %s382
          %s384 = smul.u32 3, %s28
        $region52: #{_lambda_.1} parent=47 // pred_fallthru
          _
      $region48: #{_lambda_.1} parent=5 // pred_fallthru
        _
      %p385 = scmp.le.s32.totalorder 1, %s20
      %p386 = scmp.lt.s32.totalorder %s20, 3
      %p387 = pnand %p385, %p386
      %p388 = pneg %p387
      // Predicated region
      $region53: #{_lambda_.1} parent=5 // pred_check
        _
      $region54: #{_lambda_.1} parent=5 // pred_check_branch
        %390 = sbr.rel (%p387) target = $region56
      $region55: #{_lambda_.1} parent=5 // pred_region
        %s391 = ssub.s32 %s20, 1
        // Predicated region
        $region57: #{_lambda_.1} parent=55 // pred_check
          %p392 = pneg %p81
        $region58: #{_lambda_.1} parent=55 // pred_check_branch
          %394 = sbr.rel (%p392) target = $region60
        $region59: #{_lambda_.1} parent=55 // pred_region
          %396 = dma.done [#allocation3], 8192
        $region60: #{_lambda_.1} parent=55 // pred_fallthru
          _
        // Predicated region
        $region61: #{_lambda_.1} parent=55 // pred_check
          %p397 = pneg %p123
        $region62: #{_lambda_.1} parent=55 // pred_check_branch
          %399 = sbr.rel (%p397) target = $region64
        $region63: #{_lambda_.1} parent=55 // pred_region
          %401 = dma.done [#allocation5], 8192
        $region64: #{_lambda_.1} parent=55 // pred_fallthru
          _
        // Predicated region
        $region65: #{_lambda_.1} parent=55 // pred_check
          %p402 = pneg %p165
        $region66: #{_lambda_.1} parent=55 // pred_check_branch
          %404 = sbr.rel (%p402) target = $region68
        $region67: #{_lambda_.1} parent=55 // pred_region
          %406 = dma.done [#allocation5], 8192
        $region68: #{_lambda_.1} parent=55 // pred_fallthru
          _
        // Predicated region
        $region69: #{_lambda_.1} parent=55 // pred_check
          %p407 = pneg %p207
        $region70: #{_lambda_.1} parent=55 // pred_check_branch
          %409 = sbr.rel (%p407) target = $region72
        $region71: #{_lambda_.1} parent=55 // pred_region
          %411 = dma.done [#allocation8], 8192
        $region72: #{_lambda_.1} parent=55 // pred_fallthru
          _
        %s412 = smul.u32 3, %s30
        %p413 = scmp.lt.s32.totalorder %s29, 1
        %s414 = scalar_select %p413, %s29, 1
        %p415 = scmp.lt.s32.totalorder %s412, 2
        %s416 = scalar_select %p415, %s412, 2
        %s417 = smul.addr %s416, 2
        %s418 = smul.addr %s414, 6
        %s419 = sadd.s32 %s417, %s418
        %s420 = smul.addr %s419, 8
        %s421 = scalar_lea.vmem %s0, %s420
        %p422 = pneg %p60
        %p423 = pneg %p57
        %p424 = pneg %p81
        %p425 = pneg %p78
        %p426 = pneg %p102
        %p427 = pneg %p99
        %p428 = pneg %p123
        %p429 = pneg %p120
        %p430 = pneg %p144
        %p431 = pneg %p141
        %p432 = pneg %p165
        %p433 = pneg %p162
        %p434 = pneg %p186
        %p435 = pneg %p183
        %p436 = pneg %p207
        %p437 = pneg %p204
        %p438 = pneg %p228
        %p439 = pneg %p225
        %p440 = pneg %p256
        %p441 = pneg %p253
        %s442 = smul.u32 3, %s30
        %p443 = scmp.lt.s32.totalorder %s29, 1
        %s444 = scalar_select %p443, %s29, 1
        %p445 = scmp.lt.s32.totalorder %s442, 2
        %s446 = scalar_select %p445, %s442, 2
        %s447 = smul.addr %s446, 2
        %s448 = smul.addr %s444, 6
        %s449 = sadd.s32 %s447, %s448
        %s450 = smul.addr %s449, 8
        %s451 = scalar_lea.vmem %s9, %s450
        %p452 = pneg %p284
        %p453 = pneg %p281
        %s454 = smul.u32 3, %s30
        %p455 = scmp.lt.s32.totalorder %s29, 1
        %s456 = scalar_select %p455, %s29, 1
        %p457 = scmp.lt.s32.totalorder %s454, 2
        %s458 = scalar_select %p457, %s454, 2
        %s459 = smul.addr %s458, 2
        %s460 = smul.addr %s456, 6
        %s461 = sadd.s32 %s459, %s460
        %s462 = smul.addr %s461, 8
        %s463 = scalar_lea.vmem %s10, %s462
        %s464 = smul.u32 3, %s30
        %p465 = scmp.lt.s32.totalorder %s29, 1
        %s466 = scalar_select %p465, %s29, 1
        %p467 = scmp.lt.s32.totalorder %s464, 2
        %s468 = scalar_select %p467, %s464, 2
        %s469 = smul.addr %s468, 2
        %s470 = smul.addr %s466, 6
        %s471 = sadd.s32 %s469, %s470
        %s472 = smul.addr %s471, 8
        %s473 = scalar_lea.vmem %s0, %s472
        %s474 = smul.u32 3, %s30
        %s475 = smul.u32 3, %s30
        %p476 = scmp.lt.s32.totalorder %s29, 1
        %s477 = scalar_select %p476, %s29, 1
        %p478 = scmp.lt.s32.totalorder %s475, 2
        %s479 = scalar_select %p478, %s475, 2
        %s480 = smul.addr %s479, 2
        %s481 = smul.addr %s477, 6
        %s482 = sadd.s32 %s480, %s481
        %s483 = smul.addr %s482, 8
        %s484 = scalar_lea.vmem %s9, %s483
        %s485 = smul.u32 3, %s30
        %s486 = smul.u32 3, %s30
        %p487 = scmp.lt.s32.totalorder %s29, 1
        %s488 = scalar_select %p487, %s29, 1
        %p489 = scmp.lt.s32.totalorder %s486, 2
        %s490 = scalar_select %p489, %s486, 2
        %s491 = smul.addr %s490, 2
        %s492 = smul.addr %s488, 6
        %s493 = sadd.s32 %s491, %s492
        %s494 = smul.addr %s493, 8
        %s495 = scalar_lea.vmem %s10, %s494
        %s496 = smul.u32 3, %s30
        %v497 = vld [vmem:[%s473] sm:$0xff]
        %v498 = vld [vmem:[%s473 + $0x8] sm:$0xff]
        %v499 = vld [vmem:[%s473 + $0x10] sm:$0xff]
        %v500 = vld [vmem:[%s473 + $0x18] sm:$0xff]
        %v501 = vld [vmem:[%s473 + $0x20] sm:$0xff]
        %v502 = vld [vmem:[%s473 + $0x28] sm:$0xff]
        %v503 = vld [vmem:[#allocation2] sm:$0xff]
        %v504 = vld [vmem:[#allocation2 + $0x8] sm:$0xff]
        %v505 = vld [vmem:[#allocation2 + $0x10] sm:$0xff]
        %v506 = vld [vmem:[#allocation2 + $0x18] sm:$0xff]
        %v507 = vld [vmem:[#allocation2 + $0x20] sm:$0xff]
        %v508 = vld [vmem:[#allocation2 + $0x28] sm:$0xff]
        %v509 = vld [vmem:[#allocation2 + $0x30] sm:$0xff]
        %v510 = vld [vmem:[#allocation2 + $0x38] sm:$0xff]
        %v511 = vld [vmem:[#allocation2 + $0x40] sm:$0xff]
        %v512 = vld [vmem:[#allocation2 + $0x48] sm:$0xff]
        %v513 = vld [vmem:[#allocation2 + $0x50] sm:$0xff]
        %v514 = vld [vmem:[#allocation2 + $0x58] sm:$0xff]
        %v515 = vld [vmem:[#allocation2 + $0x60] sm:$0xff]
        %v516 = vld [vmem:[#allocation2 + $0x68] sm:$0xff]
        %v517 = vld [vmem:[#allocation2 + $0x70] sm:$0xff]
        %v518 = vld [vmem:[#allocation2 + $0x78] sm:$0xff]
        %v519 = vld [vmem:[#allocation2 + $0x80] sm:$0xff]
        %v520 = vld [vmem:[#allocation2 + $0x88] sm:$0xff]
        %v521 = vld [vmem:[#allocation2 + $0x90] sm:$0xff]
        %v522 = vld [vmem:[#allocation2 + $0x98] sm:$0xff]
        %v523 = vld [vmem:[#allocation2 + $0xa0] sm:$0xff]
        %v524 = vld [vmem:[#allocation2 + $0xa8] sm:$0xff]
        %v525 = vld [vmem:[#allocation2 + $0xb0] sm:$0xff]
        %v526 = vld [vmem:[#allocation2 + $0xb8] sm:$0xff]
        %v527 = vld [vmem:[#allocation2 + $0xc0] sm:$0xff]
        %v528 = vld [vmem:[#allocation2 + $0xc8] sm:$0xff]
        %v529 = vld [vmem:[#allocation2 + $0xd0] sm:$0xff]
        %v530 = vld [vmem:[#allocation2 + $0xd8] sm:$0xff]
        %v531 = vld [vmem:[#allocation2 + $0xe0] sm:$0xff]
        %v532 = vld [vmem:[#allocation2 + $0xe8] sm:$0xff]
        %v533 = vld [vmem:[#allocation2 + $0xf0] sm:$0xff]
        %v534 = vld [vmem:[#allocation2 + $0xf8] sm:$0xff]
        %v535 = vld [vmem:[#allocation2 + $0x100] sm:$0xff]
        %v536 = vld [vmem:[#allocation2 + $0x108] sm:$0xff]
        %v537 = vld [vmem:[#allocation2 + $0x110] sm:$0xff]
        %v538 = vld [vmem:[#allocation2 + $0x118] sm:$0xff]
        %v539 = vld [vmem:[#allocation2 + $0x120] sm:$0xff]
        %v540 = vld [vmem:[#allocation2 + $0x128] sm:$0xff]
        %v541 = vld [vmem:[#allocation2 + $0x130] sm:$0xff]
        %v542 = vld [vmem:[#allocation2 + $0x138] sm:$0xff]
        %v543 = vld [vmem:[#allocation2 + $0x140] sm:$0xff]
        %v544 = vld [vmem:[#allocation2 + $0x148] sm:$0xff]
        %v545 = vld [vmem:[#allocation2 + $0x150] sm:$0xff]
        %v546 = vld [vmem:[#allocation2 + $0x158] sm:$0xff]
        %v547 = vld [vmem:[#allocation2 + $0x160] sm:$0xff]
        %v548 = vld [vmem:[#allocation2 + $0x168] sm:$0xff]
        %v549 = vld [vmem:[#allocation2 + $0x170] sm:$0xff]
        %v550 = vld [vmem:[#allocation2 + $0x178] sm:$0xff]
        %v551 = vld [vmem:[#allocation2 + $0x180] sm:$0xff]
        %v552 = vld [vmem:[#allocation2 + $0x188] sm:$0xff]
        %v553 = vld [vmem:[#allocation2 + $0x190] sm:$0xff]
        %v554 = vld [vmem:[#allocation2 + $0x198] sm:$0xff]
        %v555 = vld [vmem:[#allocation2 + $0x1a0] sm:$0xff]
        %v556 = vld [vmem:[#allocation2 + $0x1a8] sm:$0xff]
        %v557 = vld [vmem:[#allocation2 + $0x1b0] sm:$0xff]
        %v558 = vld [vmem:[#allocation2 + $0x1b8] sm:$0xff]
        %v559 = vld [vmem:[#allocation2 + $0x1c0] sm:$0xff]
        %v560 = vld [vmem:[#allocation2 + $0x1c8] sm:$0xff]
        %v561 = vld [vmem:[#allocation2 + $0x1d0] sm:$0xff]
        %v562 = vld [vmem:[#allocation2 + $0x1d8] sm:$0xff]
        %v563 = vld [vmem:[#allocation2 + $0x1e0] sm:$0xff]
        %v564 = vld [vmem:[#allocation2 + $0x1e8] sm:$0xff]
        %v565 = vld [vmem:[#allocation2 + $0x1f0] sm:$0xff]
        %v566 = vld [vmem:[#allocation2 + $0x1f8] sm:$0xff]
        %v567 = vld [vmem:[%s2] sm:$0x3]
        %v569 = vperm.slane %v567, 0
        %v570 = vperm.slane %v567, 1
        %573 = vmatpush.msra.mxu0 %v533
        %574 = vmatpush.msra.mxu0 %v531
        %575 = vmatpush.msra.mxu0 %v529
        %576 = vmatpush.msra.mxu0 %v527
        %577 = vmatpush.msra.mxu0 %v525
        %578 = vmatpush.msra.mxu0 %v523
        %579 = vmatpush.msra.mxu0 %v521
        %580 = vmatpush.msra.mxu0 %v519
        %581 = vmatpush.msra.mxu0 %v517
        %582 = vmatpush.msra.mxu0 %v515
        %583 = vmatpush.msra.mxu0 %v513
        %584 = vmatpush.msra.mxu0 %v511
        %585 = vmatpush.msra.mxu0 %v509
        %586 = vmatpush.msra.mxu0 %v507
        %587 = vmatpush.msra.mxu0 %v505
        %588 = vmatpush.msra.mxu0 %v503
        %589 = vmatmul.f32.gmra.mxu0 %v497
        %v590 = vpop.f32.mrf.mxu0
        %v591 = vadd.f32 %v569, %v590
        %592 = vmatmul.f32.gmra.mxu0 %v499
        %v593 = vpop.f32.mrf.mxu0
        %v594 = vadd.f32 %v569, %v593
        %595 = vmatmul.f32.gmra.mxu0 %v501
        %v596 = vpop.f32.mrf.mxu0
        %v597 = vadd.f32 %v569, %v596
        %598 = vdwg.mxu0
        %599 = vmatpush.msra.mxu0 %v565
        %600 = vmatpush.msra.mxu0 %v563
        %601 = vmatpush.msra.mxu0 %v561
        %602 = vmatpush.msra.mxu0 %v559
        %603 = vmatpush.msra.mxu0 %v557
        %604 = vmatpush.msra.mxu0 %v555
        %605 = vmatpush.msra.mxu0 %v553
        %606 = vmatpush.msra.mxu0 %v551
        %607 = vmatpush.msra.mxu0 %v549
        %608 = vmatpush.msra.mxu0 %v547
        %609 = vmatpush.msra.mxu0 %v545
        %610 = vmatpush.msra.mxu0 %v543
        %611 = vmatpush.msra.mxu0 %v541
        %612 = vmatpush.msra.mxu0 %v539
        %613 = vmatpush.msra.mxu0 %v537
        %614 = vmatpush.msra.mxu0 %v535
        %615 = vmatmul.f32.gmra.mxu0 %v498
        %v616 = vpop.f32.mrf.mxu0
        %v617 = vadd.f32 %v591, %v616
        %618 = vmatmul.f32.gmra.mxu0 %v500
        %v619 = vpop.f32.mrf.mxu0
        %v620 = vadd.f32 %v594, %v619
        %621 = vmatmul.f32.gmra.mxu0 %v502
        %v622 = vpop.f32.mrf.mxu0
        %v623 = vadd.f32 %v597, %v622
        %624 = vdwg.mxu0
        %625 = vmatpush.msra.mxu0 %v534
        %626 = vmatpush.msra.mxu0 %v532
        %627 = vmatpush.msra.mxu0 %v530
        %628 = vmatpush.msra.mxu0 %v528
        %629 = vmatpush.msra.mxu0 %v526
        %630 = vmatpush.msra.mxu0 %v524
        %631 = vmatpush.msra.mxu0 %v522
        %632 = vmatpush.msra.mxu0 %v520
        %633 = vmatpush.msra.mxu0 %v518
        %634 = vmatpush.msra.mxu0 %v516
        %635 = vmatpush.msra.mxu0 %v514
        %636 = vmatpush.msra.mxu0 %v512
        %637 = vmatpush.msra.mxu0 %v510
        %638 = vmatpush.msra.mxu0 %v508
        %639 = vmatpush.msra.mxu0 %v506
        %640 = vmatpush.msra.mxu0 %v504
        %641 = vmatmul.f32.gmra.mxu0 %v497
        %v642 = vpop.f32.mrf.mxu0
        %v643 = vadd.f32 %v570, %v642
        %644 = vmatmul.f32.gmra.mxu0 %v499
        %v645 = vpop.f32.mrf.mxu0
        %v646 = vadd.f32 %v570, %v645
        %647 = vmatmul.f32.gmra.mxu0 %v501
        %v648 = vpop.f32.mrf.mxu0
        %v649 = vadd.f32 %v570, %v648
        %650 = vdwg.mxu0
        %651 = vmatpush.msra.mxu0 %v566
        %652 = vmatpush.msra.mxu0 %v564
        %653 = vmatpush.msra.mxu0 %v562
        %654 = vmatpush.msra.mxu0 %v560
        %655 = vmatpush.msra.mxu0 %v558
        %656 = vmatpush.msra.mxu0 %v556
        %657 = vmatpush.msra.mxu0 %v554
        %658 = vmatpush.msra.mxu0 %v552
        %659 = vmatpush.msra.mxu0 %v550
        %660 = vmatpush.msra.mxu0 %v548
        %661 = vmatpush.msra.mxu0 %v546
        %662 = vmatpush.msra.mxu0 %v544
        %663 = vmatpush.msra.mxu0 %v542
        %664 = vmatpush.msra.mxu0 %v540
        %665 = vmatpush.msra.mxu0 %v538
        %666 = vmatpush.msra.mxu0 %v536
        %667 = vmatmul.f32.gmra.mxu0 %v498
        %v668 = vpop.f32.mrf.mxu0
        %v669 = vadd.f32 %v643, %v668
        %670 = vmatmul.f32.gmra.mxu0 %v500
        %v671 = vpop.f32.mrf.mxu0
        %v672 = vadd.f32 %v646, %v671
        %673 = vmatmul.f32.gmra.mxu0 %v502
        %v674 = vpop.f32.mrf.mxu0
        %v675 = vadd.f32 %v649, %v674
        %676 = vdwg.mxu0
        %v677 = vmax.f32 %v617, 0.0
        %v678 = vmax.f32 %v669, 0.0
        %v679 = vmax.f32 %v620, 0.0
        %v680 = vmax.f32 %v672, 0.0
        %v681 = vmax.f32 %v623, 0.0
        %v682 = vmax.f32 %v675, 0.0
        %v683 = vld [vmem:[#allocation4] sm:$0xff]
        %v684 = vld [vmem:[#allocation4 + $0x8] sm:$0xff]
        %v685 = vld [vmem:[#allocation4 + $0x10] sm:$0xff]
        %v686 = vld [vmem:[#allocation4 + $0x18] sm:$0xff]
        %v687 = vld [vmem:[#allocation4 + $0x20] sm:$0xff]
        %v688 = vld [vmem:[#allocation4 + $0x28] sm:$0xff]
        %v689 = vld [vmem:[#allocation4 + $0x30] sm:$0xff]
        %v690 = vld [vmem:[#allocation4 + $0x38] sm:$0xff]
        %v691 = vld [vmem:[#allocation4 + $0x40] sm:$0xff]
        %v692 = vld [vmem:[#allocation4 + $0x48] sm:$0xff]
        %v693 = vld [vmem:[#allocation4 + $0x50] sm:$0xff]
        %v694 = vld [vmem:[#allocation4 + $0x58] sm:$0xff]
        %v695 = vld [vmem:[#allocation4 + $0x60] sm:$0xff]
        %v696 = vld [vmem:[#allocation4 + $0x68] sm:$0xff]
        %v697 = vld [vmem:[#allocation4 + $0x70] sm:$0xff]
        %v698 = vld [vmem:[#allocation4 + $0x78] sm:$0xff]
        %v699 = vld [vmem:[#allocation4 + $0x80] sm:$0xff]
        %v700 = vld [vmem:[#allocation4 + $0x88] sm:$0xff]
        %v701 = vld [vmem:[#allocation4 + $0x90] sm:$0xff]
        %v702 = vld [vmem:[#allocation4 + $0x98] sm:$0xff]
        %v703 = vld [vmem:[#allocation4 + $0xa0] sm:$0xff]
        %v704 = vld [vmem:[#allocation4 + $0xa8] sm:$0xff]
        %v705 = vld [vmem:[#allocation4 + $0xb0] sm:$0xff]
        %v706 = vld [vmem:[#allocation4 + $0xb8] sm:$0xff]
        %v707 = vld [vmem:[#allocation4 + $0xc0] sm:$0xff]
        %v708 = vld [vmem:[#allocation4 + $0xc8] sm:$0xff]
        %v709 = vld [vmem:[#allocation4 + $0xd0] sm:$0xff]
        %v710 = vld [vmem:[#allocation4 + $0xd8] sm:$0xff]
        %v711 = vld [vmem:[#allocation4 + $0xe0] sm:$0xff]
        %v712 = vld [vmem:[#allocation4 + $0xe8] sm:$0xff]
        %v713 = vld [vmem:[#allocation4 + $0xf0] sm:$0xff]
        %v714 = vld [vmem:[#allocation4 + $0xf8] sm:$0xff]
        %v715 = vld [vmem:[#allocation4 + $0x100] sm:$0xff]
        %v716 = vld [vmem:[#allocation4 + $0x108] sm:$0xff]
        %v717 = vld [vmem:[#allocation4 + $0x110] sm:$0xff]
        %v718 = vld [vmem:[#allocation4 + $0x118] sm:$0xff]
        %v719 = vld [vmem:[#allocation4 + $0x120] sm:$0xff]
        %v720 = vld [vmem:[#allocation4 + $0x128] sm:$0xff]
        %v721 = vld [vmem:[#allocation4 + $0x130] sm:$0xff]
        %v722 = vld [vmem:[#allocation4 + $0x138] sm:$0xff]
        %v723 = vld [vmem:[#allocation4 + $0x140] sm:$0xff]
        %v724 = vld [vmem:[#allocation4 + $0x148] sm:$0xff]
        %v725 = vld [vmem:[#allocation4 + $0x150] sm:$0xff]
        %v726 = vld [vmem:[#allocation4 + $0x158] sm:$0xff]
        %v727 = vld [vmem:[#allocation4 + $0x160] sm:$0xff]
        %v728 = vld [vmem:[#allocation4 + $0x168] sm:$0xff]
        %v729 = vld [vmem:[#allocation4 + $0x170] sm:$0xff]
        %v730 = vld [vmem:[#allocation4 + $0x178] sm:$0xff]
        %v731 = vld [vmem:[#allocation4 + $0x180] sm:$0xff]
        %v732 = vld [vmem:[#allocation4 + $0x188] sm:$0xff]
        %v733 = vld [vmem:[#allocation4 + $0x190] sm:$0xff]
        %v734 = vld [vmem:[#allocation4 + $0x198] sm:$0xff]
        %v735 = vld [vmem:[#allocation4 + $0x1a0] sm:$0xff]
        %v736 = vld [vmem:[#allocation4 + $0x1a8] sm:$0xff]
        %v737 = vld [vmem:[#allocation4 + $0x1b0] sm:$0xff]
        %v738 = vld [vmem:[#allocation4 + $0x1b8] sm:$0xff]
        %v739 = vld [vmem:[#allocation4 + $0x1c0] sm:$0xff]
        %v740 = vld [vmem:[#allocation4 + $0x1c8] sm:$0xff]
        %v741 = vld [vmem:[#allocation4 + $0x1d0] sm:$0xff]
        %v742 = vld [vmem:[#allocation4 + $0x1d8] sm:$0xff]
        %v743 = vld [vmem:[#allocation4 + $0x1e0] sm:$0xff]
        %v744 = vld [vmem:[#allocation4 + $0x1e8] sm:$0xff]
        %v745 = vld [vmem:[#allocation4 + $0x1f0] sm:$0xff]
        %v746 = vld [vmem:[#allocation4 + $0x1f8] sm:$0xff]
        %v747 = vld [vmem:[%s4] sm:$0x3]
        %v749 = vperm.slane %v747, 0
        %v750 = vperm.slane %v747, 1
        %753 = vmatpush.msra.mxu0 %v713
        %754 = vmatpush.msra.mxu0 %v711
        %755 = vmatpush.msra.mxu0 %v709
        %756 = vmatpush.msra.mxu0 %v707
        %757 = vmatpush.msra.mxu0 %v705
        %758 = vmatpush.msra.mxu0 %v703
        %759 = vmatpush.msra.mxu0 %v701
        %760 = vmatpush.msra.mxu0 %v699
        %761 = vmatpush.msra.mxu0 %v697
        %762 = vmatpush.msra.mxu0 %v695
        %763 = vmatpush.msra.mxu0 %v693
        %764 = vmatpush.msra.mxu0 %v691
        %765 = vmatpush.msra.mxu0 %v689
        %766 = vmatpush.msra.mxu0 %v687
        %767 = vmatpush.msra.mxu0 %v685
        %768 = vmatpush.msra.mxu0 %v683
        %769 = vmatmul.f32.gmra.mxu0 %v677
        %v770 = vpop.f32.mrf.mxu0
        %v771 = vadd.f32 %v749, %v770
        %772 = vmatmul.f32.gmra.mxu0 %v679
        %v773 = vpop.f32.mrf.mxu0
        %v774 = vadd.f32 %v749, %v773
        %775 = vmatmul.f32.gmra.mxu0 %v681
        %v776 = vpop.f32.mrf.mxu0
        %v777 = vadd.f32 %v749, %v776
        %778 = vdwg.mxu0
        %779 = vmatpush.msra.mxu0 %v745
        %780 = vmatpush.msra.mxu0 %v743
        %781 = vmatpush.msra.mxu0 %v741
        %782 = vmatpush.msra.mxu0 %v739
        %783 = vmatpush.msra.mxu0 %v737
        %784 = vmatpush.msra.mxu0 %v735
        %785 = vmatpush.msra.mxu0 %v733
        %786 = vmatpush.msra.mxu0 %v731
        %787 = vmatpush.msra.mxu0 %v729
        %788 = vmatpush.msra.mxu0 %v727
        %789 = vmatpush.msra.mxu0 %v725
        %790 = vmatpush.msra.mxu0 %v723
        %791 = vmatpush.msra.mxu0 %v721
        %792 = vmatpush.msra.mxu0 %v719
        %793 = vmatpush.msra.mxu0 %v717
        %794 = vmatpush.msra.mxu0 %v715
        %795 = vmatmul.f32.gmra.mxu0 %v678
        %v796 = vpop.f32.mrf.mxu0
        %v797 = vadd.f32 %v771, %v796
        %798 = vmatmul.f32.gmra.mxu0 %v680
        %v799 = vpop.f32.mrf.mxu0
        %v800 = vadd.f32 %v774, %v799
        %801 = vmatmul.f32.gmra.mxu0 %v682
        %v802 = vpop.f32.mrf.mxu0
        %v803 = vadd.f32 %v777, %v802
        %804 = vdwg.mxu0
        %805 = vmatpush.msra.mxu0 %v714
        %806 = vmatpush.msra.mxu0 %v712
        %807 = vmatpush.msra.mxu0 %v710
        %808 = vmatpush.msra.mxu0 %v708
        %809 = vmatpush.msra.mxu0 %v706
        %810 = vmatpush.msra.mxu0 %v704
        %811 = vmatpush.msra.mxu0 %v702
        %812 = vmatpush.msra.mxu0 %v700
        %813 = vmatpush.msra.mxu0 %v698
        %814 = vmatpush.msra.mxu0 %v696
        %815 = vmatpush.msra.mxu0 %v694
        %816 = vmatpush.msra.mxu0 %v692
        %817 = vmatpush.msra.mxu0 %v690
        %818 = vmatpush.msra.mxu0 %v688
        %819 = vmatpush.msra.mxu0 %v686
        %820 = vmatpush.msra.mxu0 %v684
        %821 = vmatmul.f32.gmra.mxu0 %v677
        %v822 = vpop.f32.mrf.mxu0
        %v823 = vadd.f32 %v750, %v822
        %824 = vmatmul.f32.gmra.mxu0 %v679
        %v825 = vpop.f32.mrf.mxu0
        %v826 = vadd.f32 %v750, %v825
        %827 = vmatmul.f32.gmra.mxu0 %v681
        %v828 = vpop.f32.mrf.mxu0
        %v829 = vadd.f32 %v750, %v828
        %830 = vdwg.mxu0
        %831 = vmatpush.msra.mxu0 %v746
        %832 = vmatpush.msra.mxu0 %v744
        %833 = vmatpush.msra.mxu0 %v742
        %834 = vmatpush.msra.mxu0 %v740
        %835 = vmatpush.msra.mxu0 %v738
        %836 = vmatpush.msra.mxu0 %v736
        %837 = vmatpush.msra.mxu0 %v734
        %838 = vmatpush.msra.mxu0 %v732
        %839 = vmatpush.msra.mxu0 %v730
        %840 = vmatpush.msra.mxu0 %v728
        %841 = vmatpush.msra.mxu0 %v726
        %842 = vmatpush.msra.mxu0 %v724
        %843 = vmatpush.msra.mxu0 %v722
        %844 = vmatpush.msra.mxu0 %v720
        %845 = vmatpush.msra.mxu0 %v718
        %846 = vmatpush.msra.mxu0 %v716
        %847 = vmatmul.f32.gmra.mxu0 %v678
        %v848 = vpop.f32.mrf.mxu0
        %v849 = vadd.f32 %v823, %v848
        %850 = vmatmul.f32.gmra.mxu0 %v680
        %v851 = vpop.f32.mrf.mxu0
        %v852 = vadd.f32 %v826, %v851
        %853 = vmatmul.f32.gmra.mxu0 %v682
        %v854 = vpop.f32.mrf.mxu0
        %v855 = vadd.f32 %v829, %v854
        %856 = vdwg.mxu0
        %857 = vst [vmem:[%s484] sm:$0xff] %v797
        %858 = vst [vmem:[%s484 + $0x8] sm:$0xff] %v849
        %859 = vst [vmem:[%s484 + $0x10] sm:$0xff] %v800
        %860 = vst [vmem:[%s484 + $0x18] sm:$0xff] %v852
        %861 = vst [vmem:[%s484 + $0x20] sm:$0xff] %v803
        %862 = vst [vmem:[%s484 + $0x28] sm:$0xff] %v855
        %v863 = vld [vmem:[#allocation6] sm:$0xff]
        %v864 = vld [vmem:[#allocation6 + $0x8] sm:$0xff]
        %v865 = vld [vmem:[#allocation6 + $0x10] sm:$0xff]
        %v866 = vld [vmem:[#allocation6 + $0x18] sm:$0xff]
        %v867 = vld [vmem:[#allocation6 + $0x20] sm:$0xff]
        %v868 = vld [vmem:[#allocation6 + $0x28] sm:$0xff]
        %v869 = vld [vmem:[#allocation6 + $0x30] sm:$0xff]
        %v870 = vld [vmem:[#allocation6 + $0x38] sm:$0xff]
        %v871 = vld [vmem:[#allocation6 + $0x40] sm:$0xff]
        %v872 = vld [vmem:[#allocation6 + $0x48] sm:$0xff]
        %v873 = vld [vmem:[#allocation6 + $0x50] sm:$0xff]
        %v874 = vld [vmem:[#allocation6 + $0x58] sm:$0xff]
        %v875 = vld [vmem:[#allocation6 + $0x60] sm:$0xff]
        %v876 = vld [vmem:[#allocation6 + $0x68] sm:$0xff]
        %v877 = vld [vmem:[#allocation6 + $0x70] sm:$0xff]
        %v878 = vld [vmem:[#allocation6 + $0x78] sm:$0xff]
        %v879 = vld [vmem:[#allocation6 + $0x80] sm:$0xff]
        %v880 = vld [vmem:[#allocation6 + $0x88] sm:$0xff]
        %v881 = vld [vmem:[#allocation6 + $0x90] sm:$0xff]
        %v882 = vld [vmem:[#allocation6 + $0x98] sm:$0xff]
        %v883 = vld [vmem:[#allocation6 + $0xa0] sm:$0xff]
        %v884 = vld [vmem:[#allocation6 + $0xa8] sm:$0xff]
        %v885 = vld [vmem:[#allocation6 + $0xb0] sm:$0xff]
        %v886 = vld [vmem:[#allocation6 + $0xb8] sm:$0xff]
        %v887 = vld [vmem:[#allocation6 + $0xc0] sm:$0xff]
        %v888 = vld [vmem:[#allocation6 + $0xc8] sm:$0xff]
        %v889 = vld [vmem:[#allocation6 + $0xd0] sm:$0xff]
        %v890 = vld [vmem:[#allocation6 + $0xd8] sm:$0xff]
        %v891 = vld [vmem:[#allocation6 + $0xe0] sm:$0xff]
        %v892 = vld [vmem:[#allocation6 + $0xe8] sm:$0xff]
        %v893 = vld [vmem:[#allocation6 + $0xf0] sm:$0xff]
        %v894 = vld [vmem:[#allocation6 + $0xf8] sm:$0xff]
        %v895 = vld [vmem:[#allocation6 + $0x100] sm:$0xff]
        %v896 = vld [vmem:[#allocation6 + $0x108] sm:$0xff]
        %v897 = vld [vmem:[#allocation6 + $0x110] sm:$0xff]
        %v898 = vld [vmem:[#allocation6 + $0x118] sm:$0xff]
        %v899 = vld [vmem:[#allocation6 + $0x120] sm:$0xff]
        %v900 = vld [vmem:[#allocation6 + $0x128] sm:$0xff]
        %v901 = vld [vmem:[#allocation6 + $0x130] sm:$0xff]
        %v902 = vld [vmem:[#allocation6 + $0x138] sm:$0xff]
        %v903 = vld [vmem:[#allocation6 + $0x140] sm:$0xff]
        %v904 = vld [vmem:[#allocation6 + $0x148] sm:$0xff]
        %v905 = vld [vmem:[#allocation6 + $0x150] sm:$0xff]
        %v906 = vld [vmem:[#allocation6 + $0x158] sm:$0xff]
        %v907 = vld [vmem:[#allocation6 + $0x160] sm:$0xff]
        %v908 = vld [vmem:[#allocation6 + $0x168] sm:$0xff]
        %v909 = vld [vmem:[#allocation6 + $0x170] sm:$0xff]
        %v910 = vld [vmem:[#allocation6 + $0x178] sm:$0xff]
        %v911 = vld [vmem:[#allocation6 + $0x180] sm:$0xff]
        %v912 = vld [vmem:[#allocation6 + $0x188] sm:$0xff]
        %v913 = vld [vmem:[#allocation6 + $0x190] sm:$0xff]
        %v914 = vld [vmem:[#allocation6 + $0x198] sm:$0xff]
        %v915 = vld [vmem:[#allocation6 + $0x1a0] sm:$0xff]
        %v916 = vld [vmem:[#allocation6 + $0x1a8] sm:$0xff]
        %v917 = vld [vmem:[#allocation6 + $0x1b0] sm:$0xff]
        %v918 = vld [vmem:[#allocation6 + $0x1b8] sm:$0xff]
        %v919 = vld [vmem:[#allocation6 + $0x1c0] sm:$0xff]
        %v920 = vld [vmem:[#allocation6 + $0x1c8] sm:$0xff]
        %v921 = vld [vmem:[#allocation6 + $0x1d0] sm:$0xff]
        %v922 = vld [vmem:[#allocation6 + $0x1d8] sm:$0xff]
        %v923 = vld [vmem:[#allocation6 + $0x1e0] sm:$0xff]
        %v924 = vld [vmem:[#allocation6 + $0x1e8] sm:$0xff]
        %v925 = vld [vmem:[#allocation6 + $0x1f0] sm:$0xff]
        %v926 = vld [vmem:[#allocation6 + $0x1f8] sm:$0xff]
        %v927 = vld [vmem:[%s6] sm:$0x3]
        %v929 = vperm.slane %v927, 0
        %v930 = vperm.slane %v927, 1
        %933 = vmatpush.msra.mxu0 %v893
        %934 = vmatpush.msra.mxu0 %v891
        %935 = vmatpush.msra.mxu0 %v889
        %936 = vmatpush.msra.mxu0 %v887
        %937 = vmatpush.msra.mxu0 %v885
        %938 = vmatpush.msra.mxu0 %v883
        %939 = vmatpush.msra.mxu0 %v881
        %940 = vmatpush.msra.mxu0 %v879
        %941 = vmatpush.msra.mxu0 %v877
        %942 = vmatpush.msra.mxu0 %v875
        %943 = vmatpush.msra.mxu0 %v873
        %944 = vmatpush.msra.mxu0 %v871
        %945 = vmatpush.msra.mxu0 %v869
        %946 = vmatpush.msra.mxu0 %v867
        %947 = vmatpush.msra.mxu0 %v865
        %948 = vmatpush.msra.mxu0 %v863
        %949 = vmatmul.f32.gmra.mxu0 %v797
        %v950 = vpop.f32.mrf.mxu0
        %v951 = vadd.f32 %v929, %v950
        %952 = vmatmul.f32.gmra.mxu0 %v800
        %v953 = vpop.f32.mrf.mxu0
        %v954 = vadd.f32 %v929, %v953
        %955 = vmatmul.f32.gmra.mxu0 %v803
        %v956 = vpop.f32.mrf.mxu0
        %v957 = vadd.f32 %v929, %v956
        %958 = vdwg.mxu0
        %959 = vmatpush.msra.mxu0 %v925
        %960 = vmatpush.msra.mxu0 %v923
        %961 = vmatpush.msra.mxu0 %v921
        %962 = vmatpush.msra.mxu0 %v919
        %963 = vmatpush.msra.mxu0 %v917
        %964 = vmatpush.msra.mxu0 %v915
        %965 = vmatpush.msra.mxu0 %v913
        %966 = vmatpush.msra.mxu0 %v911
        %967 = vmatpush.msra.mxu0 %v909
        %968 = vmatpush.msra.mxu0 %v907
        %969 = vmatpush.msra.mxu0 %v905
        %970 = vmatpush.msra.mxu0 %v903
        %971 = vmatpush.msra.mxu0 %v901
        %972 = vmatpush.msra.mxu0 %v899
        %973 = vmatpush.msra.mxu0 %v897
        %974 = vmatpush.msra.mxu0 %v895
        %975 = vmatmul.f32.gmra.mxu0 %v849
        %v976 = vpop.f32.mrf.mxu0
        %v977 = vadd.f32 %v951, %v976
        %978 = vmatmul.f32.gmra.mxu0 %v852
        %v979 = vpop.f32.mrf.mxu0
        %v980 = vadd.f32 %v954, %v979
        %981 = vmatmul.f32.gmra.mxu0 %v855
        %v982 = vpop.f32.mrf.mxu0
        %v983 = vadd.f32 %v957, %v982
        %984 = vdwg.mxu0
        %985 = vmatpush.msra.mxu0 %v894
        %986 = vmatpush.msra.mxu0 %v892
        %987 = vmatpush.msra.mxu0 %v890
        %988 = vmatpush.msra.mxu0 %v888
        %989 = vmatpush.msra.mxu0 %v886
        %990 = vmatpush.msra.mxu0 %v884
        %991 = vmatpush.msra.mxu0 %v882
        %992 = vmatpush.msra.mxu0 %v880
        %993 = vmatpush.msra.mxu0 %v878
        %994 = vmatpush.msra.mxu0 %v876
        %995 = vmatpush.msra.mxu0 %v874
        %996 = vmatpush.msra.mxu0 %v872
        %997 = vmatpush.msra.mxu0 %v870
        %998 = vmatpush.msra.mxu0 %v868
        %999 = vmatpush.msra.mxu0 %v866
        %1000 = vmatpush.msra.mxu0 %v864
        %1001 = vmatmul.f32.gmra.mxu0 %v797
        %v1002 = vpop.f32.mrf.mxu0
        %v1003 = vadd.f32 %v930, %v1002
        %1004 = vmatmul.f32.gmra.mxu0 %v800
        %v1005 = vpop.f32.mrf.mxu0
        %v1006 = vadd.f32 %v930, %v1005
        %1007 = vmatmul.f32.gmra.mxu0 %v803
        %v1008 = vpop.f32.mrf.mxu0
        %v1009 = vadd.f32 %v930, %v1008
        %1010 = vdwg.mxu0
        %1011 = vmatpush.msra.mxu0 %v926
        %1012 = vmatpush.msra.mxu0 %v924
        %1013 = vmatpush.msra.mxu0 %v922
        %1014 = vmatpush.msra.mxu0 %v920
        %1015 = vmatpush.msra.mxu0 %v918
        %1016 = vmatpush.msra.mxu0 %v916
        %1017 = vmatpush.msra.mxu0 %v914
        %1018 = vmatpush.msra.mxu0 %v912
        %1019 = vmatpush.msra.mxu0 %v910
        %1020 = vmatpush.msra.mxu0 %v908
        %1021 = vmatpush.msra.mxu0 %v906
        %1022 = vmatpush.msra.mxu0 %v904
        %1023 = vmatpush.msra.mxu0 %v902
        %1024 = vmatpush.msra.mxu0 %v900
        %1025 = vmatpush.msra.mxu0 %v898
        %1026 = vmatpush.msra.mxu0 %v896
        %1027 = vmatmul.f32.gmra.mxu0 %v849
        %v1028 = vpop.f32.mrf.mxu0
        %v1029 = vadd.f32 %v1003, %v1028
        %1030 = vmatmul.f32.gmra.mxu0 %v852
        %v1031 = vpop.f32.mrf.mxu0
        %v1032 = vadd.f32 %v1006, %v1031
        %1033 = vmatmul.f32.gmra.mxu0 %v855
        %v1034 = vpop.f32.mrf.mxu0
        %v1035 = vadd.f32 %v1009, %v1034
        %1036 = vdwg.mxu0
        %v1037 = vmax.f32 %v977, 0.0
        %v1038 = vmax.f32 %v1029, 0.0
        %v1039 = vmax.f32 %v980, 0.0
        %v1040 = vmax.f32 %v1032, 0.0
        %v1041 = vmax.f32 %v983, 0.0
        %v1042 = vmax.f32 %v1035, 0.0
        %v1043 = vld [vmem:[#allocation7] sm:$0xff]
        %v1044 = vld [vmem:[#allocation7 + $0x8] sm:$0xff]
        %v1045 = vld [vmem:[#allocation7 + $0x10] sm:$0xff]
        %v1046 = vld [vmem:[#allocation7 + $0x18] sm:$0xff]
        %v1047 = vld [vmem:[#allocation7 + $0x20] sm:$0xff]
        %v1048 = vld [vmem:[#allocation7 + $0x28] sm:$0xff]
        %v1049 = vld [vmem:[#allocation7 + $0x30] sm:$0xff]
        %v1050 = vld [vmem:[#allocation7 + $0x38] sm:$0xff]
        %v1051 = vld [vmem:[#allocation7 + $0x40] sm:$0xff]
        %v1052 = vld [vmem:[#allocation7 + $0x48] sm:$0xff]
        %v1053 = vld [vmem:[#allocation7 + $0x50] sm:$0xff]
        %v1054 = vld [vmem:[#allocation7 + $0x58] sm:$0xff]
        %v1055 = vld [vmem:[#allocation7 + $0x60] sm:$0xff]
        %v1056 = vld [vmem:[#allocation7 + $0x68] sm:$0xff]
        %v1057 = vld [vmem:[#allocation7 + $0x70] sm:$0xff]
        %v1058 = vld [vmem:[#allocation7 + $0x78] sm:$0xff]
        %v1059 = vld [vmem:[#allocation7 + $0x80] sm:$0xff]
        %v1060 = vld [vmem:[#allocation7 + $0x88] sm:$0xff]
        %v1061 = vld [vmem:[#allocation7 + $0x90] sm:$0xff]
        %v1062 = vld [vmem:[#allocation7 + $0x98] sm:$0xff]
        %v1063 = vld [vmem:[#allocation7 + $0xa0] sm:$0xff]
        %v1064 = vld [vmem:[#allocation7 + $0xa8] sm:$0xff]
        %v1065 = vld [vmem:[#allocation7 + $0xb0] sm:$0xff]
        %v1066 = vld [vmem:[#allocation7 + $0xb8] sm:$0xff]
        %v1067 = vld [vmem:[#allocation7 + $0xc0] sm:$0xff]
        %v1068 = vld [vmem:[#allocation7 + $0xc8] sm:$0xff]
        %v1069 = vld [vmem:[#allocation7 + $0xd0] sm:$0xff]
        %v1070 = vld [vmem:[#allocation7 + $0xd8] sm:$0xff]
        %v1071 = vld [vmem:[#allocation7 + $0xe0] sm:$0xff]
        %v1072 = vld [vmem:[#allocation7 + $0xe8] sm:$0xff]
        %v1073 = vld [vmem:[#allocation7 + $0xf0] sm:$0xff]
        %v1074 = vld [vmem:[#allocation7 + $0xf8] sm:$0xff]
        %v1075 = vld [vmem:[#allocation7 + $0x100] sm:$0xff]
        %v1076 = vld [vmem:[#allocation7 + $0x108] sm:$0xff]
        %v1077 = vld [vmem:[#allocation7 + $0x110] sm:$0xff]
        %v1078 = vld [vmem:[#allocation7 + $0x118] sm:$0xff]
        %v1079 = vld [vmem:[#allocation7 + $0x120] sm:$0xff]
        %v1080 = vld [vmem:[#allocation7 + $0x128] sm:$0xff]
        %v1081 = vld [vmem:[#allocation7 + $0x130] sm:$0xff]
        %v1082 = vld [vmem:[#allocation7 + $0x138] sm:$0xff]
        %v1083 = vld [vmem:[#allocation7 + $0x140] sm:$0xff]
        %v1084 = vld [vmem:[#allocation7 + $0x148] sm:$0xff]
        %v1085 = vld [vmem:[#allocation7 + $0x150] sm:$0xff]
        %v1086 = vld [vmem:[#allocation7 + $0x158] sm:$0xff]
        %v1087 = vld [vmem:[#allocation7 + $0x160] sm:$0xff]
        %v1088 = vld [vmem:[#allocation7 + $0x168] sm:$0xff]
        %v1089 = vld [vmem:[#allocation7 + $0x170] sm:$0xff]
        %v1090 = vld [vmem:[#allocation7 + $0x178] sm:$0xff]
        %v1091 = vld [vmem:[#allocation7 + $0x180] sm:$0xff]
        %v1092 = vld [vmem:[#allocation7 + $0x188] sm:$0xff]
        %v1093 = vld [vmem:[#allocation7 + $0x190] sm:$0xff]
        %v1094 = vld [vmem:[#allocation7 + $0x198] sm:$0xff]
        %v1095 = vld [vmem:[#allocation7 + $0x1a0] sm:$0xff]
        %v1096 = vld [vmem:[#allocation7 + $0x1a8] sm:$0xff]
        %v1097 = vld [vmem:[#allocation7 + $0x1b0] sm:$0xff]
        %v1098 = vld [vmem:[#allocation7 + $0x1b8] sm:$0xff]
        %v1099 = vld [vmem:[#allocation7 + $0x1c0] sm:$0xff]
        %v1100 = vld [vmem:[#allocation7 + $0x1c8] sm:$0xff]
        %v1101 = vld [vmem:[#allocation7 + $0x1d0] sm:$0xff]
        %v1102 = vld [vmem:[#allocation7 + $0x1d8] sm:$0xff]
        %v1103 = vld [vmem:[#allocation7 + $0x1e0] sm:$0xff]
        %v1104 = vld [vmem:[#allocation7 + $0x1e8] sm:$0xff]
        %v1105 = vld [vmem:[#allocation7 + $0x1f0] sm:$0xff]
        %v1106 = vld [vmem:[#allocation7 + $0x1f8] sm:$0xff]
        %v1107 = vld [vmem:[%s8] sm:$0x3]
        %v1109 = vperm.slane %v1107, 0
        %v1110 = vperm.slane %v1107, 1
        %1113 = vmatpush.msra.mxu0 %v1073
        %1114 = vmatpush.msra.mxu0 %v1071
        %1115 = vmatpush.msra.mxu0 %v1069
        %1116 = vmatpush.msra.mxu0 %v1067
        %1117 = vmatpush.msra.mxu0 %v1065
        %1118 = vmatpush.msra.mxu0 %v1063
        %1119 = vmatpush.msra.mxu0 %v1061
        %1120 = vmatpush.msra.mxu0 %v1059
        %1121 = vmatpush.msra.mxu0 %v1057
        %1122 = vmatpush.msra.mxu0 %v1055
        %1123 = vmatpush.msra.mxu0 %v1053
        %1124 = vmatpush.msra.mxu0 %v1051
        %1125 = vmatpush.msra.mxu0 %v1049
        %1126 = vmatpush.msra.mxu0 %v1047
        %1127 = vmatpush.msra.mxu0 %v1045
        %1128 = vmatpush.msra.mxu0 %v1043
        %1129 = vmatmul.f32.gmra.mxu0 %v1037
        %v1130 = vpop.f32.mrf.mxu0
        %v1131 = vadd.f32 %v1109, %v1130
        %1132 = vmatmul.f32.gmra.mxu0 %v1039
        %v1133 = vpop.f32.mrf.mxu0
        %v1134 = vadd.f32 %v1109, %v1133
        %1135 = vmatmul.f32.gmra.mxu0 %v1041
        %v1136 = vpop.f32.mrf.mxu0
        %v1137 = vadd.f32 %v1109, %v1136
        %1138 = vdwg.mxu0
        %1139 = vmatpush.msra.mxu0 %v1105
        %1140 = vmatpush.msra.mxu0 %v1103
        %1141 = vmatpush.msra.mxu0 %v1101
        %1142 = vmatpush.msra.mxu0 %v1099
        %1143 = vmatpush.msra.mxu0 %v1097
        %1144 = vmatpush.msra.mxu0 %v1095
        %1145 = vmatpush.msra.mxu0 %v1093
        %1146 = vmatpush.msra.mxu0 %v1091
        %1147 = vmatpush.msra.mxu0 %v1089
        %1148 = vmatpush.msra.mxu0 %v1087
        %1149 = vmatpush.msra.mxu0 %v1085
        %1150 = vmatpush.msra.mxu0 %v1083
        %1151 = vmatpush.msra.mxu0 %v1081
        %1152 = vmatpush.msra.mxu0 %v1079
        %1153 = vmatpush.msra.mxu0 %v1077
        %1154 = vmatpush.msra.mxu0 %v1075
        %1155 = vmatmul.f32.gmra.mxu0 %v1038
        %v1156 = vpop.f32.mrf.mxu0
        %v1157 = vadd.f32 %v1131, %v1156
        %1158 = vmatmul.f32.gmra.mxu0 %v1040
        %v1159 = vpop.f32.mrf.mxu0
        %v1160 = vadd.f32 %v1134, %v1159
        %1161 = vmatmul.f32.gmra.mxu0 %v1042
        %v1162 = vpop.f32.mrf.mxu0
        %v1163 = vadd.f32 %v1137, %v1162
        %1164 = vdwg.mxu0
        %1165 = vmatpush.msra.mxu0 %v1074
        %1166 = vmatpush.msra.mxu0 %v1072
        %1167 = vmatpush.msra.mxu0 %v1070
        %1168 = vmatpush.msra.mxu0 %v1068
        %1169 = vmatpush.msra.mxu0 %v1066
        %1170 = vmatpush.msra.mxu0 %v1064
        %1171 = vmatpush.msra.mxu0 %v1062
        %1172 = vmatpush.msra.mxu0 %v1060
        %1173 = vmatpush.msra.mxu0 %v1058
        %1174 = vmatpush.msra.mxu0 %v1056
        %1175 = vmatpush.msra.mxu0 %v1054
        %1176 = vmatpush.msra.mxu0 %v1052
        %1177 = vmatpush.msra.mxu0 %v1050
        %1178 = vmatpush.msra.mxu0 %v1048
        %1179 = vmatpush.msra.mxu0 %v1046
        %1180 = vmatpush.msra.mxu0 %v1044
        %1181 = vmatmul.f32.gmra.mxu0 %v1037
        %v1182 = vpop.f32.mrf.mxu0
        %v1183 = vadd.f32 %v1110, %v1182
        %1184 = vmatmul.f32.gmra.mxu0 %v1039
        %v1185 = vpop.f32.mrf.mxu0
        %v1186 = vadd.f32 %v1110, %v1185
        %1187 = vmatmul.f32.gmra.mxu0 %v1041
        %v1188 = vpop.f32.mrf.mxu0
        %v1189 = vadd.f32 %v1110, %v1188
        %1190 = vdwg.mxu0
        %1191 = vmatpush.msra.mxu0 %v1106
        %1192 = vmatpush.msra.mxu0 %v1104
        %1193 = vmatpush.msra.mxu0 %v1102
        %1194 = vmatpush.msra.mxu0 %v1100
        %1195 = vmatpush.msra.mxu0 %v1098
        %1196 = vmatpush.msra.mxu0 %v1096
        %1197 = vmatpush.msra.mxu0 %v1094
        %1198 = vmatpush.msra.mxu0 %v1092
        %1199 = vmatpush.msra.mxu0 %v1090
        %1200 = vmatpush.msra.mxu0 %v1088
        %1201 = vmatpush.msra.mxu0 %v1086
        %1202 = vmatpush.msra.mxu0 %v1084
        %1203 = vmatpush.msra.mxu0 %v1082
        %1204 = vmatpush.msra.mxu0 %v1080
        %1205 = vmatpush.msra.mxu0 %v1078
        %1206 = vmatpush.msra.mxu0 %v1076
        %1207 = vmatmul.f32.gmra.mxu0 %v1038
        %v1208 = vpop.f32.mrf.mxu0
        %v1209 = vadd.f32 %v1183, %v1208
        %1210 = vmatmul.f32.gmra.mxu0 %v1040
        %v1211 = vpop.f32.mrf.mxu0
        %v1212 = vadd.f32 %v1186, %v1211
        %1213 = vmatmul.f32.gmra.mxu0 %v1042
        %v1214 = vpop.f32.mrf.mxu0
        %v1215 = vadd.f32 %v1189, %v1214
        %1216 = vdwg.mxu0
        %1217 = vst [vmem:[%s495] sm:$0xff] %v1157
        %1218 = vst [vmem:[%s495 + $0x8] sm:$0xff] %v1209
        %1219 = vst [vmem:[%s495 + $0x10] sm:$0xff] %v1160
        %1220 = vst [vmem:[%s495 + $0x18] sm:$0xff] %v1212
        %1221 = vst [vmem:[%s495 + $0x20] sm:$0xff] %v1163
        %1222 = vst [vmem:[%s495 + $0x28] sm:$0xff] %v1215
        %s1223 = smul.u32 3, %s30
        %p1224 = scmp.lt.s32.totalorder %s29, 1
        %s1225 = scalar_select %p1224, %s29, 1
        %p1226 = scmp.lt.s32.totalorder %s1223, 2
        %s1227 = scalar_select %p1226, %s1223, 2
        %s1228 = smul.addr %s1227, 2
        %s1229 = smul.addr %s1225, 6
        %s1230 = sadd.s32 %s1228, %s1229
        %s1231 = smul.addr %s1230, 8
        %s1232 = scalar_lea.vmem %s9, %s1231
        %s1233 = smul.u32 3, %s30
        %p1234 = scmp.lt.s32.totalorder %s29, 1
        %s1235 = scalar_select %p1234, %s29, 1
        %p1236 = scmp.lt.s32.totalorder %s1233, 2
        %s1237 = scalar_select %p1236, %s1233, 2
        %s1238 = smul.addr %s1237, 2
        %s1239 = smul.addr %s1235, 6
        %s1240 = sadd.s32 %s1238, %s1239
        %s1241 = smul.addr %s1240, 8
        %s1242 = scalar_lea.vmem %s10, %s1241
        // Predicated region
        $region73: #{_lambda_.1} parent=55 // pred_check
          %p1243 = pneg %p253
        $region74: #{_lambda_.1} parent=55 // pred_check_branch
          %1245 = sbr.rel (%p1243) target = $region76
        $region75: #{_lambda_.1} parent=55 // pred_region
          %s1246 = smul.u32 3, %s30
        $region76: #{_lambda_.1} parent=55 // pred_fallthru
          _
        // Predicated region
        $region77: #{_lambda_.1} parent=55 // pred_check
          %p1247 = pneg %p281
        $region78: #{_lambda_.1} parent=55 // pred_check_branch
          %1249 = sbr.rel (%p1247) target = $region80
        $region79: #{_lambda_.1} parent=55 // pred_region
          %s1250 = smul.u32 3, %s30
        $region80: #{_lambda_.1} parent=55 // pred_fallthru
          _
      $region56: #{_lambda_.1} parent=5 // pred_fallthru
        _
      %p1251 = scmp.le.s32.totalorder 2, %s20
      // Predicated region
      $region81: #{_lambda_.1} parent=5 // pred_check
        %p1252 = pneg %p1251
      $region82: #{_lambda_.1} parent=5 // pred_check_branch
        %1254 = sbr.rel (%p1252) target = $region84
      $region83: #{_lambda_.1} parent=5 // pred_region
        %s1255 = ssub.s32 %s20, 2
        // Predicated region
        $region85: #{_lambda_.1} parent=83 // pred_check
          %p1256 = pneg %p259
        $region86: #{_lambda_.1} parent=83 // pred_check_branch
          %1258 = sbr.rel (%p1256) target = $region88
        $region87: #{_lambda_.1} parent=83 // pred_region
          %s1259 = smul.u32 3, %s32
          %p1260 = scmp.lt.s32.totalorder %s31, 1
          %s1261 = scalar_select %p1260, %s31, 1
          %p1262 = scmp.lt.s32.totalorder %s1259, 2
          %s1263 = scalar_select %p1262, %s1259, 2
          %s1264 = smul.addr %s1263, 2
          %s1265 = smul.addr %s1261, 6
          %s1266 = sadd.s32 %s1264, %s1265
          %s1267 = smul.addr %s1266, 8
          %s1268 = scalar_lea.vmem %s9, %s1267
        $region88: #{_lambda_.1} parent=83 // pred_fallthru
          _
        // Predicated region
        $region89: #{_lambda_.1} parent=83 // pred_check
          %p1269 = pneg %p287
        $region90: #{_lambda_.1} parent=83 // pred_check_branch
          %1271 = sbr.rel (%p1269) target = $region92
        $region91: #{_lambda_.1} parent=83 // pred_region
          %s1272 = smul.u32 3, %s32
          %p1273 = scmp.lt.s32.totalorder %s31, 1
          %s1274 = scalar_select %p1273, %s31, 1
          %p1275 = scmp.lt.s32.totalorder %s1272, 2
          %s1276 = scalar_select %p1275, %s1272, 2
          %s1277 = smul.addr %s1276, 2
          %s1278 = smul.addr %s1274, 6
          %s1279 = sadd.s32 %s1277, %s1278
          %s1280 = smul.addr %s1279, 8
          %s1281 = scalar_lea.vmem %s10, %s1280
        $region92: #{_lambda_.1} parent=83 // pred_fallthru
          _
      $region84: #{_lambda_.1} parent=5 // pred_fallthru
        _
    $region6: #{_lambda_.1} parent=1 // loop_footer
      %s24 = sadd.s32 1, %s20
    $region7: #{_lambda_.1} parent=1 // loop_footer_branch
      %19 = sbr.rel target = $region3
    $region8: #{_lambda_.1} parent=1 // loop_exit
      _
    %1282 = vsyncpa [#allocation3], 1
    %s1283 = scalar_lea.sflag [#allocation3], 1
    %1284 = vsyncpa %s1283, 1
    %1285 = vsyncpa [#allocation5], 1
    %1286 = vsyncpa [#allocation8], 1

// kernel: _lambda_.1
$region0: #{_lambda_.1}
  #allocation0 [shape = 'u32[]', space=smem, size = 0x4, offset = 0x4, fixed_abs, tag = 'smem constant byte address 0x4 - core index']
  #allocation1 [shape = 'u32[72,128]{1,0:T(1,128)}', space=vmem, size = 0x9000, scoped, tag = 'internal scratch']
  %s0 = inlined_call_operand.vmem [shape: f32[2,24,256], index: 0, kind: input, shape index: {}]
  %s1 = inlined_call_operand.hbm [shape: f32[256,256], index: 1, kind: input, shape index: {}]
  %s2 = inlined_call_operand.vmem [shape: f32[1,256], index: 2, kind: input, shape index: {}]
  %s3 = inlined_call_operand.hbm [shape: f32[256,256], index: 3, kind: input, shape index: {}]
  %s4 = inlined_call_operand.vmem [shape: f32[1,256], index: 4, kind: input, shape index: {}]
  %s5 = inlined_call_operand.hbm [shape: f32[256,256], index: 5, kind: input, shape index: {}]
  %s6 = inlined_call_operand.vmem [shape: f32[1,256], index: 6, kind: input, shape index: {}]
  %s7 = inlined_call_operand.hbm [shape: f32[256,256], index: 7, kind: input, shape index: {}]
  %s8 = inlined_call_operand.vmem [shape: f32[1,256], index: 8, kind: input, shape index: {}]
  %s9 = inlined_call_operand.vmem [shape: f32[2,24,256], index: 9, kind: output, shape index: {0}]
  %s10 = inlined_call_operand.vmem [shape: f32[2,24,256], index: 10, kind: output, shape index: {1}]
  %11 = xla_tuple %s9, %s10
  %s12 = sld [smem:[#allocation0]]
  $region93: #{_lambda_.1} parent=0
    _
  %s14 = ssub.s32 1, %s12
  %s15 = scalar_select 0, %s14, %s12
  $region1: #{_lambda_.1} parent=0
    #allocation2 [shape = 'u8[262144]{0}', space=vmem, size = 0x40000, scoped, tag = 'input window, operand 1, single buffered']
    #allocation3 [shape = 's32[2]{0}', space=sflag, size = 0x8, scoped, tag = 'scoped memory for _lambda_.1']
    #allocation4 [shape = 'u8[262144]{0}', space=vmem, size = 0x40000, scoped, tag = 'input window, operand 3, single buffered']
    #allocation5 [shape = 's32[1]{0}', space=sflag, size = 0x4, scoped, tag = 'scoped memory for _lambda_.1']
    #allocation6 [shape = 'u8[262144]{0}', space=vmem, size = 0x40000, scoped, tag = 'input window, operand 5, single buffered']
    #allocation7 [shape = 'u8[262144]{0}', space=vmem, size = 0x40000, scoped, tag = 'input window, operand 7, single buffered']
    #allocation8 [shape = 's32[1]{0}', space=sflag, size = 0x4, scoped, tag = 'scoped memory for _lambda_.1']
    %16 = vsyncpa [#allocation3], 0
    %17 = vsyncpa [#allocation5], 0
    %18 = vsyncpa [#allocation8], 0
    loop: start=0, step=1, limit=4
    $region2: #{_lambda_.1} parent=1 // loop_pre_header
      _
    $region3: #{_lambda_.1} parent=1 // loop_header
      %s20 = sphi 0, %s24
      %p21 = scmp.ge.s32.totalorder %s20, 4
      %s27 = sphi 0, %s39
      %s28 = sphi 0, %s35
      %s29 = sphi 0, %s27
      %s30 = sphi 0, %s28
      %s31 = sphi 0, %s29
      %s32 = sphi 0, %s30
      %s44 = sphi 0, %s46
      %s47 = sphi 0, %s44
      %s48 = sphi 0, %s47
      %s64 = sphi 0, %s48
      %s68 = sphi 0, %s68
      %s70 = sphi 0, %s68
      %s71 = sphi 0, %s70
      %s85 = sphi 0, %s71
      %s89 = sphi 0, %s89
      %s91 = sphi 0, %s89
      %s92 = sphi 0, %s91
      %s106 = sphi 0, %s92
      %s110 = sphi 0, %s110
      %s112 = sphi 0, %s110
      %s113 = sphi 0, %s112
      %s127 = sphi 0, %s113
      %s131 = sphi 0, %s131
      %s133 = sphi 0, %s131
      %s134 = sphi 0, %s133
      %s148 = sphi 0, %s134
      %s152 = sphi 0, %s152
      %s154 = sphi 0, %s152
      %s155 = sphi 0, %s154
      %s169 = sphi 0, %s155
      %s173 = sphi 0, %s173
      %s175 = sphi 0, %s173
      %s176 = sphi 0, %s175
      %s190 = sphi 0, %s176
      %s194 = sphi 0, %s194
      %s196 = sphi 0, %s194
      %s197 = sphi 0, %s196
      %s211 = sphi 0, %s197
      %s215 = sphi 0, %s215
      %s217 = sphi 0, %s215
      %s218 = sphi 0, %s217
      %s232 = sphi 0, %s218
      %s240 = sphi 0, %s242
      %s243 = sphi 0, %s240
      %s244 = sphi 0, %s243
      %s260 = sphi 0, %s244
      %s268 = sphi 0, %s270
      %s271 = sphi 0, %s268
      %s272 = sphi 0, %s271
      %s288 = sphi 0, %s272
    $region4: #{_lambda_.1} parent=1 // loop_header_branch
      %23 = sbr.rel (%p21) target = $region8
    $region5: #{_lambda_.1} parent=1 // loop_body
      %s25 = ssub.s32 %s20, 1
      %s26 = ssub.s32 %s20, 2
      %s33 = sadd.s32 1, %s28
      %p34 = scmp.ge.s32.totalorder %s33, 1
      %s35 = scalar_select %p34, 0, %s33
      %s36 = sadd.s32 1, %s27
      %s37 = scalar_select %p34, %s36, %s27
      %p38 = scmp.ge.s32.totalorder %s37, 2
      %s39 = scalar_select %p38, 0, %s37
      %s40 = ssub.s32 %s27, %s39
      %s41 = ssub.s32 %s28, %s35
      %s42 = sor.u32 %s40, %s41
      %p43 = scmp.eq.s32.totalorder %s42, 0
      %s45 = sadd.s32 %s44, 1
      %s46 = scalar_select %p43, %s44, %s45
      %p49 = pneg %p43
      %p50 = scmp.eq.s32.totalorder %s20, 1
      %p51 = por %p49, %p50
      %p52 = scmp.ne.s32.totalorder %s44, %s47
      %p53 = scmp.eq.s32.totalorder %s20, 0
      %p54 = por %p52, %p53
      %p55 = scmp.ne.s32.totalorder %s44, %s47
      %p56 = scmp.eq.s32.totalorder %s25, 1
      %p57 = por %p55, %p56
      %p58 = scmp.ne.s32.totalorder %s47, %s48
      %p59 = scmp.eq.s32.totalorder %s25, 0
      %p60 = por %p58, %p59
      %p61 = scmp.ne.s32.totalorder %s47, %s48
      %p62 = scmp.eq.s32.totalorder %s26, 1
      %p63 = por %p61, %p62
      %p65 = scmp.ne.s32.totalorder %s48, %s64
      %p66 = scmp.eq.s32.totalorder %s26, 0
      %p67 = por %p65, %p66
      %s69 = sadd.s32 %s68, 1
      %p72 = scmp.eq.s32.totalorder %s20, 1
      %p73 = scmp.ne.s32.totalorder %s68, %s70
      %p74 = scmp.eq.s32.totalorder %s20, 0
      %p75 = por %p73, %p74
      %p76 = scmp.ne.s32.totalorder %s68, %s70
      %p77 = scmp.eq.s32.totalorder %s25, 1
      %p78 = por %p76, %p77
      %p79 = scmp.ne.s32.totalorder %s70, %s71
      %p80 = scmp.eq.s32.totalorder %s25, 0
      %p81 = por %p79, %p80
      %p82 = scmp.ne.s32.totalorder %s70, %s71
      %p83 = scmp.eq.s32.totalorder %s26, 1
      %p84 = por %p82, %p83
      %p86 = scmp.ne.s32.totalorder %s71, %s85
      %p87 = scmp.eq.s32.totalorder %s26, 0
      %p88 = por %p86, %p87
      %s90 = sadd.s32 %s89, 1
      %p93 = scmp.eq.s32.totalorder %s20, 1
      %p94 = scmp.ne.s32.totalorder %s89, %s91
      %p95 = scmp.eq.s32.totalorder %s20, 0
      %p96 = por %p94, %p95
      %p97 = scmp.ne.s32.totalorder %s89, %s91
      %p98 = scmp.eq.s32.totalorder %s25, 1
      %p99 = por %p97, %p98
      %p100 = scmp.ne.s32.totalorder %s91, %s92
      %p101 = scmp.eq.s32.totalorder %s25, 0
      %p102 = por %p100, %p101
      %p103 = scmp.ne.s32.totalorder %s91, %s92
      %p104 = scmp.eq.s32.totalorder %s26, 1
      %p105 = por %p103, %p104
      %p107 = scmp.ne.s32.totalorder %s92, %s106
      %p108 = scmp.eq.s32.totalorder %s26, 0
      %p109 = por %p107, %p108
      %s111 = sadd.s32 %s110, 1
      %p114 = scmp.eq.s32.totalorder %s20, 1
      %p115 = scmp.ne.s32.totalorder %s110, %s112
      %p116 = scmp.eq.s32.totalorder %s20, 0
      %p117 = por %p115, %p116
      %p118 = scmp.ne.s32.totalorder %s110, %s112
      %p119 = scmp.eq.s32.totalorder %s25, 1
      %p120 = por %p118, %p119
      %p121 = scmp.ne.s32.totalorder %s112, %s113
      %p122 = scmp.eq.s32.totalorder %s25, 0
      %p123 = por %p121, %p122
      %p124 = scmp.ne.s32.totalorder %s112, %s113
      %p125 = scmp.eq.s32.totalorder %s26, 1
      %p126 = por %p124, %p125
      %p128 = scmp.ne.s32.totalorder %s113, %s127
      %p129 = scmp.eq.s32.totalorder %s26, 0
      %p130 = por %p128, %p129
      %s132 = sadd.s32 %s131, 1
      %p135 = scmp.eq.s32.totalorder %s20, 1
      %p136 = scmp.ne.s32.totalorder %s131, %s133
      %p137 = scmp.eq.s32.totalorder %s20, 0
      %p138 = por %p136, %p137
      %p139 = scmp.ne.s32.totalorder %s131, %s133
      %p140 = scmp.eq.s32.totalorder %s25, 1
      %p141 = por %p139, %p140
      %p142 = scmp.ne.s32.totalorder %s133, %s134
      %p143 = scmp.eq.s32.totalorder %s25, 0
      %p144 = por %p142, %p143
      %p145 = scmp.ne.s32.totalorder %s133, %s134
      %p146 = scmp.eq.s32.totalorder %s26, 1
      %p147 = por %p145, %p146
      %p149 = scmp.ne.s32.totalorder %s134, %s148
      %p150 = scmp.eq.s32.totalorder %s26, 0
      %p151 = por %p149, %p150
      %s153 = sadd.s32 %s152, 1
      %p156 = scmp.eq.s32.totalorder %s20, 1
      %p157 = scmp.ne.s32.totalorder %s152, %s154
      %p158 = scmp.eq.s32.totalorder %s20, 0
      %p159 = por %p157, %p158
      %p160 = scmp.ne.s32.totalorder %s152, %s154
      %p161 = scmp.eq.s32.totalorder %s25, 1
      %p162 = por %p160, %p161
      %p163 = scmp.ne.s32.totalorder %s154, %s155
      %p164 = scmp.eq.s32.totalorder %s25, 0
      %p165 = por %p163, %p164
      %p166 = scmp.ne.s32.totalorder %s154, %s155
      %p167 = scmp.eq.s32.totalorder %s26, 1
      %p168 = por %p166, %p167
      %p170 = scmp.ne.s32.totalorder %s155, %s169
      %p171 = scmp.eq.s32.totalorder %s26, 0
      %p172 = por %p170, %p171
      %s174 = sadd.s32 %s173, 1
      %p177 = scmp.eq.s32.totalorder %s20, 1
      %p178 = scmp.ne.s32.totalorder %s173, %s175
      %p179 = scmp.eq.s32.totalorder %s20, 0
      %p180 = por %p178, %p179
      %p181 = scmp.ne.s32.totalorder %s173, %s175
      %p182 = scmp.eq.s32.totalorder %s25, 1
      %p183 = por %p181, %p182
      %p184 = scmp.ne.s32.totalorder %s175, %s176
      %p185 = scmp.eq.s32.totalorder %s25, 0
      %p186 = por %p184, %p185
      %p187 = scmp.ne.s32.totalorder %s175, %s176
      %p188 = scmp.eq.s32.totalorder %s26, 1
      %p189 = por %p187, %p188
      %p191 = scmp.ne.s32.totalorder %s176, %s190
      %p192 = scmp.eq.s32.totalorder %s26, 0
      %p193 = por %p191, %p192
      %s195 = sadd.s32 %s194, 1
      %p198 = scmp.eq.s32.totalorder %s20, 1
      %p199 = scmp.ne.s32.totalorder %s194, %s196
      %p200 = scmp.eq.s32.totalorder %s20, 0
      %p201 = por %p199, %p200
      %p202 = scmp.ne.s32.totalorder %s194, %s196
      %p203 = scmp.eq.s32.totalorder %s25, 1
      %p204 = por %p202, %p203
      %p205 = scmp.ne.s32.totalorder %s196, %s197
      %p206 = scmp.eq.s32.totalorder %s25, 0
      %p207 = por %p205, %p206
      %p208 = scmp.ne.s32.totalorder %s196, %s197
      %p209 = scmp.eq.s32.totalorder %s26, 1
      %p210 = por %p208, %p209
      %p212 = scmp.ne.s32.totalorder %s197, %s211
      %p213 = scmp.eq.s32.totalorder %s26, 0
      %p214 = por %p212, %p213
      %s216 = sadd.s32 %s215, 1
      %p219 = scmp.eq.s32.totalorder %s20, 1
      %p220 = scmp.ne.s32.totalorder %s215, %s217
      %p221 = scmp.eq.s32.totalorder %s20, 0
      %p222 = por %p220, %p221
      %p223 = scmp.ne.s32.totalorder %s215, %s217
      %p224 = scmp.eq.s32.totalorder %s25, 1
      %p225 = por %p223, %p224
      %p226 = scmp.ne.s32.totalorder %s217, %s218
      %p227 = scmp.eq.s32.totalorder %s25, 0
      %p228 = por %p226, %p227
      %p229 = scmp.ne.s32.totalorder %s217, %s218
      %p230 = scmp.eq.s32.totalorder %s26, 1
      %p231 = por %p229, %p230
      %p233 = scmp.ne.s32.totalorder %s218, %s232
      %p234 = scmp.eq.s32.totalorder %s26, 0
      %p235 = por %p233, %p234
      %s236 = ssub.s32 %s27, %s39
      %s237 = ssub.s32 %s28, %s35
      %s238 = sor.u32 %s236, %s237
      %p239 = scmp.eq.s32.totalorder %s238, 0
      %s241 = sadd.s32 %s240, 1
      %s242 = scalar_select %p239, %s240, %s241
      %p245 = pneg %p239
      %p246 = scmp.eq.s32.totalorder %s20, 1
      %p247 = por %p245, %p246
      %p248 = scmp.ne.s32.totalorder %s240, %s243
      %p249 = scmp.eq.s32.totalorder %s20, 0
      %p250 = por %p248, %p249
      %p251 = scmp.ne.s32.totalorder %s240, %s243
      %p252 = scmp.eq.s32.totalorder %s25, 1
      %p253 = por %p251, %p252
      %p254 = scmp.ne.s32.totalorder %s243, %s244
      %p255 = scmp.eq.s32.totalorder %s25, 0
      %p256 = por %p254, %p255
      %p257 = scmp.ne.s32.totalorder %s243, %s244
      %p258 = scmp.eq.s32.totalorder %s26, 1
      %p259 = por %p257, %p258
      %p261 = scmp.ne.s32.totalorder %s244, %s260
      %p262 = scmp.eq.s32.totalorder %s26, 0
      %p263 = por %p261, %p262
      %s264 = ssub.s32 %s27, %s39
      %s265 = ssub.s32 %s28, %s35
      %s266 = sor.u32 %s264, %s265
      %p267 = scmp.eq.s32.totalorder %s266, 0
      %s269 = sadd.s32 %s268, 1
      %s270 = scalar_select %p267, %s268, %s269
      %p273 = pneg %p267
      %p274 = scmp.eq.s32.totalorder %s20, 1
      %p275 = por %p273, %p274
      %p276 = scmp.ne.s32.totalorder %s268, %s271
      %p277 = scmp.eq.s32.totalorder %s20, 0
      %p278 = por %p276, %p277
      %p279 = scmp.ne.s32.totalorder %s268, %s271
      %p280 = scmp.eq.s32.totalorder %s25, 1
      %p281 = por %p279, %p280
      %p282 = scmp.ne.s32.totalorder %s271, %s272
      %p283 = scmp.eq.s32.totalorder %s25, 0
      %p284 = por %p282, %p283
      %p285 = scmp.ne.s32.totalorder %s271, %s272
      %p286 = scmp.eq.s32.totalorder %s26, 1
      %p287 = por %p285, %p286
      %p289 = scmp.ne.s32.totalorder %s272, %s288
      %p290 = scmp.eq.s32.totalorder %s26, 0
      %p291 = por %p289, %p290
      %p292 = scmp.le.s32.totalorder 1, %s20
      %p293 = scmp.lt.s32.totalorder %s20, 3
      %p294 = pnand %p292, %p293
      %p295 = pneg %p294
      // Predicated region
      $region9: #{_lambda_.1} parent=5 // pred_check
        _
      $region10: #{_lambda_.1} parent=5 // pred_check_branch
        %297 = sbr.rel (%p294) target = $region12
      $region11: #{_lambda_.1} parent=5 // pred_region
        %s298 = ssub.s32 %s20, 1
        // Predicated region
        $region13: #{_lambda_.1} parent=11 // pred_check
          %p299 = pneg %p81
        $region14: #{_lambda_.1} parent=11 // pred_check_branch
          %301 = sbr.rel (%p299) target = $region16
        $region15: #{_lambda_.1} parent=11 // pred_region
          %303 = vsyncadd [#allocation3], 0
          %s304 = sshll.u32 %s1, 4
          %s305 = int_to_ptr.hbm [resolvable:$true] %s304
          %s306 = sshll.u32 [#allocation2], 4
          %s307 = int_to_ptr.vmem [resolvable:$true] %s306
          %312 = dma.hbm_to_vmem [thread:$0]  %s305, 8192, %s307, [#allocation3], 256, 256, 16
        $region16: #{_lambda_.1} parent=11 // pred_fallthru
          _
        // Predicated region
        $region17: #{_lambda_.1} parent=11 // pred_check
          %p313 = pneg %p102
        $region18: #{_lambda_.1} parent=11 // pred_check_branch
          %315 = sbr.rel (%p313) target = $region20
        $region19: #{_lambda_.1} parent=11 // pred_region
          _
        $region20: #{_lambda_.1} parent=11 // pred_fallthru
          _
        // Predicated region
        $region21: #{_lambda_.1} parent=11 // pred_check
          %p316 = pneg %p123
        $region22: #{_lambda_.1} parent=11 // pred_check_branch
          %318 = sbr.rel (%p316) target = $region24
        $region23: #{_lambda_.1} parent=11 // pred_region
          %320 = vsyncadd [#allocation5], 0
          %s321 = sshll.u32 %s3, 4
          %s322 = int_to_ptr.hbm [resolvable:$true] %s321
          %s323 = sshll.u32 [#allocation4], 4
          %s324 = int_to_ptr.vmem [resolvable:$true] %s323
          %329 = dma.hbm_to_vmem [thread:$0]  %s322, 8192, %s324, [#allocation5], 256, 256, 16
        $region24: #{_lambda_.1} parent=11 // pred_fallthru
          _
        // Predicated region
        $region25: #{_lambda_.1} parent=11 // pred_check
          %p330 = pneg %p144
        $region26: #{_lambda_.1} parent=11 // pred_check_branch
          %332 = sbr.rel (%p330) target = $region28
        $region27: #{_lambda_.1} parent=11 // pred_region
          _
        $region28: #{_lambda_.1} parent=11 // pred_fallthru
          _
        // Predicated region
        $region29: #{_lambda_.1} parent=11 // pred_check
          %p333 = pneg %p165
        $region30: #{_lambda_.1} parent=11 // pred_check_branch
          %335 = sbr.rel (%p333) target = $region32
        $region31: #{_lambda_.1} parent=11 // pred_region
          %337 = vsyncadd [#allocation5], 0
          %s338 = sshll.u32 %s5, 4
          %s339 = int_to_ptr.hbm [resolvable:$true] %s338
          %s340 = sshll.u32 [#allocation6], 4
          %s341 = int_to_ptr.vmem [resolvable:$true] %s340
          %346 = dma.hbm_to_vmem [thread:$0]  %s339, 8192, %s341, [#allocation5], 256, 256, 16
        $region32: #{_lambda_.1} parent=11 // pred_fallthru
          _
        // Predicated region
        $region33: #{_lambda_.1} parent=11 // pred_check
          %p347 = pneg %p186
        $region34: #{_lambda_.1} parent=11 // pred_check_branch
          %349 = sbr.rel (%p347) target = $region36
        $region35: #{_lambda_.1} parent=11 // pred_region
          _
        $region36: #{_lambda_.1} parent=11 // pred_fallthru
          _
        // Predicated region
        $region37: #{_lambda_.1} parent=11 // pred_check
          %p350 = pneg %p207
        $region38: #{_lambda_.1} parent=11 // pred_check_branch
          %352 = sbr.rel (%p350) target = $region40
        $region39: #{_lambda_.1} parent=11 // pred_region
          %354 = vsyncadd [#allocation8], 0
          %s355 = sshll.u32 %s7, 4
          %s356 = int_to_ptr.hbm [resolvable:$true] %s355
          %s357 = sshll.u32 [#allocation7], 4
          %s358 = int_to_ptr.vmem [resolvable:$true] %s357
          %363 = dma.hbm_to_vmem [thread:$0]  %s356, 8192, %s358, [#allocation8], 256, 256, 16
        $region40: #{_lambda_.1} parent=11 // pred_fallthru
          _
        // Predicated region
        $region41: #{_lambda_.1} parent=11 // pred_check
          %p364 = pneg %p228
        $region42: #{_lambda_.1} parent=11 // pred_check_branch
          %366 = sbr.rel (%p364) target = $region44
        $region43: #{_lambda_.1} parent=11 // pred_region
          _
        $region44: #{_lambda_.1} parent=11 // pred_fallthru
          _
      $region12: #{_lambda_.1} parent=5 // pred_fallthru
        _
      %p367 = scmp.lt.s32.totalorder %s20, 2
      // Predicated region
      $region45: #{_lambda_.1} parent=5 // pred_check
        %p368 = pneg %p367
      $region46: #{_lambda_.1} parent=5 // pred_check_branch
        %370 = sbr.rel (%p368) target = $region48
      $region47: #{_lambda_.1} parent=5 // pred_region
        // Predicated region
        $region49: #{_lambda_.1} parent=47 // pred_check
          %p371 = pneg %p54
        $region50: #{_lambda_.1} parent=47 // pred_check_branch
          %373 = sbr.rel (%p371) target = $region52
        $region51: #{_lambda_.1} parent=47 // pred_region
          %s374 = smul.u32 3, %s28
          %p375 = scmp.lt.s32.totalorder %s27, 1
          %s376 = scalar_select %p375, %s27, 1
          %p377 = scmp.lt.s32.totalorder %s374, 2
          %s378 = scalar_select %p377, %s374, 2
          %s379 = smul.addr %s378, 2
          %s380 = smul.addr %s376, 6
          %s381 = sadd.s32 %s379, %s380
          %s382 = smul.addr %s381, 8
          %s383 = scalar_lea.vmem %s0, %s382
          %s384 = smul.u32 3, %s28
        $region52: #{_lambda_.1} parent=47 // pred_fallthru
          _
      $region48: #{_lambda_.1} parent=5 // pred_fallthru
        _
      %p385 = scmp.le.s32.totalorder 1, %s20
      %p386 = scmp.lt.s32.totalorder %s20, 3
      %p387 = pnand %p385, %p386
      %p388 = pneg %p387
      // Predicated region
      $region53: #{_lambda_.1} parent=5 // pred_check
        _
      $region54: #{_lambda_.1} parent=5 // pred_check_branch
        %390 = sbr.rel (%p387) target = $region56
      $region55: #{_lambda_.1} parent=5 // pred_region
        %s391 = ssub.s32 %s20, 1
        // Predicated region
        $region57: #{_lambda_.1} parent=55 // pred_check
          %p392 = pneg %p81
        $region58: #{_lambda_.1} parent=55 // pred_check_branch
          %394 = sbr.rel (%p392) target = $region60
        $region59: #{_lambda_.1} parent=55 // pred_region
          %396 = dma.done [#allocation3], 8192
        $region60: #{_lambda_.1} parent=55 // pred_fallthru
          _
        // Predicated region
        $region61: #{_lambda_.1} parent=55 // pred_check
          %p397 = pneg %p123
        $region62: #{_lambda_.1} parent=55 // pred_check_branch
          %399 = sbr.rel (%p397) target = $region64
        $region63: #{_lambda_.1} parent=55 // pred_region
          %401 = dma.done [#allocation5], 8192
        $region64: #{_lambda_.1} parent=55 // pred_fallthru
          _
        // Predicated region
        $region65: #{_lambda_.1} parent=55 // pred_check
          %p402 = pneg %p165
        $region66: #{_lambda_.1} parent=55 // pred_check_branch
          %404 = sbr.rel (%p402) target = $region68
        $region67: #{_lambda_.1} parent=55 // pred_region
          %406 = dma.done [#allocation5], 8192
        $region68: #{_lambda_.1} parent=55 // pred_fallthru
          _
        // Predicated region
        $region69: #{_lambda_.1} parent=55 // pred_check
          %p407 = pneg %p207
        $region70: #{_lambda_.1} parent=55 // pred_check_branch
          %409 = sbr.rel (%p407) target = $region72
        $region71: #{_lambda_.1} parent=55 // pred_region
          %411 = dma.done [#allocation8], 8192
        $region72: #{_lambda_.1} parent=55 // pred_fallthru
          _
        %s412 = smul.u32 3, %s30
        %p413 = scmp.lt.s32.totalorder %s29, 1
        %s414 = scalar_select %p413, %s29, 1
        %p415 = scmp.lt.s32.totalorder %s412, 2
        %s416 = scalar_select %p415, %s412, 2
        %s417 = smul.addr %s416, 2
        %s418 = smul.addr %s414, 6
        %s419 = sadd.s32 %s417, %s418
        %s420 = smul.addr %s419, 8
        %s421 = scalar_lea.vmem %s0, %s420
        %p422 = pneg %p60
        %p423 = pneg %p57
        %p424 = pneg %p81
        %p425 = pneg %p78
        %p426 = pneg %p102
        %p427 = pneg %p99
        %p428 = pneg %p123
        %p429 = pneg %p120
        %p430 = pneg %p144
        %p431 = pneg %p141
        %p432 = pneg %p165
        %p433 = pneg %p162
        %p434 = pneg %p186
        %p435 = pneg %p183
        %p436 = pneg %p207
        %p437 = pneg %p204
        %p438 = pneg %p228
        %p439 = pneg %p225
        %p440 = pneg %p256
        %p441 = pneg %p253
        %s442 = smul.u32 3, %s30
        %p443 = scmp.lt.s32.totalorder %s29, 1
        %s444 = scalar_select %p443, %s29, 1
        %p445 = scmp.lt.s32.totalorder %s442, 2
        %s446 = scalar_select %p445, %s442, 2
        %s447 = smul.addr %s446, 2
        %s448 = smul.addr %s444, 6
        %s449 = sadd.s32 %s447, %s448
        %s450 = smul.addr %s449, 8
        %s451 = scalar_lea.vmem %s9, %s450
        %p452 = pneg %p284
        %p453 = pneg %p281
        %s454 = smul.u32 3, %s30
        %p455 = scmp.lt.s32.totalorder %s29, 1
        %s456 = scalar_select %p455, %s29, 1
        %p457 = scmp.lt.s32.totalorder %s454, 2
        %s458 = scalar_select %p457, %s454, 2
        %s459 = smul.addr %s458, 2
        %s460 = smul.addr %s456, 6
        %s461 = sadd.s32 %s459, %s460
        %s462 = smul.addr %s461, 8
        %s463 = scalar_lea.vmem %s10, %s462
        %s464 = smul.u32 3, %s30
        %p465 = scmp.lt.s32.totalorder %s29, 1
        %s466 = scalar_select %p465, %s29, 1
        %p467 = scmp.lt.s32.totalorder %s464, 2
        %s468 = scalar_select %p467, %s464, 2
        %s469 = smul.addr %s468, 2
        %s470 = smul.addr %s466, 6
        %s471 = sadd.s32 %s469, %s470
        %s472 = smul.addr %s471, 8
        %s473 = scalar_lea.vmem %s0, %s472
        %s474 = smul.u32 3, %s30
        %s475 = smul.u32 3, %s30
        %p476 = scmp.lt.s32.totalorder %s29, 1
        %s477 = scalar_select %p476, %s29, 1
        %p478 = scmp.lt.s32.totalorder %s475, 2
        %s479 = scalar_select %p478, %s475, 2
        %s480 = smul.addr %s479, 2
        %s481 = smul.addr %s477, 6
        %s482 = sadd.s32 %s480, %s481
        %s483 = smul.addr %s482, 8
        %s484 = scalar_lea.vmem %s9, %s483
        %s485 = smul.u32 3, %s30
        %s486 = smul.u32 3, %s30
        %p487 = scmp.lt.s32.totalorder %s29, 1
        %s488 = scalar_select %p487, %s29, 1
        %p489 = scmp.lt.s32.totalorder %s486, 2
        %s490 = scalar_select %p489, %s486, 2
        %s491 = smul.addr %s490, 2
        %s492 = smul.addr %s488, 6
        %s493 = sadd.s32 %s491, %s492
        %s494 = smul.addr %s493, 8
        %s495 = scalar_lea.vmem %s10, %s494
        %s496 = smul.u32 3, %s30
        %v497 = vld [vmem:[%s473] sm:$0xff]
        %v498 = vld [vmem:[%s473 + $0x8] sm:$0xff]
        %v499 = vld [vmem:[%s473 + $0x10] sm:$0xff]
        %v500 = vld [vmem:[%s473 + $0x18] sm:$0xff]
        %v501 = vld [vmem:[%s473 + $0x20] sm:$0xff]
        %v502 = vld [vmem:[%s473 + $0x28] sm:$0xff]
        %v503 = vld [vmem:[#allocation2] sm:$0xff]
        %v504 = vld [vmem:[#allocation2 + $0x8] sm:$0xff]
        %v505 = vld [vmem:[#allocation2 + $0x10] sm:$0xff]
        %v506 = vld [vmem:[#allocation2 + $0x18] sm:$0xff]
        %v507 = vld [vmem:[#allocation2 + $0x20] sm:$0xff]
        %v508 = vld [vmem:[#allocation2 + $0x28] sm:$0xff]
        %v509 = vld [vmem:[#allocation2 + $0x30] sm:$0xff]
        %v510 = vld [vmem:[#allocation2 + $0x38] sm:$0xff]
        %v511 = vld [vmem:[#allocation2 + $0x40] sm:$0xff]
        %v512 = vld [vmem:[#allocation2 + $0x48] sm:$0xff]
        %v513 = vld [vmem:[#allocation2 + $0x50] sm:$0xff]
        %v514 = vld [vmem:[#allocation2 + $0x58] sm:$0xff]
        %v515 = vld [vmem:[#allocation2 + $0x60] sm:$0xff]
        %v516 = vld [vmem:[#allocation2 + $0x68] sm:$0xff]
        %v517 = vld [vmem:[#allocation2 + $0x70] sm:$0xff]
        %v518 = vld [vmem:[#allocation2 + $0x78] sm:$0xff]
        %v519 = vld [vmem:[#allocation2 + $0x80] sm:$0xff]
        %v520 = vld [vmem:[#allocation2 + $0x88] sm:$0xff]
        %v521 = vld [vmem:[#allocation2 + $0x90] sm:$0xff]
        %v522 = vld [vmem:[#allocation2 + $0x98] sm:$0xff]
        %v523 = vld [vmem:[#allocation2 + $0xa0] sm:$0xff]
        %v524 = vld [vmem:[#allocation2 + $0xa8] sm:$0xff]
        %v525 = vld [vmem:[#allocation2 + $0xb0] sm:$0xff]
        %v526 = vld [vmem:[#allocation2 + $0xb8] sm:$0xff]
        %v527 = vld [vmem:[#allocation2 + $0xc0] sm:$0xff]
        %v528 = vld [vmem:[#allocation2 + $0xc8] sm:$0xff]
        %v529 = vld [vmem:[#allocation2 + $0xd0] sm:$0xff]
        %v530 = vld [vmem:[#allocation2 + $0xd8] sm:$0xff]
        %v531 = vld [vmem:[#allocation2 + $0xe0] sm:$0xff]
        %v532 = vld [vmem:[#allocation2 + $0xe8] sm:$0xff]
        %v533 = vld [vmem:[#allocation2 + $0xf0] sm:$0xff]
        %v534 = vld [vmem:[#allocation2 + $0xf8] sm:$0xff]
        %v535 = vld [vmem:[#allocation2 + $0x100] sm:$0xff]
        %v536 = vld [vmem:[#allocation2 + $0x108] sm:$0xff]
        %v537 = vld [vmem:[#allocation2 + $0x110] sm:$0xff]
        %v538 = vld [vmem:[#allocation2 + $0x118] sm:$0xff]
        %v539 = vld [vmem:[#allocation2 + $0x120] sm:$0xff]
        %v540 = vld [vmem:[#allocation2 + $0x128] sm:$0xff]
        %v541 = vld [vmem:[#allocation2 + $0x130] sm:$0xff]
        %v542 = vld [vmem:[#allocation2 + $0x138] sm:$0xff]
        %v543 = vld [vmem:[#allocation2 + $0x140] sm:$0xff]
        %v544 = vld [vmem:[#allocation2 + $0x148] sm:$0xff]
        %v545 = vld [vmem:[#allocation2 + $0x150] sm:$0xff]
        %v546 = vld [vmem:[#allocation2 + $0x158] sm:$0xff]
        %v547 = vld [vmem:[#allocation2 + $0x160] sm:$0xff]
        %v548 = vld [vmem:[#allocation2 + $0x168] sm:$0xff]
        %v549 = vld [vmem:[#allocation2 + $0x170] sm:$0xff]
        %v550 = vld [vmem:[#allocation2 + $0x178] sm:$0xff]
        %v551 = vld [vmem:[#allocation2 + $0x180] sm:$0xff]
        %v552 = vld [vmem:[#allocation2 + $0x188] sm:$0xff]
        %v553 = vld [vmem:[#allocation2 + $0x190] sm:$0xff]
        %v554 = vld [vmem:[#allocation2 + $0x198] sm:$0xff]
        %v555 = vld [vmem:[#allocation2 + $0x1a0] sm:$0xff]
        %v556 = vld [vmem:[#allocation2 + $0x1a8] sm:$0xff]
        %v557 = vld [vmem:[#allocation2 + $0x1b0] sm:$0xff]
        %v558 = vld [vmem:[#allocation2 + $0x1b8] sm:$0xff]
        %v559 = vld [vmem:[#allocation2 + $0x1c0] sm:$0xff]
        %v560 = vld [vmem:[#allocation2 + $0x1c8] sm:$0xff]
        %v561 = vld [vmem:[#allocation2 + $0x1d0] sm:$0xff]
        %v562 = vld [vmem:[#allocation2 + $0x1d8] sm:$0xff]
        %v563 = vld [vmem:[#allocation2 + $0x1e0] sm:$0xff]
        %v564 = vld [vmem:[#allocation2 + $0x1e8] sm:$0xff]
        %v565 = vld [vmem:[#allocation2 + $0x1f0] sm:$0xff]
        %v566 = vld [vmem:[#allocation2 + $0x1f8] sm:$0xff]
        %v567 = vld [vmem:[%s2] sm:$0x3]
        %v569 = vperm.slane %v567, 0
        %v570 = vperm.slane %v567, 1
        %573 = vmatpush.msra.mxu0 %v533
        %574 = vmatpush.msra.mxu0 %v531
        %575 = vmatpush.msra.mxu0 %v529
        %576 = vmatpush.msra.mxu0 %v527
        %577 = vmatpush.msra.mxu0 %v525
        %578 = vmatpush.msra.mxu0 %v523
        %579 = vmatpush.msra.mxu0 %v521
        %580 = vmatpush.msra.mxu0 %v519
        %581 = vmatpush.msra.mxu0 %v517
        %582 = vmatpush.msra.mxu0 %v515
        %583 = vmatpush.msra.mxu0 %v513
        %584 = vmatpush.msra.mxu0 %v511
        %585 = vmatpush.msra.mxu0 %v509
        %586 = vmatpush.msra.mxu0 %v507
        %587 = vmatpush.msra.mxu0 %v505
        %588 = vmatpush.msra.mxu0 %v503
        %589 = vmatmul.f32.gmra.mxu0 %v497
        %v590 = vpop.f32.mrf.mxu0
        %v591 = vadd.f32 %v569, %v590
        %592 = vmatmul.f32.gmra.mxu0 %v499
        %v593 = vpop.f32.mrf.mxu0
        %v594 = vadd.f32 %v569, %v593
        %595 = vmatmul.f32.gmra.mxu0 %v501
        %v596 = vpop.f32.mrf.mxu0
        %v597 = vadd.f32 %v569, %v596
        %598 = vdwg.mxu0
        %599 = vmatpush.msra.mxu0 %v565
        %600 = vmatpush.msra.mxu0 %v563
        %601 = vmatpush.msra.mxu0 %v561
        %602 = vmatpush.msra.mxu0 %v559
        %603 = vmatpush.msra.mxu0 %v557
        %604 = vmatpush.msra.mxu0 %v555
        %605 = vmatpush.msra.mxu0 %v553
        %606 = vmatpush.msra.mxu0 %v551
        %607 = vmatpush.msra.mxu0 %v549
        %608 = vmatpush.msra.mxu0 %v547
        %609 = vmatpush.msra.mxu0 %v545
        %610 = vmatpush.msra.mxu0 %v543
        %611 = vmatpush.msra.mxu0 %v541
        %612 = vmatpush.msra.mxu0 %v539
        %613 = vmatpush.msra.mxu0 %v537
        %614 = vmatpush.msra.mxu0 %v535
        %615 = vmatmul.f32.gmra.mxu0 %v498
        %v616 = vpop.f32.mrf.mxu0
        %v617 = vadd.f32 %v591, %v616
        %618 = vmatmul.f32.gmra.mxu0 %v500
        %v619 = vpop.f32.mrf.mxu0
        %v620 = vadd.f32 %v594, %v619
        %621 = vmatmul.f32.gmra.mxu0 %v502
        %v622 = vpop.f32.mrf.mxu0
        %v623 = vadd.f32 %v597, %v622
        %624 = vdwg.mxu0
        %625 = vmatpush.msra.mxu0 %v534
        %626 = vmatpush.msra.mxu0 %v532
        %627 = vmatpush.msra.mxu0 %v530
        %628 = vmatpush.msra.mxu0 %v528
        %629 = vmatpush.msra.mxu0 %v526
        %630 = vmatpush.msra.mxu0 %v524
        %631 = vmatpush.msra.mxu0 %v522
        %632 = vmatpush.msra.mxu0 %v520
        %633 = vmatpush.msra.mxu0 %v518
        %634 = vmatpush.msra.mxu0 %v516
        %635 = vmatpush.msra.mxu0 %v514
        %636 = vmatpush.msra.mxu0 %v512
        %637 = vmatpush.msra.mxu0 %v510
        %638 = vmatpush.msra.mxu0 %v508
        %639 = vmatpush.msra.mxu0 %v506
        %640 = vmatpush.msra.mxu0 %v504
        %641 = vmatmul.f32.gmra.mxu0 %v497
        %v642 = vpop.f32.mrf.mxu0
        %v643 = vadd.f32 %v570, %v642
        %644 = vmatmul.f32.gmra.mxu0 %v499
        %v645 = vpop.f32.mrf.mxu0
        %v646 = vadd.f32 %v570, %v645
        %647 = vmatmul.f32.gmra.mxu0 %v501
        %v648 = vpop.f32.mrf.mxu0
        %v649 = vadd.f32 %v570, %v648
        %650 = vdwg.mxu0
        %651 = vmatpush.msra.mxu0 %v566
        %652 = vmatpush.msra.mxu0 %v564
        %653 = vmatpush.msra.mxu0 %v562
        %654 = vmatpush.msra.mxu0 %v560
        %655 = vmatpush.msra.mxu0 %v558
        %656 = vmatpush.msra.mxu0 %v556
        %657 = vmatpush.msra.mxu0 %v554
        %658 = vmatpush.msra.mxu0 %v552
        %659 = vmatpush.msra.mxu0 %v550
        %660 = vmatpush.msra.mxu0 %v548
        %661 = vmatpush.msra.mxu0 %v546
        %662 = vmatpush.msra.mxu0 %v544
        %663 = vmatpush.msra.mxu0 %v542
        %664 = vmatpush.msra.mxu0 %v540
        %665 = vmatpush.msra.mxu0 %v538
        %666 = vmatpush.msra.mxu0 %v536
        %667 = vmatmul.f32.gmra.mxu0 %v498
        %v668 = vpop.f32.mrf.mxu0
        %v669 = vadd.f32 %v643, %v668
        %670 = vmatmul.f32.gmra.mxu0 %v500
        %v671 = vpop.f32.mrf.mxu0
        %v672 = vadd.f32 %v646, %v671
        %673 = vmatmul.f32.gmra.mxu0 %v502
        %v674 = vpop.f32.mrf.mxu0
        %v675 = vadd.f32 %v649, %v674
        %676 = vdwg.mxu0
        %v677 = vmax.f32 %v617, 0.0
        %v678 = vmax.f32 %v669, 0.0
        %v679 = vmax.f32 %v620, 0.0
        %v680 = vmax.f32 %v672, 0.0
        %v681 = vmax.f32 %v623, 0.0
        %v682 = vmax.f32 %v675, 0.0
        %v683 = vld [vmem:[#allocation4] sm:$0xff]
        %v684 = vld [vmem:[#allocation4 + $0x8] sm:$0xff]
        %v685 = vld [vmem:[#allocation4 + $0x10] sm:$0xff]
        %v686 = vld [vmem:[#allocation4 + $0x18] sm:$0xff]
        %v687 = vld [vmem:[#allocation4 + $0x20] sm:$0xff]
        %v688 = vld [vmem:[#allocation4 + $0x28] sm:$0xff]
        %v689 = vld [vmem:[#allocation4 + $0x30] sm:$0xff]
        %v690 = vld [vmem:[#allocation4 + $0x38] sm:$0xff]
        %v691 = vld [vmem:[#allocation4 + $0x40] sm:$0xff]
        %v692 = vld [vmem:[#allocation4 + $0x48] sm:$0xff]
        %v693 = vld [vmem:[#allocation4 + $0x50] sm:$0xff]
        %v694 = vld [vmem:[#allocation4 + $0x58] sm:$0xff]
        %v695 = vld [vmem:[#allocation4 + $0x60] sm:$0xff]
        %v696 = vld [vmem:[#allocation4 + $0x68] sm:$0xff]
        %v697 = vld [vmem:[#allocation4 + $0x70] sm:$0xff]
        %v698 = vld [vmem:[#allocation4 + $0x78] sm:$0xff]
        %v699 = vld [vmem:[#allocation4 + $0x80] sm:$0xff]
        %v700 = vld [vmem:[#allocation4 + $0x88] sm:$0xff]
        %v701 = vld [vmem:[#allocation4 + $0x90] sm:$0xff]
        %v702 = vld [vmem:[#allocation4 + $0x98] sm:$0xff]
        %v703 = vld [vmem:[#allocation4 + $0xa0] sm:$0xff]
        %v704 = vld [vmem:[#allocation4 + $0xa8] sm:$0xff]
        %v705 = vld [vmem:[#allocation4 + $0xb0] sm:$0xff]
        %v706 = vld [vmem:[#allocation4 + $0xb8] sm:$0xff]
        %v707 = vld [vmem:[#allocation4 + $0xc0] sm:$0xff]
        %v708 = vld [vmem:[#allocation4 + $0xc8] sm:$0xff]
        %v709 = vld [vmem:[#allocation4 + $0xd0] sm:$0xff]
        %v710 = vld [vmem:[#allocation4 + $0xd8] sm:$0xff]
        %v711 = vld [vmem:[#allocation4 + $0xe0] sm:$0xff]
        %v712 = vld [vmem:[#allocation4 + $0xe8] sm:$0xff]
        %v713 = vld [vmem:[#allocation4 + $0xf0] sm:$0xff]
        %v714 = vld [vmem:[#allocation4 + $0xf8] sm:$0xff]
        %v715 = vld [vmem:[#allocation4 + $0x100] sm:$0xff]
        %v716 = vld [vmem:[#allocation4 + $0x108] sm:$0xff]
        %v717 = vld [vmem:[#allocation4 + $0x110] sm:$0xff]
        %v718 = vld [vmem:[#allocation4 + $0x118] sm:$0xff]
        %v719 = vld [vmem:[#allocation4 + $0x120] sm:$0xff]
        %v720 = vld [vmem:[#allocation4 + $0x128] sm:$0xff]
        %v721 = vld [vmem:[#allocation4 + $0x130] sm:$0xff]
        %v722 = vld [vmem:[#allocation4 + $0x138] sm:$0xff]
        %v723 = vld [vmem:[#allocation4 + $0x140] sm:$0xff]
        %v724 = vld [vmem:[#allocation4 + $0x148] sm:$0xff]
        %v725 = vld [vmem:[#allocation4 + $0x150] sm:$0xff]
        %v726 = vld [vmem:[#allocation4 + $0x158] sm:$0xff]
        %v727 = vld [vmem:[#allocation4 + $0x160] sm:$0xff]
        %v728 = vld [vmem:[#allocation4 + $0x168] sm:$0xff]
        %v729 = vld [vmem:[#allocation4 + $0x170] sm:$0xff]
        %v730 = vld [vmem:[#allocation4 + $0x178] sm:$0xff]
        %v731 = vld [vmem:[#allocation4 + $0x180] sm:$0xff]
        %v732 = vld [vmem:[#allocation4 + $0x188] sm:$0xff]
        %v733 = vld [vmem:[#allocation4 + $0x190] sm:$0xff]
        %v734 = vld [vmem:[#allocation4 + $0x198] sm:$0xff]
        %v735 = vld [vmem:[#allocation4 + $0x1a0] sm:$0xff]
        %v736 = vld [vmem:[#allocation4 + $0x1a8] sm:$0xff]
        %v737 = vld [vmem:[#allocation4 + $0x1b0] sm:$0xff]
        %v738 = vld [vmem:[#allocation4 + $0x1b8] sm:$0xff]
        %v739 = vld [vmem:[#allocation4 + $0x1c0] sm:$0xff]
        %v740 = vld [vmem:[#allocation4 + $0x1c8] sm:$0xff]
        %v741 = vld [vmem:[#allocation4 + $0x1d0] sm:$0xff]
        %v742 = vld [vmem:[#allocation4 + $0x1d8] sm:$0xff]
        %v743 = vld [vmem:[#allocation4 + $0x1e0] sm:$0xff]
        %v744 = vld [vmem:[#allocation4 + $0x1e8] sm:$0xff]
        %v745 = vld [vmem:[#allocation4 + $0x1f0] sm:$0xff]
        %v746 = vld [vmem:[#allocation4 + $0x1f8] sm:$0xff]
        %v747 = vld [vmem:[%s4] sm:$0x3]
        %v749 = vperm.slane %v747, 0
        %v750 = vperm.slane %v747, 1
        %753 = vmatpush.msra.mxu0 %v713
        %754 = vmatpush.msra.mxu0 %v711
        %755 = vmatpush.msra.mxu0 %v709
        %756 = vmatpush.msra.mxu0 %v707
        %757 = vmatpush.msra.mxu0 %v705
        %758 = vmatpush.msra.mxu0 %v703
        %759 = vmatpush.msra.mxu0 %v701
        %760 = vmatpush.msra.mxu0 %v699
        %761 = vmatpush.msra.mxu0 %v697
        %762 = vmatpush.msra.mxu0 %v695
        %763 = vmatpush.msra.mxu0 %v693
        %764 = vmatpush.msra.mxu0 %v691
        %765 = vmatpush.msra.mxu0 %v689
        %766 = vmatpush.msra.mxu0 %v687
        %767 = vmatpush.msra.mxu0 %v685
        %768 = vmatpush.msra.mxu0 %v683
        %769 = vmatmul.f32.gmra.mxu0 %v677
        %v770 = vpop.f32.mrf.mxu0
        %v771 = vadd.f32 %v749, %v770
        %772 = vmatmul.f32.gmra.mxu0 %v679
        %v773 = vpop.f32.mrf.mxu0
        %v774 = vadd.f32 %v749, %v773
        %775 = vmatmul.f32.gmra.mxu0 %v681
        %v776 = vpop.f32.mrf.mxu0
        %v777 = vadd.f32 %v749, %v776
        %778 = vdwg.mxu0
        %779 = vmatpush.msra.mxu0 %v745
        %780 = vmatpush.msra.mxu0 %v743
        %781 = vmatpush.msra.mxu0 %v741
        %782 = vmatpush.msra.mxu0 %v739
        %783 = vmatpush.msra.mxu0 %v737
        %784 = vmatpush.msra.mxu0 %v735
        %785 = vmatpush.msra.mxu0 %v733
        %786 = vmatpush.msra.mxu0 %v731
        %787 = vmatpush.msra.mxu0 %v729
        %788 = vmatpush.msra.mxu0 %v727
        %789 = vmatpush.msra.mxu0 %v725
        %790 = vmatpush.msra.mxu0 %v723
        %791 = vmatpush.msra.mxu0 %v721
        %792 = vmatpush.msra.mxu0 %v719
        %793 = vmatpush.msra.mxu0 %v717
        %794 = vmatpush.msra.mxu0 %v715
        %795 = vmatmul.f32.gmra.mxu0 %v678
        %v796 = vpop.f32.mrf.mxu0
        %v797 = vadd.f32 %v771, %v796
        %798 = vmatmul.f32.gmra.mxu0 %v680
        %v799 = vpop.f32.mrf.mxu0
        %v800 = vadd.f32 %v774, %v799
        %801 = vmatmul.f32.gmra.mxu0 %v682
        %v802 = vpop.f32.mrf.mxu0
        %v803 = vadd.f32 %v777, %v802
        %804 = vdwg.mxu0
        %805 = vmatpush.msra.mxu0 %v714
        %806 = vmatpush.msra.mxu0 %v712
        %807 = vmatpush.msra.mxu0 %v710
        %808 = vmatpush.msra.mxu0 %v708
        %809 = vmatpush.msra.mxu0 %v706
        %810 = vmatpush.msra.mxu0 %v704
        %811 = vmatpush.msra.mxu0 %v702
        %812 = vmatpush.msra.mxu0 %v700
        %813 = vmatpush.msra.mxu0 %v698
        %814 = vmatpush.msra.mxu0 %v696
        %815 = vmatpush.msra.mxu0 %v694
        %816 = vmatpush.msra.mxu0 %v692
        %817 = vmatpush.msra.mxu0 %v690
        %818 = vmatpush.msra.mxu0 %v688
        %819 = vmatpush.msra.mxu0 %v686
        %820 = vmatpush.msra.mxu0 %v684
        %821 = vmatmul.f32.gmra.mxu0 %v677
        %v822 = vpop.f32.mrf.mxu0
        %v823 = vadd.f32 %v750, %v822
        %824 = vmatmul.f32.gmra.mxu0 %v679
        %v825 = vpop.f32.mrf.mxu0
        %v826 = vadd.f32 %v750, %v825
        %827 = vmatmul.f32.gmra.mxu0 %v681
        %v828 = vpop.f32.mrf.mxu0
        %v829 = vadd.f32 %v750, %v828
        %830 = vdwg.mxu0
        %831 = vmatpush.msra.mxu0 %v746
        %832 = vmatpush.msra.mxu0 %v744
        %833 = vmatpush.msra.mxu0 %v742
        %834 = vmatpush.msra.mxu0 %v740
        %835 = vmatpush.msra.mxu0 %v738
        %836 = vmatpush.msra.mxu0 %v736
        %837 = vmatpush.msra.mxu0 %v734
        %838 = vmatpush.msra.mxu0 %v732
        %839 = vmatpush.msra.mxu0 %v730
        %840 = vmatpush.msra.mxu0 %v728
        %841 = vmatpush.msra.mxu0 %v726
        %842 = vmatpush.msra.mxu0 %v724
        %843 = vmatpush.msra.mxu0 %v722
        %844 = vmatpush.msra.mxu0 %v720
        %845 = vmatpush.msra.mxu0 %v718
        %846 = vmatpush.msra.mxu0 %v716
        %847 = vmatmul.f32.gmra.mxu0 %v678
        %v848 = vpop.f32.mrf.mxu0
        %v849 = vadd.f32 %v823, %v848
        %850 = vmatmul.f32.gmra.mxu0 %v680
        %v851 = vpop.f32.mrf.mxu0
        %v852 = vadd.f32 %v826, %v851
        %853 = vmatmul.f32.gmra.mxu0 %v682
        %v854 = vpop.f32.mrf.mxu0
        %v855 = vadd.f32 %v829, %v854
        %856 = vdwg.mxu0
        %857 = vst [vmem:[%s484] sm:$0xff] %v797
        %858 = vst [vmem:[%s484 + $0x8] sm:$0xff] %v849
        %859 = vst [vmem:[%s484 + $0x10] sm:$0xff] %v800
        %860 = vst [vmem:[%s484 + $0x18] sm:$0xff] %v852
        %861 = vst [vmem:[%s484 + $0x20] sm:$0xff] %v803
        %862 = vst [vmem:[%s484 + $0x28] sm:$0xff] %v855
        %v863 = vld [vmem:[#allocation6] sm:$0xff]
        %v864 = vld [vmem:[#allocation6 + $0x8] sm:$0xff]
        %v865 = vld [vmem:[#allocation6 + $0x10] sm:$0xff]
        %v866 = vld [vmem:[#allocation6 + $0x18] sm:$0xff]
        %v867 = vld [vmem:[#allocation6 + $0x20] sm:$0xff]
        %v868 = vld [vmem:[#allocation6 + $0x28] sm:$0xff]
        %v869 = vld [vmem:[#allocation6 + $0x30] sm:$0xff]
        %v870 = vld [vmem:[#allocation6 + $0x38] sm:$0xff]
        %v871 = vld [vmem:[#allocation6 + $0x40] sm:$0xff]
        %v872 = vld [vmem:[#allocation6 + $0x48] sm:$0xff]
        %v873 = vld [vmem:[#allocation6 + $0x50] sm:$0xff]
        %v874 = vld [vmem:[#allocation6 + $0x58] sm:$0xff]
        %v875 = vld [vmem:[#allocation6 + $0x60] sm:$0xff]
        %v876 = vld [vmem:[#allocation6 + $0x68] sm:$0xff]
        %v877 = vld [vmem:[#allocation6 + $0x70] sm:$0xff]
        %v878 = vld [vmem:[#allocation6 + $0x78] sm:$0xff]
        %v879 = vld [vmem:[#allocation6 + $0x80] sm:$0xff]
        %v880 = vld [vmem:[#allocation6 + $0x88] sm:$0xff]
        %v881 = vld [vmem:[#allocation6 + $0x90] sm:$0xff]
        %v882 = vld [vmem:[#allocation6 + $0x98] sm:$0xff]
        %v883 = vld [vmem:[#allocation6 + $0xa0] sm:$0xff]
        %v884 = vld [vmem:[#allocation6 + $0xa8] sm:$0xff]
        %v885 = vld [vmem:[#allocation6 + $0xb0] sm:$0xff]
        %v886 = vld [vmem:[#allocation6 + $0xb8] sm:$0xff]
        %v887 = vld [vmem:[#allocation6 + $0xc0] sm:$0xff]
        %v888 = vld [vmem:[#allocation6 + $0xc8] sm:$0xff]
        %v889 = vld [vmem:[#allocation6 + $0xd0] sm:$0xff]
        %v890 = vld [vmem:[#allocation6 + $0xd8] sm:$0xff]
        %v891 = vld [vmem:[#allocation6 + $0xe0] sm:$0xff]
        %v892 = vld [vmem:[#allocation6 + $0xe8] sm:$0xff]
        %v893 = vld [vmem:[#allocation6 + $0xf0] sm:$0xff]
        %v894 = vld [vmem:[#allocation6 + $0xf8] sm:$0xff]
        %v895 = vld [vmem:[#allocation6 + $0x100] sm:$0xff]
        %v896 = vld [vmem:[#allocation6 + $0x108] sm:$0xff]
        %v897 = vld [vmem:[#allocation6 + $0x110] sm:$0xff]
        %v898 = vld [vmem:[#allocation6 + $0x118] sm:$0xff]
        %v899 = vld [vmem:[#allocation6 + $0x120] sm:$0xff]
        %v900 = vld [vmem:[#allocation6 + $0x128] sm:$0xff]
        %v901 = vld [vmem:[#allocation6 + $0x130] sm:$0xff]
        %v902 = vld [vmem:[#allocation6 + $0x138] sm:$0xff]
        %v903 = vld [vmem:[#allocation6 + $0x140] sm:$0xff]
        %v904 = vld [vmem:[#allocation6 + $0x148] sm:$0xff]
        %v905 = vld [vmem:[#allocation6 + $0x150] sm:$0xff]
        %v906 = vld [vmem:[#allocation6 + $0x158] sm:$0xff]
        %v907 = vld [vmem:[#allocation6 + $0x160] sm:$0xff]
        %v908 = vld [vmem:[#allocation6 + $0x168] sm:$0xff]
        %v909 = vld [vmem:[#allocation6 + $0x170] sm:$0xff]
        %v910 = vld [vmem:[#allocation6 + $0x178] sm:$0xff]
        %v911 = vld [vmem:[#allocation6 + $0x180] sm:$0xff]
        %v912 = vld [vmem:[#allocation6 + $0x188] sm:$0xff]
        %v913 = vld [vmem:[#allocation6 + $0x190] sm:$0xff]
        %v914 = vld [vmem:[#allocation6 + $0x198] sm:$0xff]
        %v915 = vld [vmem:[#allocation6 + $0x1a0] sm:$0xff]
        %v916 = vld [vmem:[#allocation6 + $0x1a8] sm:$0xff]
        %v917 = vld [vmem:[#allocation6 + $0x1b0] sm:$0xff]
        %v918 = vld [vmem:[#allocation6 + $0x1b8] sm:$0xff]
        %v919 = vld [vmem:[#allocation6 + $0x1c0] sm:$0xff]
        %v920 = vld [vmem:[#allocation6 + $0x1c8] sm:$0xff]
        %v921 = vld [vmem:[#allocation6 + $0x1d0] sm:$0xff]
        %v922 = vld [vmem:[#allocation6 + $0x1d8] sm:$0xff]
        %v923 = vld [vmem:[#allocation6 + $0x1e0] sm:$0xff]
        %v924 = vld [vmem:[#allocation6 + $0x1e8] sm:$0xff]
        %v925 = vld [vmem:[#allocation6 + $0x1f0] sm:$0xff]
        %v926 = vld [vmem:[#allocation6 + $0x1f8] sm:$0xff]
        %v927 = vld [vmem:[%s6] sm:$0x3]
        %v929 = vperm.slane %v927, 0
        %v930 = vperm.slane %v927, 1
        %933 = vmatpush.msra.mxu0 %v893
        %934 = vmatpush.msra.mxu0 %v891
        %935 = vmatpush.msra.mxu0 %v889
        %936 = vmatpush.msra.mxu0 %v887
        %937 = vmatpush.msra.mxu0 %v885
        %938 = vmatpush.msra.mxu0 %v883
        %939 = vmatpush.msra.mxu0 %v881
        %940 = vmatpush.msra.mxu0 %v879
        %941 = vmatpush.msra.mxu0 %v877
        %942 = vmatpush.msra.mxu0 %v875
        %943 = vmatpush.msra.mxu0 %v873
        %944 = vmatpush.msra.mxu0 %v871
        %945 = vmatpush.msra.mxu0 %v869
        %946 = vmatpush.msra.mxu0 %v867
        %947 = vmatpush.msra.mxu0 %v865
        %948 = vmatpush.msra.mxu0 %v863
        %949 = vmatmul.f32.gmra.mxu0 %v797
        %v950 = vpop.f32.mrf.mxu0
        %v951 = vadd.f32 %v929, %v950
        %952 = vmatmul.f32.gmra.mxu0 %v800
        %v953 = vpop.f32.mrf.mxu0
        %v954 = vadd.f32 %v929, %v953
        %955 = vmatmul.f32.gmra.mxu0 %v803
        %v956 = vpop.f32.mrf.mxu0
        %v957 = vadd.f32 %v929, %v956
        %958 = vdwg.mxu0
        %959 = vmatpush.msra.mxu0 %v925
        %960 = vmatpush.msra.mxu0 %v923
        %961 = vmatpush.msra.mxu0 %v921
        %962 = vmatpush.msra.mxu0 %v919
        %963 = vmatpush.msra.mxu0 %v917
        %964 = vmatpush.msra.mxu0 %v915
        %965 = vmatpush.msra.mxu0 %v913
        %966 = vmatpush.msra.mxu0 %v911
        %967 = vmatpush.msra.mxu0 %v909
        %968 = vmatpush.msra.mxu0 %v907
        %969 = vmatpush.msra.mxu0 %v905
        %970 = vmatpush.msra.mxu0 %v903
        %971 = vmatpush.msra.mxu0 %v901
        %972 = vmatpush.msra.mxu0 %v899
        %973 = vmatpush.msra.mxu0 %v897
        %974 = vmatpush.msra.mxu0 %v895
        %975 = vmatmul.f32.gmra.mxu0 %v849
        %v976 = vpop.f32.mrf.mxu0
        %v977 = vadd.f32 %v951, %v976
        %978 = vmatmul.f32.gmra.mxu0 %v852
        %v979 = vpop.f32.mrf.mxu0
        %v980 = vadd.f32 %v954, %v979
        %981 = vmatmul.f32.gmra.mxu0 %v855
        %v982 = vpop.f32.mrf.mxu0
        %v983 = vadd.f32 %v957, %v982
        %984 = vdwg.mxu0
        %985 = vmatpush.msra.mxu0 %v894
        %986 = vmatpush.msra.mxu0 %v892
        %987 = vmatpush.msra.mxu0 %v890
        %988 = vmatpush.msra.mxu0 %v888
        %989 = vmatpush.msra.mxu0 %v886
        %990 = vmatpush.msra.mxu0 %v884
        %991 = vmatpush.msra.mxu0 %v882
        %992 = vmatpush.msra.mxu0 %v880
        %993 = vmatpush.msra.mxu0 %v878
        %994 = vmatpush.msra.mxu0 %v876
        %995 = vmatpush.msra.mxu0 %v874
        %996 = vmatpush.msra.mxu0 %v872
        %997 = vmatpush.msra.mxu0 %v870
        %998 = vmatpush.msra.mxu0 %v868
        %999 = vmatpush.msra.mxu0 %v866
        %1000 = vmatpush.msra.mxu0 %v864
        %1001 = vmatmul.f32.gmra.mxu0 %v797
        %v1002 = vpop.f32.mrf.mxu0
        %v1003 = vadd.f32 %v930, %v1002
        %1004 = vmatmul.f32.gmra.mxu0 %v800
        %v1005 = vpop.f32.mrf.mxu0
        %v1006 = vadd.f32 %v930, %v1005
        %1007 = vmatmul.f32.gmra.mxu0 %v803
        %v1008 = vpop.f32.mrf.mxu0
        %v1009 = vadd.f32 %v930, %v1008
        %1010 = vdwg.mxu0
        %1011 = vmatpush.msra.mxu0 %v926
        %1012 = vmatpush.msra.mxu0 %v924
        %1013 = vmatpush.msra.mxu0 %v922
        %1014 = vmatpush.msra.mxu0 %v920
        %1015 = vmatpush.msra.mxu0 %v918
        %1016 = vmatpush.msra.mxu0 %v916
        %1017 = vmatpush.msra.mxu0 %v914
        %1018 = vmatpush.msra.mxu0 %v912
        %1019 = vmatpush.msra.mxu0 %v910
        %1020 = vmatpush.msra.mxu0 %v908
        %1021 = vmatpush.msra.mxu0 %v906
        %1022 = vmatpush.msra.mxu0 %v904
        %1023 = vmatpush.msra.mxu0 %v902
        %1024 = vmatpush.msra.mxu0 %v900
        %1025 = vmatpush.msra.mxu0 %v898
        %1026 = vmatpush.msra.mxu0 %v896
        %1027 = vmatmul.f32.gmra.mxu0 %v849
        %v1028 = vpop.f32.mrf.mxu0
        %v1029 = vadd.f32 %v1003, %v1028
        %1030 = vmatmul.f32.gmra.mxu0 %v852
        %v1031 = vpop.f32.mrf.mxu0
        %v1032 = vadd.f32 %v1006, %v1031
        %1033 = vmatmul.f32.gmra.mxu0 %v855
        %v1034 = vpop.f32.mrf.mxu0
        %v1035 = vadd.f32 %v1009, %v1034
        %1036 = vdwg.mxu0
        %v1037 = vmax.f32 %v977, 0.0
        %v1038 = vmax.f32 %v1029, 0.0
        %v1039 = vmax.f32 %v980, 0.0
        %v1040 = vmax.f32 %v1032, 0.0
        %v1041 = vmax.f32 %v983, 0.0
        %v1042 = vmax.f32 %v1035, 0.0
        %v1043 = vld [vmem:[#allocation7] sm:$0xff]
        %v1044 = vld [vmem:[#allocation7 + $0x8] sm:$0xff]
        %v1045 = vld [vmem:[#allocation7 + $0x10] sm:$0xff]
        %v1046 = vld [vmem:[#allocation7 + $0x18] sm:$0xff]
        %v1047 = vld [vmem:[#allocation7 + $0x20] sm:$0xff]
        %v1048 = vld [vmem:[#allocation7 + $0x28] sm:$0xff]
        %v1049 = vld [vmem:[#allocation7 + $0x30] sm:$0xff]
        %v1050 = vld [vmem:[#allocation7 + $0x38] sm:$0xff]
        %v1051 = vld [vmem:[#allocation7 + $0x40] sm:$0xff]
        %v1052 = vld [vmem:[#allocation7 + $0x48] sm:$0xff]
        %v1053 = vld [vmem:[#allocation7 + $0x50] sm:$0xff]
        %v1054 = vld [vmem:[#allocation7 + $0x58] sm:$0xff]
        %v1055 = vld [vmem:[#allocation7 + $0x60] sm:$0xff]
        %v1056 = vld [vmem:[#allocation7 + $0x68] sm:$0xff]
        %v1057 = vld [vmem:[#allocation7 + $0x70] sm:$0xff]
        %v1058 = vld [vmem:[#allocation7 + $0x78] sm:$0xff]
        %v1059 = vld [vmem:[#allocation7 + $0x80] sm:$0xff]
        %v1060 = vld [vmem:[#allocation7 + $0x88] sm:$0xff]
        %v1061 = vld [vmem:[#allocation7 + $0x90] sm:$0xff]
        %v1062 = vld [vmem:[#allocation7 + $0x98] sm:$0xff]
        %v1063 = vld [vmem:[#allocation7 + $0xa0] sm:$0xff]
        %v1064 = vld [vmem:[#allocation7 + $0xa8] sm:$0xff]
        %v1065 = vld [vmem:[#allocation7 + $0xb0] sm:$0xff]
        %v1066 = vld [vmem:[#allocation7 + $0xb8] sm:$0xff]
        %v1067 = vld [vmem:[#allocation7 + $0xc0] sm:$0xff]
        %v1068 = vld [vmem:[#allocation7 + $0xc8] sm:$0xff]
        %v1069 = vld [vmem:[#allocation7 + $0xd0] sm:$0xff]
        %v1070 = vld [vmem:[#allocation7 + $0xd8] sm:$0xff]
        %v1071 = vld [vmem:[#allocation7 + $0xe0] sm:$0xff]
        %v1072 = vld [vmem:[#allocation7 + $0xe8] sm:$0xff]
        %v1073 = vld [vmem:[#allocation7 + $0xf0] sm:$0xff]
        %v1074 = vld [vmem:[#allocation7 + $0xf8] sm:$0xff]
        %v1075 = vld [vmem:[#allocation7 + $0x100] sm:$0xff]
        %v1076 = vld [vmem:[#allocation7 + $0x108] sm:$0xff]
        %v1077 = vld [vmem:[#allocation7 + $0x110] sm:$0xff]
        %v1078 = vld [vmem:[#allocation7 + $0x118] sm:$0xff]
        %v1079 = vld [vmem:[#allocation7 + $0x120] sm:$0xff]
        %v1080 = vld [vmem:[#allocation7 + $0x128] sm:$0xff]
        %v1081 = vld [vmem:[#allocation7 + $0x130] sm:$0xff]
        %v1082 = vld [vmem:[#allocation7 + $0x138] sm:$0xff]
        %v1083 = vld [vmem:[#allocation7 + $0x140] sm:$0xff]
        %v1084 = vld [vmem:[#allocation7 + $0x148] sm:$0xff]
        %v1085 = vld [vmem:[#allocation7 + $0x150] sm:$0xff]
        %v1086 = vld [vmem:[#allocation7 + $0x158] sm:$0xff]
        %v1087 = vld [vmem:[#allocation7 + $0x160] sm:$0xff]
        %v1088 = vld [vmem:[#allocation7 + $0x168] sm:$0xff]
        %v1089 = vld [vmem:[#allocation7 + $0x170] sm:$0xff]
        %v1090 = vld [vmem:[#allocation7 + $0x178] sm:$0xff]
        %v1091 = vld [vmem:[#allocation7 + $0x180] sm:$0xff]
        %v1092 = vld [vmem:[#allocation7 + $0x188] sm:$0xff]
        %v1093 = vld [vmem:[#allocation7 + $0x190] sm:$0xff]
        %v1094 = vld [vmem:[#allocation7 + $0x198] sm:$0xff]
        %v1095 = vld [vmem:[#allocation7 + $0x1a0] sm:$0xff]
        %v1096 = vld [vmem:[#allocation7 + $0x1a8] sm:$0xff]
        %v1097 = vld [vmem:[#allocation7 + $0x1b0] sm:$0xff]
        %v1098 = vld [vmem:[#allocation7 + $0x1b8] sm:$0xff]
        %v1099 = vld [vmem:[#allocation7 + $0x1c0] sm:$0xff]
        %v1100 = vld [vmem:[#allocation7 + $0x1c8] sm:$0xff]
        %v1101 = vld [vmem:[#allocation7 + $0x1d0] sm:$0xff]
        %v1102 = vld [vmem:[#allocation7 + $0x1d8] sm:$0xff]
        %v1103 = vld [vmem:[#allocation7 + $0x1e0] sm:$0xff]
        %v1104 = vld [vmem:[#allocation7 + $0x1e8] sm:$0xff]
        %v1105 = vld [vmem:[#allocation7 + $0x1f0] sm:$0xff]
        %v1106 = vld [vmem:[#allocation7 + $0x1f8] sm:$0xff]
        %v1107 = vld [vmem:[%s8] sm:$0x3]
        %v1109 = vperm.slane %v1107, 0
        %v1110 = vperm.slane %v1107, 1
        %1113 = vmatpush.msra.mxu0 %v1073
        %1114 = vmatpush.msra.mxu0 %v1071
        %1115 = vmatpush.msra.mxu0 %v1069
        %1116 = vmatpush.msra.mxu0 %v1067
        %1117 = vmatpush.msra.mxu0 %v1065
        %1118 = vmatpush.msra.mxu0 %v1063
        %1119 = vmatpush.msra.mxu0 %v1061
        %1120 = vmatpush.msra.mxu0 %v1059
        %1121 = vmatpush.msra.mxu0 %v1057
        %1122 = vmatpush.msra.mxu0 %v1055
        %1123 = vmatpush.msra.mxu0 %v1053
        %1124 = vmatpush.msra.mxu0 %v1051
        %1125 = vmatpush.msra.mxu0 %v1049
        %1126 = vmatpush.msra.mxu0 %v1047
        %1127 = vmatpush.msra.mxu0 %v1045
        %1128 = vmatpush.msra.mxu0 %v1043
        %1129 = vmatmul.f32.gmra.mxu0 %v1037
        %v1130 = vpop.f32.mrf.mxu0
        %v1131 = vadd.f32 %v1109, %v1130
        %1132 = vmatmul.f32.gmra.mxu0 %v1039
        %v1133 = vpop.f32.mrf.mxu0
        %v1134 = vadd.f32 %v1109, %v1133
        %1135 = vmatmul.f32.gmra.mxu0 %v1041
        %v1136 = vpop.f32.mrf.mxu0
        %v1137 = vadd.f32 %v1109, %v1136
        %1138 = vdwg.mxu0
        %1139 = vmatpush.msra.mxu0 %v1105
        %1140 = vmatpush.msra.mxu0 %v1103
        %1141 = vmatpush.msra.mxu0 %v1101
        %1142 = vmatpush.msra.mxu0 %v1099
        %1143 = vmatpush.msra.mxu0 %v1097
        %1144 = vmatpush.msra.mxu0 %v1095
        %1145 = vmatpush.msra.mxu0 %v1093
        %1146 = vmatpush.msra.mxu0 %v1091
        %1147 = vmatpush.msra.mxu0 %v1089
        %1148 = vmatpush.msra.mxu0 %v1087
        %1149 = vmatpush.msra.mxu0 %v1085
        %1150 = vmatpush.msra.mxu0 %v1083
        %1151 = vmatpush.msra.mxu0 %v1081
        %1152 = vmatpush.msra.mxu0 %v1079
        %1153 = vmatpush.msra.mxu0 %v1077
        %1154 = vmatpush.msra.mxu0 %v1075
        %1155 = vmatmul.f32.gmra.mxu0 %v1038
        %v1156 = vpop.f32.mrf.mxu0
        %v1157 = vadd.f32 %v1131, %v1156
        %1158 = vmatmul.f32.gmra.mxu0 %v1040
        %v1159 = vpop.f32.mrf.mxu0
        %v1160 = vadd.f32 %v1134, %v1159
        %1161 = vmatmul.f32.gmra.mxu0 %v1042
        %v1162 = vpop.f32.mrf.mxu0
        %v1163 = vadd.f32 %v1137, %v1162
        %1164 = vdwg.mxu0
        %1165 = vmatpush.msra.mxu0 %v1074
        %1166 = vmatpush.msra.mxu0 %v1072
        %1167 = vmatpush.msra.mxu0 %v1070
        %1168 = vmatpush.msra.mxu0 %v1068
        %1169 = vmatpush.msra.mxu0 %v1066
        %1170 = vmatpush.msra.mxu0 %v1064
        %1171 = vmatpush.msra.mxu0 %v1062
        %1172 = vmatpush.msra.mxu0 %v1060
        %1173 = vmatpush.msra.mxu0 %v1058
        %1174 = vmatpush.msra.mxu0 %v1056
        %1175 = vmatpush.msra.mxu0 %v1054
        %1176 = vmatpush.msra.mxu0 %v1052
        %1177 = vmatpush.msra.mxu0 %v1050
        %1178 = vmatpush.msra.mxu0 %v1048
        %1179 = vmatpush.msra.mxu0 %v1046
        %1180 = vmatpush.msra.mxu0 %v1044
        %1181 = vmatmul.f32.gmra.mxu0 %v1037
        %v1182 = vpop.f32.mrf.mxu0
        %v1183 = vadd.f32 %v1110, %v1182
        %1184 = vmatmul.f32.gmra.mxu0 %v1039
        %v1185 = vpop.f32.mrf.mxu0
        %v1186 = vadd.f32 %v1110, %v1185
        %1187 = vmatmul.f32.gmra.mxu0 %v1041
        %v1188 = vpop.f32.mrf.mxu0
        %v1189 = vadd.f32 %v1110, %v1188
        %1190 = vdwg.mxu0
        %1191 = vmatpush.msra.mxu0 %v1106
        %1192 = vmatpush.msra.mxu0 %v1104
        %1193 = vmatpush.msra.mxu0 %v1102
        %1194 = vmatpush.msra.mxu0 %v1100
        %1195 = vmatpush.msra.mxu0 %v1098
        %1196 = vmatpush.msra.mxu0 %v1096
        %1197 = vmatpush.msra.mxu0 %v1094
        %1198 = vmatpush.msra.mxu0 %v1092
        %1199 = vmatpush.msra.mxu0 %v1090
        %1200 = vmatpush.msra.mxu0 %v1088
        %1201 = vmatpush.msra.mxu0 %v1086
        %1202 = vmatpush.msra.mxu0 %v1084
        %1203 = vmatpush.msra.mxu0 %v1082
        %1204 = vmatpush.msra.mxu0 %v1080
        %1205 = vmatpush.msra.mxu0 %v1078
        %1206 = vmatpush.msra.mxu0 %v1076
        %1207 = vmatmul.f32.gmra.mxu0 %v1038
        %v1208 = vpop.f32.mrf.mxu0
        %v1209 = vadd.f32 %v1183, %v1208
        %1210 = vmatmul.f32.gmra.mxu0 %v1040
        %v1211 = vpop.f32.mrf.mxu0
        %v1212 = vadd.f32 %v1186, %v1211
        %1213 = vmatmul.f32.gmra.mxu0 %v1042
        %v1214 = vpop.f32.mrf.mxu0
        %v1215 = vadd.f32 %v1189, %v1214
        %1216 = vdwg.mxu0
        %1217 = vst [vmem:[%s495] sm:$0xff] %v1157
        %1218 = vst [vmem:[%s495 + $0x8] sm:$0xff] %v1209
        %1219 = vst [vmem:[%s495 + $0x10] sm:$0xff] %v1160
        %1220 = vst [vmem:[%s495 + $0x18] sm:$0xff] %v1212
        %1221 = vst [vmem:[%s495 + $0x20] sm:$0xff] %v1163
        %1222 = vst [vmem:[%s495 + $0x28] sm:$0xff] %v1215
        %s1223 = smul.u32 3, %s30
        %p1224 = scmp.lt.s32.totalorder %s29, 1
        %s1225 = scalar_select %p1224, %s29, 1
        %p1226 = scmp.lt.s32.totalorder %s1223, 2
        %s1227 = scalar_select %p1226, %s1223, 2
        %s1228 = smul.addr %s1227, 2
        %s1229 = smul.addr %s1225, 6
        %s1230 = sadd.s32 %s1228, %s1229
        %s1231 = smul.addr %s1230, 8
        %s1232 = scalar_lea.vmem %s9, %s1231
        %s1233 = smul.u32 3, %s30
        %p1234 = scmp.lt.s32.totalorder %s29, 1
        %s1235 = scalar_select %p1234, %s29, 1
        %p1236 = scmp.lt.s32.totalorder %s1233, 2
        %s1237 = scalar_select %p1236, %s1233, 2
        %s1238 = smul.addr %s1237, 2
        %s1239 = smul.addr %s1235, 6
        %s1240 = sadd.s32 %s1238, %s1239
        %s1241 = smul.addr %s1240, 8
        %s1242 = scalar_lea.vmem %s10, %s1241
        // Predicated region
        $region73: #{_lambda_.1} parent=55 // pred_check
          %p1243 = pneg %p253
        $region74: #{_lambda_.1} parent=55 // pred_check_branch
          %1245 = sbr.rel (%p1243) target = $region76
        $region75: #{_lambda_.1} parent=55 // pred_region
          %s1246 = smul.u32 3, %s30
        $region76: #{_lambda_.1} parent=55 // pred_fallthru
          _
        // Predicated region
        $region77: #{_lambda_.1} parent=55 // pred_check
          %p1247 = pneg %p281
        $region78: #{_lambda_.1} parent=55 // pred_check_branch
          %1249 = sbr.rel (%p1247) target = $region80
        $region79: #{_lambda_.1} parent=55 // pred_region
          %s1250 = smul.u32 3, %s30
        $region80: #{_lambda_.1} parent=55 // pred_fallthru
          _
      $region56: #{_lambda_.1} parent=5 // pred_fallthru
        _
      %p1251 = scmp.le.s32.totalorder 2, %s20
      // Predicated region
      $region81: #{_lambda_.1} parent=5 // pred_check
        %p1252 = pneg %p1251
      $region82: #{_lambda_.1} parent=5 // pred_check_branch
        %1254 = sbr.rel (%p1252) target = $region84
      $region83: #{_lambda_.1} parent=5 // pred_region
        %s1255 = ssub.s32 %s20, 2
        // Predicated region
        $region85: #{_lambda_.1} parent=83 // pred_check
          %p1256 = pneg %p259
        $region86: #{_lambda_.1} parent=83 // pred_check_branch
          %1258 = sbr.rel (%p1256) target = $region88
        $region87: #{_lambda_.1} parent=83 // pred_region
          %s1259 = smul.u32 3, %s32
          %p1260 = scmp.lt.s32.totalorder %s31, 1
          %s1261 = scalar_select %p1260, %s31, 1
          %p1262 = scmp.lt.s32.totalorder %s1259, 2
          %s1263 = scalar_select %p1262, %s1259, 2
          %s1264 = smul.addr %s1263, 2
          %s1265 = smul.addr %s1261, 6
          %s1266 = sadd.s32 %s1264, %s1265
          %s1267 = smul.addr %s1266, 8
          %s1268 = scalar_lea.vmem %s9, %s1267
        $region88: #{_lambda_.1} parent=83 // pred_fallthru
          _
        // Predicated region
        $region89: #{_lambda_.1} parent=83 // pred_check
          %p1269 = pneg %p287
        $region90: #{_lambda_.1} parent=83 // pred_check_branch
          %1271 = sbr.rel (%p1269) target = $region92
        $region91: #{_lambda_.1} parent=83 // pred_region
          %s1272 = smul.u32 3, %s32
          %p1273 = scmp.lt.s32.totalorder %s31, 1
          %s1274 = scalar_select %p1273, %s31, 1
          %p1275 = scmp.lt.s32.totalorder %s1272, 2
          %s1276 = scalar_select %p1275, %s1272, 2
          %s1277 = smul.addr %s1276, 2
          %s1278 = smul.addr %s1274, 6
          %s1279 = sadd.s32 %s1277, %s1278
          %s1280 = smul.addr %s1279, 8
          %s1281 = scalar_lea.vmem %s10, %s1280
        $region92: #{_lambda_.1} parent=83 // pred_fallthru
          _
      $region84: #{_lambda_.1} parent=5 // pred_fallthru
        _
    $region6: #{_lambda_.1} parent=1 // loop_footer
      %s24 = sadd.s32 1, %s20
    $region7: #{_lambda_.1} parent=1 // loop_footer_branch
      %19 = sbr.rel target = $region3
    $region8: #{_lambda_.1} parent=1 // loop_exit
      _
    %1282 = vsyncpa [#allocation3], 1
    %s1283 = scalar_lea.sflag [#allocation3], 1
    %1284 = vsyncpa %s1283, 1
    %1285 = vsyncpa [#allocation5], 1
    %1286 = vsyncpa [#allocation8], 1

</llo_original>
